<compile_context>
chip_gen: v5e
topology: v5e:2x2
jax: 0.10.0
libtpu: 0.0.40
codegen_flags: <defaults>
</compile_context>

<pallas_src>
import jax
import jax.numpy as jnp
import numpy as np
from jax.experimental import pallas as pl
from jax.experimental.pallas import tpu as pltpu


# ---------------------------------------------------------------------------
# Fused kernel: conv1 + ReLU + maxpool(2) + pad + conv2 + ReLU + GAP + Linear
# ---------------------------------------------------------------------------
def _cifar_fused_kernel(x_ref, w1_ref, b1_ref, w2_ref, b2_ref, wc_ref, bc_ref,
                        o_ref, pool_ref, pad_ref):
    Bb, Hp, Wp, Cin = x_ref.shape            # padded input block (bf16)
    H, W = Hp - 2, Wp - 2
    C = w1_ref.shape[2]
    K = wc_ref.shape[1]
    HO, WO = H // 2, W // 2
    M1 = Bb * H * W
    M2 = Bb * HO * WO

    # ---- conv1 (3x3, halo already in input) + bias + ReLU ----
    xb = x_ref[...].astype(jnp.float32)      # one widening cast; compute in f32
    acc1 = jnp.zeros((M1, C), jnp.float32)
    for k in range(9):                       # fused im2col: 9 shifted slices
        dh, dw = k // 3, k % 3
        patch = xb[:, dh:dh + H, dw:dw + W, :].reshape(M1, Cin)
        acc1 = acc1 + jnp.dot(patch, w1_ref[k],
                              preferred_element_type=jnp.float32)
    y1 = jnp.maximum(acc1 + b1_ref[...], 0.0)                # (M1, C)

    # ---- 2x2 max pool: H via value split, W via strided VMEM reads ----
    y1 = y1.reshape(Bb * HO, 2, W, C)
    pool_ref[...] = jnp.maximum(y1[:, 0], y1[:, 1])          # (Bb*HO, W, C)
    pooled = jnp.maximum(pool_ref[:, pl.ds(0, WO, stride=2), :],
                         pool_ref[:, pl.ds(1, WO, stride=2), :])  # (Bb*HO, WO, C)

    # ---- zero-halo pad of the pooled map (stays entirely in VMEM) ----
    pad_ref[...] = jnp.zeros_like(pad_ref)
    pad_ref[:, pl.ds(1, HO), pl.ds(1, WO), :] = pooled.reshape(Bb, HO, WO, C)

    # ---- conv2 (3x3, pad 1) + bias + ReLU ----
    x2 = pad_ref[...]                                        # f32 already
    acc2 = jnp.zeros((M2, C), jnp.float32)
    for k in range(9):
        dh, dw = k // 3, k % 3
        patch = x2[:, dh:dh + HO, dw:dw + WO, :].reshape(M2, C)
        acc2 = acc2 + jnp.dot(patch, w2_ref[k],
                              preferred_element_type=jnp.float32)
    y2 = jnp.maximum(acc2 + b2_ref[...], 0.0)                # (M2, C)

    # ---- global average pool + Linear classifier ----
    feats = jnp.mean(y2.reshape(Bb, HO * WO, C), axis=1)     # (Bb, C)
    logits = jnp.dot(feats, wc_ref[...],
                     preferred_element_type=jnp.float32) + bc_ref[...]
    o_ref[...] = logits.reshape(Bb, 1, K)                    # (Bb, 1, K) f32


# ------------------------------ wrapper -----------------------------------

def _pick_batch_block(n, f32_elems_per_image, budget_bytes=4 * 1024 * 1024):
    """Largest batch block that divides n, keeps >=2 grid steps (pipelining)
    and keeps the f32 working set comfortably inside VMEM."""
    bb = 1
    for cand in (2, 4, 8):
        if (n % cand == 0 and n // cand >= 2
                and cand * 4 * f32_elems_per_image <= budget_bytes):
            bb = cand
    return bb


def cifar_fused(xp, w1, b1, w2, b2, wc, bc):
    """xp: (N, H+2, W+2, Cin) zero-padded NHWC activations (bf16).
    Returns (N, num_classes) f32 logits."""
    N, Hp, Wp, Cin = xp.shape
    H, W = Hp - 2, Wp - 2
    C = w1.shape[2]
    K = wc.shape[1]
    HO, WO = H // 2, W // 2

    per_img = (Hp * Wp * Cin + 3 * H * W * C + HO * W * C
               + (HO + 2) * (WO + 2) * C + 2 * HO * WO * C)
    bb = _pick_batch_block(N, per_img)

    out = pl.pallas_call(
        _cifar_fused_kernel,
        out_shape=jax.ShapeDtypeStruct((N, 1, K), jnp.float32),
        grid_spec=pltpu.PrefetchScalarGridSpec(
            num_scalar_prefetch=0,
            grid=(N // bb,),
            in_specs=[
                pl.BlockSpec((bb, Hp, Wp, Cin), lambda i: (i, 0, 0, 0)),
                pl.BlockSpec((9, Cin, C), lambda i: (0, 0, 0)),
                pl.BlockSpec((1, C), lambda i: (0, 0)),
                pl.BlockSpec((9, C, C), lambda i: (0, 0, 0)),
                pl.BlockSpec((1, C), lambda i: (0, 0)),
                pl.BlockSpec((C, K), lambda i: (0, 0)),
                pl.BlockSpec((1, K), lambda i: (0, 0)),
            ],
            out_specs=pl.BlockSpec((bb, 1, K), lambda i: (i, 0, 0)),
            scratch_shapes=[
                pltpu.VMEM((bb * HO, W, C), jnp.float32),          # H-pooled
                pltpu.VMEM((bb, HO + 2, WO + 2, C), jnp.float32),  # padded pool
            ],
        ),
        compiler_params=pltpu.CompilerParams(
            dimension_semantics=("parallel",)),
    )(xp, w1, b1, w2, b2, wc, bc)
    return out.reshape(N, K)


# ------------------------------ model --------------------------------------

def init_params(key, in_channels=3, n_channel=32, num_classes=10):
    k1, k2, k3 = jax.random.split(key, 3)
    # PyTorch-convention shapes: Conv2d (Cout, Cin, KH, KW), Linear (out, in).
    return {
        "conv1_w": 0.1 * jax.random.normal(k1, (n_channel, in_channels, 3, 3), jnp.float32),
        "conv1_b": jnp.zeros((n_channel,), jnp.float32),
        "conv2_w": 0.05 * jax.random.normal(k2, (n_channel, n_channel, 3, 3), jnp.float32),
        "conv2_b": jnp.zeros((n_channel,), jnp.float32),
        "fc_w": 0.1 * jax.random.normal(k3, (num_classes, n_channel), jnp.float32),
        "fc_b": jnp.zeros((num_classes,), jnp.float32),
    }


def prepare_params(params):
    """One-time (hoisted) layout conversion PyTorch -> kernel-ready."""
    def conv_w(w):      # (Cout, Cin, 3, 3) -> (9, Cin, Cout), (dh, dw) major
        cout, cin = w.shape[0], w.shape[1]
        return jnp.transpose(w, (2, 3, 1, 0)).reshape(9, cin, cout).astype(jnp.float32)
    return {
        "w1": conv_w(params["conv1_w"]),
        "b1": params["conv1_b"][None, :].astype(jnp.float32),
        "w2": conv_w(params["conv2_w"]),
        "b2": params["conv2_b"][None, :].astype(jnp.float32),
        "wc": params["fc_w"].T.astype(jnp.float32),        # (C, num_classes)
        "bc": params["fc_b"][None, :].astype(jnp.float32),
    }


def cifar_forward(x_nchw, prep):
    # NCHW (PyTorch) -> NHWC (TPU-friendly); pad + bf16 cast fuse into one copy.
    x = jnp.transpose(x_nchw, (0, 2, 3, 1)).astype(jnp.float32)
    N, H, W, Cin = x.shape
    assert H % 2 == 0 and W % 2 == 0, "kernel assumes even H and W"
    xp = jnp.pad(x, ((0, 0), (1, 1), (1, 1), (0, 0))).astype(jnp.bfloat16)
    return cifar_fused(xp, prep["w1"], prep["b1"], prep["w2"], prep["b2"],
                       prep["wc"], prep["bc"])


# --------------------------- pure-JAX reference ----------------------------

def _ref_forward(x_nchw, params):
    x = jnp.transpose(x_nchw, (0, 2, 3, 1)).astype(jnp.float32)

    def conv3x3_relu(x, w, b):
        n, h, wd, _ = x.shape
        xp = jnp.pad(x, ((0, 0), (1, 1), (1, 1), (0, 0)))
        out = jnp.zeros((n, h, wd, w.shape[0]), jnp.float32)
        for dh in range(3):
            for dw in range(3):
                out = out + jnp.einsum(
                    "nhwc,oc->nhwo", xp[:, dh:dh + h, dw:dw + wd, :],
                    w[:, :, dh, dw], precision=jax.lax.Precision.HIGHEST)
        return jax.nn.relu(out + b)

    y = conv3x3_relu(x, params["conv1_w"], params["conv1_b"])
    n, h, wd, c = y.shape
    y = y.reshape(n, h // 2, 2, wd // 2, 2, c).max(axis=(2, 4))
    y = conv3x3_relu(y, params["conv2_w"], params["conv2_b"])
    feats = y.mean(axis=(1, 2))
    return jnp.dot(feats, params["fc_w"].T,
                   precision=jax.lax.Precision.HIGHEST) + params["fc_b"]


if __name__ == "__main__":
    key = jax.random.PRNGKey(0)
    kx, kp = jax.random.split(key)
    x = jax.random.normal(kx, (2, 3, 16, 16), jnp.float32)     # NCHW, CIFAR-like
    params = init_params(kp, in_channels=3, n_channel=32, num_classes=10)
    prep = prepare_params(params)

    out = jax.jit(cifar_forward)(x, prep)
    out = jax.block_until_ready(out)
    assert out.shape == (2, 10) and out.dtype == jnp.float32

    ref = jax.block_until_ready(_ref_forward(x, params))
    np.testing.assert_allclose(np.asarray(out), np.asarray(ref),
                               rtol=5e-2, atol=5e-2)
    print("KERNEL_OK")
</pallas_src>

<mosaic_0001>
module attributes {stable_mosaic.version = 11 : i64} {
  func.func @_cifar_fused_kernel(%arg0: i32, %arg1: memref<1x18x18x3xbf16, #tpu.memory_space<vmem>>, %arg2: memref<9x3x32xf32, #tpu.memory_space<vmem>>, %arg3: memref<1x32xf32, #tpu.memory_space<vmem>>, %arg4: memref<9x32x32xf32, #tpu.memory_space<vmem>>, %arg5: memref<1x32xf32, #tpu.memory_space<vmem>>, %arg6: memref<32x10xf32, #tpu.memory_space<vmem>>, %arg7: memref<1x10xf32, #tpu.memory_space<vmem>>, %arg8: memref<1x1x10xf32, #tpu.memory_space<vmem>>, %arg9: memref<8x16x32xf32, #tpu.memory_space<vmem>>, %arg10: memref<1x10x10x32xf32, #tpu.memory_space<vmem>>) attributes {dimension_semantics = [#tpu.dimension_semantics<parallel>], iteration_bounds = array<i64: 2>, scalar_prefetch = 0 : i64, scratch_operands = 2 : i64, tpu.core_type = #tpu.core_type<tc>, window_params = [{transform_indices = @transform_0, window_bounds = array<i64: 1, 18, 18, 3>}, {pipeline_mode = #tpu.pipeline_mode<synchronous>, transform_indices = @transform_1, window_bounds = array<i64: 9, 3, 32>}, {pipeline_mode = #tpu.pipeline_mode<synchronous>, transform_indices = @transform_2, window_bounds = array<i64: 1, 32>}, {pipeline_mode = #tpu.pipeline_mode<synchronous>, transform_indices = @transform_3, window_bounds = array<i64: 9, 32, 32>}, {pipeline_mode = #tpu.pipeline_mode<synchronous>, transform_indices = @transform_4, window_bounds = array<i64: 1, 32>}, {pipeline_mode = #tpu.pipeline_mode<synchronous>, transform_indices = @transform_5, window_bounds = array<i64: 32, 10>}, {pipeline_mode = #tpu.pipeline_mode<synchronous>, transform_indices = @transform_6, window_bounds = array<i64: 1, 10>}, {transform_indices = @transform_7, window_bounds = array<i64: 1, 1, 10>}]} {
    %c0 = arith.constant 0 : index
    %c0_0 = arith.constant 0 : index
    %c0_1 = arith.constant 0 : index
    %c0_2 = arith.constant 0 : index
    %0 = vector.load %arg1[%c0, %c0_0, %c0_1, %c0_2] : memref<1x18x18x3xbf16, #tpu.memory_space<vmem>>, vector<1x18x18x3xbf16>
    %1 = arith.extf %0 : vector<1x18x18x3xbf16> to vector<1x18x18x3xf32>
    %cst = arith.constant 0.000000e+00 : f32
    %2 = vector.broadcast %cst : f32 to vector<256x32xf32>
    %3 = vector.extract_strided_slice %1 {offsets = [0, 0, 0, 0], sizes = [1, 16, 16, 3], strides = [1, 1, 1, 1]} : vector<1x18x18x3xf32> to vector<1x16x16x3xf32>
    %4 = vector.shape_cast %3 : vector<1x16x16x3xf32> to vector<256x3xf32>
    %c0_3 = arith.constant 0 : index
    %c0_4 = arith.constant 0 : index
    %c0_5 = arith.constant 0 : index
    %5 = vector.load %arg2[%c0_3, %c0_4, %c0_5] : memref<9x3x32xf32, #tpu.memory_space<vmem>>, vector<1x3x32xf32>
    %6 = vector.shape_cast %5 : vector<1x3x32xf32> to vector<3x32xf32>
    %cst_6 = arith.constant dense<0.000000e+00> : vector<256x32xf32>
    %7 = tpu.matmul %4, %6, %cst_6 {dimension_numbers = #tpu.dot_dimension_numbers<[1], [0], [0], [1], [0, 0, 1, 1], [], []>} : vector<256x3xf32>, vector<3x32xf32>, vector<256x32xf32> -> vector<256x32xf32>
    %8 = arith.addf %2, %7 : vector<256x32xf32>
    %9 = vector.extract_strided_slice %1 {offsets = [0, 0, 1, 0], sizes = [1, 16, 16, 3], strides = [1, 1, 1, 1]} : vector<1x18x18x3xf32> to vector<1x16x16x3xf32>
    %10 = vector.shape_cast %9 : vector<1x16x16x3xf32> to vector<256x3xf32>
    %c1 = arith.constant 1 : index
    %c0_7 = arith.constant 0 : index
    %c0_8 = arith.constant 0 : index
    %11 = vector.load %arg2[%c1, %c0_7, %c0_8] : memref<9x3x32xf32, #tpu.memory_space<vmem>>, vector<1x3x32xf32>
    %12 = vector.shape_cast %11 : vector<1x3x32xf32> to vector<3x32xf32>
    %cst_9 = arith.constant dense<0.000000e+00> : vector<256x32xf32>
    %13 = tpu.matmul %10, %12, %cst_9 {dimension_numbers = #tpu.dot_dimension_numbers<[1], [0], [0], [1], [0, 0, 1, 1], [], []>} : vector<256x3xf32>, vector<3x32xf32>, vector<256x32xf32> -> vector<256x32xf32>
    %14 = arith.addf %8, %13 : vector<256x32xf32>
    %15 = vector.extract_strided_slice %1 {offsets = [0, 0, 2, 0], sizes = [1, 16, 16, 3], strides = [1, 1, 1, 1]} : vector<1x18x18x3xf32> to vector<1x16x16x3xf32>
    %16 = vector.shape_cast %15 : vector<1x16x16x3xf32> to vector<256x3xf32>
    %c2 = arith.constant 2 : index
    %c0_10 = arith.constant 0 : index
    %c0_11 = arith.constant 0 : index
    %17 = vector.load %arg2[%c2, %c0_10, %c0_11] : memref<9x3x32xf32, #tpu.memory_space<vmem>>, vector<1x3x32xf32>
    %18 = vector.shape_cast %17 : vector<1x3x32xf32> to vector<3x32xf32>
    %cst_12 = arith.constant dense<0.000000e+00> : vector<256x32xf32>
    %19 = tpu.matmul %16, %18, %cst_12 {dimension_numbers = #tpu.dot_dimension_numbers<[1], [0], [0], [1], [0, 0, 1, 1], [], []>} : vector<256x3xf32>, vector<3x32xf32>, vector<256x32xf32> -> vector<256x32xf32>
    %20 = arith.addf %14, %19 : vector<256x32xf32>
    %21 = vector.extract_strided_slice %1 {offsets = [0, 1, 0, 0], sizes = [1, 16, 16, 3], strides = [1, 1, 1, 1]} : vector<1x18x18x3xf32> to vector<1x16x16x3xf32>
    %22 = vector.shape_cast %21 : vector<1x16x16x3xf32> to vector<256x3xf32>
    %c3 = arith.constant 3 : index
    %c0_13 = arith.constant 0 : index
    %c0_14 = arith.constant 0 : index
    %23 = vector.load %arg2[%c3, %c0_13, %c0_14] : memref<9x3x32xf32, #tpu.memory_space<vmem>>, vector<1x3x32xf32>
    %24 = vector.shape_cast %23 : vector<1x3x32xf32> to vector<3x32xf32>
    %cst_15 = arith.constant dense<0.000000e+00> : vector<256x32xf32>
    %25 = tpu.matmul %22, %24, %cst_15 {dimension_numbers = #tpu.dot_dimension_numbers<[1], [0], [0], [1], [0, 0, 1, 1], [], []>} : vector<256x3xf32>, vector<3x32xf32>, vector<256x32xf32> -> vector<256x32xf32>
    %26 = arith.addf %20, %25 : vector<256x32xf32>
    %27 = vector.extract_strided_slice %1 {offsets = [0, 1, 1, 0], sizes = [1, 16, 16, 3], strides = [1, 1, 1, 1]} : vector<1x18x18x3xf32> to vector<1x16x16x3xf32>
    %28 = vector.shape_cast %27 : vector<1x16x16x3xf32> to vector<256x3xf32>
    %c4 = arith.constant 4 : index
    %c0_16 = arith.constant 0 : index
    %c0_17 = arith.constant 0 : index
    %29 = vector.load %arg2[%c4, %c0_16, %c0_17] : memref<9x3x32xf32, #tpu.memory_space<vmem>>, vector<1x3x32xf32>
    %30 = vector.shape_cast %29 : vector<1x3x32xf32> to vector<3x32xf32>
    %cst_18 = arith.constant dense<0.000000e+00> : vector<256x32xf32>
    %31 = tpu.matmul %28, %30, %cst_18 {dimension_numbers = #tpu.dot_dimension_numbers<[1], [0], [0], [1], [0, 0, 1, 1], [], []>} : vector<256x3xf32>, vector<3x32xf32>, vector<256x32xf32> -> vector<256x32xf32>
    %32 = arith.addf %26, %31 : vector<256x32xf32>
    %33 = vector.extract_strided_slice %1 {offsets = [0, 1, 2, 0], sizes = [1, 16, 16, 3], strides = [1, 1, 1, 1]} : vector<1x18x18x3xf32> to vector<1x16x16x3xf32>
    %34 = vector.shape_cast %33 : vector<1x16x16x3xf32> to vector<256x3xf32>
    %c5 = arith.constant 5 : index
    %c0_19 = arith.constant 0 : index
    %c0_20 = arith.constant 0 : index
    %35 = vector.load %arg2[%c5, %c0_19, %c0_20] : memref<9x3x32xf32, #tpu.memory_space<vmem>>, vector<1x3x32xf32>
    %36 = vector.shape_cast %35 : vector<1x3x32xf32> to vector<3x32xf32>
    %cst_21 = arith.constant dense<0.000000e+00> : vector<256x32xf32>
    %37 = tpu.matmul %34, %36, %cst_21 {dimension_numbers = #tpu.dot_dimension_numbers<[1], [0], [0], [1], [0, 0, 1, 1], [], []>} : vector<256x3xf32>, vector<3x32xf32>, vector<256x32xf32> -> vector<256x32xf32>
    %38 = arith.addf %32, %37 : vector<256x32xf32>
    %39 = vector.extract_strided_slice %1 {offsets = [0, 2, 0, 0], sizes = [1, 16, 16, 3], strides = [1, 1, 1, 1]} : vector<1x18x18x3xf32> to vector<1x16x16x3xf32>
    %40 = vector.shape_cast %39 : vector<1x16x16x3xf32> to vector<256x3xf32>
    %c6 = arith.constant 6 : index
    %c0_22 = arith.constant 0 : index
    %c0_23 = arith.constant 0 : index
    %41 = vector.load %arg2[%c6, %c0_22, %c0_23] : memref<9x3x32xf32, #tpu.memory_space<vmem>>, vector<1x3x32xf32>
    %42 = vector.shape_cast %41 : vector<1x3x32xf32> to vector<3x32xf32>
    %cst_24 = arith.constant dense<0.000000e+00> : vector<256x32xf32>
    %43 = tpu.matmul %40, %42, %cst_24 {dimension_numbers = #tpu.dot_dimension_numbers<[1], [0], [0], [1], [0, 0, 1, 1], [], []>} : vector<256x3xf32>, vector<3x32xf32>, vector<256x32xf32> -> vector<256x32xf32>
    %44 = arith.addf %38, %43 : vector<256x32xf32>
    %45 = vector.extract_strided_slice %1 {offsets = [0, 2, 1, 0], sizes = [1, 16, 16, 3], strides = [1, 1, 1, 1]} : vector<1x18x18x3xf32> to vector<1x16x16x3xf32>
    %46 = vector.shape_cast %45 : vector<1x16x16x3xf32> to vector<256x3xf32>
    %c7 = arith.constant 7 : index
    %c0_25 = arith.constant 0 : index
    %c0_26 = arith.constant 0 : index
    %47 = vector.load %arg2[%c7, %c0_25, %c0_26] : memref<9x3x32xf32, #tpu.memory_space<vmem>>, vector<1x3x32xf32>
    %48 = vector.shape_cast %47 : vector<1x3x32xf32> to vector<3x32xf32>
    %cst_27 = arith.constant dense<0.000000e+00> : vector<256x32xf32>
    %49 = tpu.matmul %46, %48, %cst_27 {dimension_numbers = #tpu.dot_dimension_numbers<[1], [0], [0], [1], [0, 0, 1, 1], [], []>} : vector<256x3xf32>, vector<3x32xf32>, vector<256x32xf32> -> vector<256x32xf32>
    %50 = arith.addf %44, %49 : vector<256x32xf32>
    %51 = vector.extract_strided_slice %1 {offsets = [0, 2, 2, 0], sizes = [1, 16, 16, 3], strides = [1, 1, 1, 1]} : vector<1x18x18x3xf32> to vector<1x16x16x3xf32>
    %52 = vector.shape_cast %51 : vector<1x16x16x3xf32> to vector<256x3xf32>
    %c8 = arith.constant 8 : index
    %c0_28 = arith.constant 0 : index
    %c0_29 = arith.constant 0 : index
    %53 = vector.load %arg2[%c8, %c0_28, %c0_29] : memref<9x3x32xf32, #tpu.memory_space<vmem>>, vector<1x3x32xf32>
    %54 = vector.shape_cast %53 : vector<1x3x32xf32> to vector<3x32xf32>
    %cst_30 = arith.constant dense<0.000000e+00> : vector<256x32xf32>
    %55 = tpu.matmul %52, %54, %cst_30 {dimension_numbers = #tpu.dot_dimension_numbers<[1], [0], [0], [1], [0, 0, 1, 1], [], []>} : vector<256x3xf32>, vector<3x32xf32>, vector<256x32xf32> -> vector<256x32xf32>
    %56 = arith.addf %50, %55 : vector<256x32xf32>
    %c0_31 = arith.constant 0 : index
    %c0_32 = arith.constant 0 : index
    %57 = vector.load %arg3[%c0_31, %c0_32] : memref<1x32xf32, #tpu.memory_space<vmem>>, vector<1x32xf32>
    %58 = vector.broadcast %57 : vector<1x32xf32> to vector<256x32xf32>
    %59 = arith.addf %56, %58 : vector<256x32xf32>
    %cst_33 = arith.constant 0.000000e+00 : f32
    %60 = vector.broadcast %cst_33 : f32 to vector<256x32xf32>
    %61 = arith.maximumf %59, %60 : vector<256x32xf32>
    %62 = vector.shape_cast %61 : vector<256x32xf32> to vector<8x2x16x32xf32>
    %63 = vector.extract_strided_slice %62 {offsets = [0, 0, 0, 0], sizes = [8, 1, 16, 32], strides = [1, 1, 1, 1]} : vector<8x2x16x32xf32> to vector<8x1x16x32xf32>
    %64 = vector.shape_cast %63 : vector<8x1x16x32xf32> to vector<8x16x32xf32>
    %65 = vector.extract_strided_slice %62 {offsets = [0, 1, 0, 0], sizes = [8, 1, 16, 32], strides = [1, 1, 1, 1]} : vector<8x2x16x32xf32> to vector<8x1x16x32xf32>
    %66 = vector.shape_cast %65 : vector<8x1x16x32xf32> to vector<8x16x32xf32>
    %67 = arith.maximumf %64, %66 : vector<8x16x32xf32>
    %c0_34 = arith.constant 0 : index
    %c0_35 = arith.constant 0 : index
    %c0_36 = arith.constant 0 : index
    %68 = vector.load %arg9[%c0_34, %c0_35, %c0_36] : memref<8x16x32xf32, #tpu.memory_space<vmem>>, vector<8x16x32xf32>
    tpu.vector_store %arg9[%c0_34, %c0_35, %c0_36], %67 {strides = array<i32>} : memref<8x16x32xf32, #tpu.memory_space<vmem>>, vector<8x16x32xf32>,
    %c0_37 = arith.constant 0 : index
    %c0_38 = arith.constant 0 : index
    %c0_39 = arith.constant 0 : index
    %69 = tpu.strided_load %arg9[%c0_37, %c0_38, %c0_39] {strides = array<i32: 1, 2, 1>} : memref<8x16x32xf32, #tpu.memory_space<vmem>>, vector<8x8x32xf32>
    %c0_40 = arith.constant 0 : index
    %c1_41 = arith.constant 1 : index
    %c0_42 = arith.constant 0 : index
    %70 = tpu.strided_load %arg9[%c0_40, %c1_41, %c0_42] {strides = array<i32: 1, 2, 1>} : memref<8x16x32xf32, #tpu.memory_space<vmem>>, vector<8x8x32xf32>
    %71 = arith.maximumf %69, %70 : vector<8x8x32xf32>
    %cst_43 = arith.constant 0.000000e+00 : f32
    %72 = vector.broadcast %cst_43 : f32 to vector<1x10x10x32xf32>
    %c0_44 = arith.constant 0 : index
    %c0_45 = arith.constant 0 : index
    %c0_46 = arith.constant 0 : index
    %c0_47 = arith.constant 0 : index
    %73 = vector.load %arg10[%c0_44, %c0_45, %c0_46, %c0_47] : memref<1x10x10x32xf32, #tpu.memory_space<vmem>>, vector<1x10x10x32xf32>
    tpu.vector_store %arg10[%c0_44, %c0_45, %c0_46, %c0_47], %72 {strides = array<i32>} : memref<1x10x10x32xf32, #tpu.memory_space<vmem>>, vector<1x10x10x32xf32>,
    %74 = vector.shape_cast %71 : vector<8x8x32xf32> to vector<1x8x8x32xf32>
    %c0_48 = arith.constant 0 : index
    %c1_49 = arith.constant 1 : index
    %c1_50 = arith.constant 1 : index
    %c0_51 = arith.constant 0 : index
    %75 = vector.load %arg10[%c0_48, %c1_49, %c1_50, %c0_51] : memref<1x10x10x32xf32, #tpu.memory_space<vmem>>, vector<1x8x8x32xf32>
    tpu.vector_store %arg10[%c0_48, %c1_49, %c1_50, %c0_51], %74 {strides = array<i32>} : memref<1x10x10x32xf32, #tpu.memory_space<vmem>>, vector<1x8x8x32xf32>,
    %c0_52 = arith.constant 0 : index
    %c0_53 = arith.constant 0 : index
    %c0_54 = arith.constant 0 : index
    %c0_55 = arith.constant 0 : index
    %76 = vector.load %arg10[%c0_52, %c0_53, %c0_54, %c0_55] : memref<1x10x10x32xf32, #tpu.memory_space<vmem>>, vector<1x10x10x32xf32>
    %cst_56 = arith.constant 0.000000e+00 : f32
    %77 = vector.broadcast %cst_56 : f32 to vector<64x32xf32>
    %78 = vector.extract_strided_slice %76 {offsets = [0, 0, 0, 0], sizes = [1, 8, 8, 32], strides = [1, 1, 1, 1]} : vector<1x10x10x32xf32> to vector<1x8x8x32xf32>
    %79 = vector.shape_cast %78 : vector<1x8x8x32xf32> to vector<64x32xf32>
    %c0_57 = arith.constant 0 : index
    %c0_58 = arith.constant 0 : index
    %c0_59 = arith.constant 0 : index
    %80 = vector.load %arg4[%c0_57, %c0_58, %c0_59] : memref<9x32x32xf32, #tpu.memory_space<vmem>>, vector<1x32x32xf32>
    %81 = vector.shape_cast %80 : vector<1x32x32xf32> to vector<32x32xf32>
    %cst_60 = arith.constant dense<0.000000e+00> : vector<64x32xf32>
    %82 = tpu.matmul %79, %81, %cst_60 {dimension_numbers = #tpu.dot_dimension_numbers<[1], [0], [0], [1], [0, 0, 1, 1], [], []>} : vector<64x32xf32>, vector<32x32xf32>, vector<64x32xf32> -> vector<64x32xf32>
    %83 = arith.addf %77, %82 : vector<64x32xf32>
    %84 = vector.extract_strided_slice %76 {offsets = [0, 0, 1, 0], sizes = [1, 8, 8, 32], strides = [1, 1, 1, 1]} : vector<1x10x10x32xf32> to vector<1x8x8x32xf32>
    %85 = vector.shape_cast %84 : vector<1x8x8x32xf32> to vector<64x32xf32>
    %c1_61 = arith.constant 1 : index
    %c0_62 = arith.constant 0 : index
    %c0_63 = arith.constant 0 : index
    %86 = vector.load %arg4[%c1_61, %c0_62, %c0_63] : memref<9x32x32xf32, #tpu.memory_space<vmem>>, vector<1x32x32xf32>
    %87 = vector.shape_cast %86 : vector<1x32x32xf32> to vector<32x32xf32>
    %cst_64 = arith.constant dense<0.000000e+00> : vector<64x32xf32>
    %88 = tpu.matmul %85, %87, %cst_64 {dimension_numbers = #tpu.dot_dimension_numbers<[1], [0], [0], [1], [0, 0, 1, 1], [], []>} : vector<64x32xf32>, vector<32x32xf32>, vector<64x32xf32> -> vector<64x32xf32>
    %89 = arith.addf %83, %88 : vector<64x32xf32>
    %90 = vector.extract_strided_slice %76 {offsets = [0, 0, 2, 0], sizes = [1, 8, 8, 32], strides = [1, 1, 1, 1]} : vector<1x10x10x32xf32> to vector<1x8x8x32xf32>
    %91 = vector.shape_cast %90 : vector<1x8x8x32xf32> to vector<64x32xf32>
    %c2_65 = arith.constant 2 : index
    %c0_66 = arith.constant 0 : index
    %c0_67 = arith.constant 0 : index
    %92 = vector.load %arg4[%c2_65, %c0_66, %c0_67] : memref<9x32x32xf32, #tpu.memory_space<vmem>>, vector<1x32x32xf32>
    %93 = vector.shape_cast %92 : vector<1x32x32xf32> to vector<32x32xf32>
    %cst_68 = arith.constant dense<0.000000e+00> : vector<64x32xf32>
    %94 = tpu.matmul %91, %93, %cst_68 {dimension_numbers = #tpu.dot_dimension_numbers<[1], [0], [0], [1], [0, 0, 1, 1], [], []>} : vector<64x32xf32>, vector<32x32xf32>, vector<64x32xf32> -> vector<64x32xf32>
    %95 = arith.addf %89, %94 : vector<64x32xf32>
    %96 = vector.extract_strided_slice %76 {offsets = [0, 1, 0, 0], sizes = [1, 8, 8, 32], strides = [1, 1, 1, 1]} : vector<1x10x10x32xf32> to vector<1x8x8x32xf32>
    %97 = vector.shape_cast %96 : vector<1x8x8x32xf32> to vector<64x32xf32>
    %c3_69 = arith.constant 3 : index
    %c0_70 = arith.constant 0 : index
    %c0_71 = arith.constant 0 : index
    %98 = vector.load %arg4[%c3_69, %c0_70, %c0_71] : memref<9x32x32xf32, #tpu.memory_space<vmem>>, vector<1x32x32xf32>
    %99 = vector.shape_cast %98 : vector<1x32x32xf32> to vector<32x32xf32>
    %cst_72 = arith.constant dense<0.000000e+00> : vector<64x32xf32>
    %100 = tpu.matmul %97, %99, %cst_72 {dimension_numbers = #tpu.dot_dimension_numbers<[1], [0], [0], [1], [0, 0, 1, 1], [], []>} : vector<64x32xf32>, vector<32x32xf32>, vector<64x32xf32> -> vector<64x32xf32>
    %101 = arith.addf %95, %100 : vector<64x32xf32>
    %102 = vector.extract_strided_slice %76 {offsets = [0, 1, 1, 0], sizes = [1, 8, 8, 32], strides = [1, 1, 1, 1]} : vector<1x10x10x32xf32> to vector<1x8x8x32xf32>
    %103 = vector.shape_cast %102 : vector<1x8x8x32xf32> to vector<64x32xf32>
    %c4_73 = arith.constant 4 : index
    %c0_74 = arith.constant 0 : index
    %c0_75 = arith.constant 0 : index
    %104 = vector.load %arg4[%c4_73, %c0_74, %c0_75] : memref<9x32x32xf32, #tpu.memory_space<vmem>>, vector<1x32x32xf32>
    %105 = vector.shape_cast %104 : vector<1x32x32xf32> to vector<32x32xf32>
    %cst_76 = arith.constant dense<0.000000e+00> : vector<64x32xf32>
    %106 = tpu.matmul %103, %105, %cst_76 {dimension_numbers = #tpu.dot_dimension_numbers<[1], [0], [0], [1], [0, 0, 1, 1], [], []>} : vector<64x32xf32>, vector<32x32xf32>, vector<64x32xf32> -> vector<64x32xf32>
    %107 = arith.addf %101, %106 : vector<64x32xf32>
    %108 = vector.extract_strided_slice %76 {offsets = [0, 1, 2, 0], sizes = [1, 8, 8, 32], strides = [1, 1, 1, 1]} : vector<1x10x10x32xf32> to vector<1x8x8x32xf32>
    %109 = vector.shape_cast %108 : vector<1x8x8x32xf32> to vector<64x32xf32>
    %c5_77 = arith.constant 5 : index
    %c0_78 = arith.constant 0 : index
    %c0_79 = arith.constant 0 : index
    %110 = vector.load %arg4[%c5_77, %c0_78, %c0_79] : memref<9x32x32xf32, #tpu.memory_space<vmem>>, vector<1x32x32xf32>
    %111 = vector.shape_cast %110 : vector<1x32x32xf32> to vector<32x32xf32>
    %cst_80 = arith.constant dense<0.000000e+00> : vector<64x32xf32>
    %112 = tpu.matmul %109, %111, %cst_80 {dimension_numbers = #tpu.dot_dimension_numbers<[1], [0], [0], [1], [0, 0, 1, 1], [], []>} : vector<64x32xf32>, vector<32x32xf32>, vector<64x32xf32> -> vector<64x32xf32>
    %113 = arith.addf %107, %112 : vector<64x32xf32>
    %114 = vector.extract_strided_slice %76 {offsets = [0, 2, 0, 0], sizes = [1, 8, 8, 32], strides = [1, 1, 1, 1]} : vector<1x10x10x32xf32> to vector<1x8x8x32xf32>
    %115 = vector.shape_cast %114 : vector<1x8x8x32xf32> to vector<64x32xf32>
    %c6_81 = arith.constant 6 : index
    %c0_82 = arith.constant 0 : index
    %c0_83 = arith.constant 0 : index
    %116 = vector.load %arg4[%c6_81, %c0_82, %c0_83] : memref<9x32x32xf32, #tpu.memory_space<vmem>>, vector<1x32x32xf32>
    %117 = vector.shape_cast %116 : vector<1x32x32xf32> to vector<32x32xf32>
    %cst_84 = arith.constant dense<0.000000e+00> : vector<64x32xf32>
    %118 = tpu.matmul %115, %117, %cst_84 {dimension_numbers = #tpu.dot_dimension_numbers<[1], [0], [0], [1], [0, 0, 1, 1], [], []>} : vector<64x32xf32>, vector<32x32xf32>, vector<64x32xf32> -> vector<64x32xf32>
    %119 = arith.addf %113, %118 : vector<64x32xf32>
    %120 = vector.extract_strided_slice %76 {offsets = [0, 2, 1, 0], sizes = [1, 8, 8, 32], strides = [1, 1, 1, 1]} : vector<1x10x10x32xf32> to vector<1x8x8x32xf32>
    %121 = vector.shape_cast %120 : vector<1x8x8x32xf32> to vector<64x32xf32>
    %c7_85 = arith.constant 7 : index
    %c0_86 = arith.constant 0 : index
    %c0_87 = arith.constant 0 : index
    %122 = vector.load %arg4[%c7_85, %c0_86, %c0_87] : memref<9x32x32xf32, #tpu.memory_space<vmem>>, vector<1x32x32xf32>
    %123 = vector.shape_cast %122 : vector<1x32x32xf32> to vector<32x32xf32>
    %cst_88 = arith.constant dense<0.000000e+00> : vector<64x32xf32>
    %124 = tpu.matmul %121, %123, %cst_88 {dimension_numbers = #tpu.dot_dimension_numbers<[1], [0], [0], [1], [0, 0, 1, 1], [], []>} : vector<64x32xf32>, vector<32x32xf32>, vector<64x32xf32> -> vector<64x32xf32>
    %125 = arith.addf %119, %124 : vector<64x32xf32>
    %126 = vector.extract_strided_slice %76 {offsets = [0, 2, 2, 0], sizes = [1, 8, 8, 32], strides = [1, 1, 1, 1]} : vector<1x10x10x32xf32> to vector<1x8x8x32xf32>
    %127 = vector.shape_cast %126 : vector<1x8x8x32xf32> to vector<64x32xf32>
    %c8_89 = arith.constant 8 : index
    %c0_90 = arith.constant 0 : index
    %c0_91 = arith.constant 0 : index
    %128 = vector.load %arg4[%c8_89, %c0_90, %c0_91] : memref<9x32x32xf32, #tpu.memory_space<vmem>>, vector<1x32x32xf32>
    %129 = vector.shape_cast %128 : vector<1x32x32xf32> to vector<32x32xf32>
    %cst_92 = arith.constant dense<0.000000e+00> : vector<64x32xf32>
    %130 = tpu.matmul %127, %129, %cst_92 {dimension_numbers = #tpu.dot_dimension_numbers<[1], [0], [0], [1], [0, 0, 1, 1], [], []>} : vector<64x32xf32>, vector<32x32xf32>, vector<64x32xf32> -> vector<64x32xf32>
    %131 = arith.addf %125, %130 : vector<64x32xf32>
    %c0_93 = arith.constant 0 : index
    %c0_94 = arith.constant 0 : index
    %132 = vector.load %arg5[%c0_93, %c0_94] : memref<1x32xf32, #tpu.memory_space<vmem>>, vector<1x32xf32>
    %133 = vector.broadcast %132 : vector<1x32xf32> to vector<64x32xf32>
    %134 = arith.addf %131, %133 : vector<64x32xf32>
    %cst_95 = arith.constant 0.000000e+00 : f32
    %135 = vector.broadcast %cst_95 : f32 to vector<64x32xf32>
    %136 = arith.maximumf %134, %135 : vector<64x32xf32>
    %137 = vector.shape_cast %136 : vector<64x32xf32> to vector<1x64x32xf32>
    %cst_96 = arith.constant dense<0.000000e+00> : vector<1x32xf32>
    %138 = vector.multi_reduction <add>, %137, %cst_96 [1] : vector<1x64x32xf32> to vector<1x32xf32>
    %cst_97 = arith.constant 6.400000e+01 : f32
    %139 = vector.broadcast %cst_97 : f32 to vector<1x32xf32>
    %140 = arith.divf %138, %139 : vector<1x32xf32>
    %c0_98 = arith.constant 0 : index
    %c0_99 = arith.constant 0 : index
    %141 = vector.load %arg6[%c0_98, %c0_99] : memref<32x10xf32, #tpu.memory_space<vmem>>, vector<32x10xf32>
    %cst_100 = arith.constant dense<0.000000e+00> : vector<1x10xf32>
    %142 = tpu.matmul %140, %141, %cst_100 {dimension_numbers = #tpu.dot_dimension_numbers<[1], [0], [0], [1], [0, 0, 1, 1], [], []>} : vector<1x32xf32>, vector<32x10xf32>, vector<1x10xf32> -> vector<1x10xf32>
    %c0_101 = arith.constant 0 : index
    %c0_102 = arith.constant 0 : index
    %143 = vector.load %arg7[%c0_101, %c0_102] : memref<1x10xf32, #tpu.memory_space<vmem>>, vector<1x10xf32>
    %144 = arith.addf %142, %143 : vector<1x10xf32>
    %145 = vector.shape_cast %144 : vector<1x10xf32> to vector<1x1x10xf32>
    %c0_103 = arith.constant 0 : index
    %c0_104 = arith.constant 0 : index
    %c0_105 = arith.constant 0 : index
    %146 = vector.load %arg8[%c0_103, %c0_104, %c0_105] : memref<1x1x10xf32, #tpu.memory_space<vmem>>, vector<1x1x10xf32>
    tpu.vector_store %arg8[%c0_103, %c0_104, %c0_105], %145 {strides = array<i32>} : memref<1x1x10xf32, #tpu.memory_space<vmem>>, vector<1x1x10xf32>,
    return
  }
  func.func @transform_0(%arg0: i32) -> (i32, i32, i32, i32) {
    %c0_i32 = arith.constant 0 : i32
    %c0_i32_0 = arith.constant 0 : i32
    %c0_i32_1 = arith.constant 0 : i32
    %c0_i32_2 = arith.constant 0 : i32
    return %arg0, %c0_i32, %c0_i32_0, %c0_i32_1 : i32, i32, i32, i32
  }
  func.func @transform_1(%arg0: i32) -> (i32, i32, i32) {
    %c0_i32 = arith.constant 0 : i32
    %c0_i32_0 = arith.constant 0 : i32
    %c0_i32_1 = arith.constant 0 : i32
    %c0_i32_2 = arith.constant 0 : i32
    return %c0_i32, %c0_i32_0, %c0_i32_1 : i32, i32, i32
  }
  func.func @transform_2(%arg0: i32) -> (i32, i32) {
    %c0_i32 = arith.constant 0 : i32
    %c0_i32_0 = arith.constant 0 : i32
    %c0_i32_1 = arith.constant 0 : i32
    return %c0_i32, %c0_i32_0 : i32, i32
  }
  func.func @transform_3(%arg0: i32) -> (i32, i32, i32) {
    %c0_i32 = arith.constant 0 : i32
    %c0_i32_0 = arith.constant 0 : i32
    %c0_i32_1 = arith.constant 0 : i32
    %c0_i32_2 = arith.constant 0 : i32
    return %c0_i32, %c0_i32_0, %c0_i32_1 : i32, i32, i32
  }
  func.func @transform_4(%arg0: i32) -> (i32, i32) {
    %c0_i32 = arith.constant 0 : i32
    %c0_i32_0 = arith.constant 0 : i32
    %c0_i32_1 = arith.constant 0 : i32
    return %c0_i32, %c0_i32_0 : i32, i32
  }
  func.func @transform_5(%arg0: i32) -> (i32, i32) {
    %c0_i32 = arith.constant 0 : i32
    %c0_i32_0 = arith.constant 0 : i32
    %c0_i32_1 = arith.constant 0 : i32
    return %c0_i32, %c0_i32_0 : i32, i32
  }
  func.func @transform_6(%arg0: i32) -> (i32, i32) {
    %c0_i32 = arith.constant 0 : i32
    %c0_i32_0 = arith.constant 0 : i32
    %c0_i32_1 = arith.constant 0 : i32
    return %c0_i32, %c0_i32_0 : i32, i32
  }
  func.func @transform_7(%arg0: i32) -> (i32, i32, i32) {
    %c0_i32 = arith.constant 0 : i32
    %c0_i32_0 = arith.constant 0 : i32
    %c0_i32_1 = arith.constant 0 : i32
    return %arg0, %c0_i32, %c0_i32_0 : i32, i32, i32
  }
}

</mosaic_0001>

<llo_original>
// kernel: cifar_forward.1
$region0: #{cifar_forward.1}
  #allocation0 [shape = 'u32[]', space=smem, size = 0x4, offset = 0x4, fixed_abs, tag = 'smem constant byte address 0x4 - core index']
  #allocation1 [shape = 'u32[72,128]{1,0:T(1,128)}', space=vmem, size = 0x9000, scoped, tag = 'internal scratch']
  #allocation2 [shape = 'f32[8,16,32]{2,1,0:T(8,128)}', space=vmem, size = 0x10000, scoped, tag = 'scratch operand']
  #allocation3 [shape = 'f32[1,10,10,32]{3,2,1,0:T(8,128)}', space=vmem, size = 0x14000, scoped, tag = 'scratch operand']
  %s0 = inlined_call_operand.vmem [shape: bf16[2,18,18,3], index: 0, kind: input, shape index: {}]
  %s1 = inlined_call_operand.vmem [shape: f32[9,3,32], index: 1, kind: input, shape index: {}]
  %s2 = inlined_call_operand.vmem [shape: f32[1,32], index: 2, kind: input, shape index: {}]
  %s3 = inlined_call_operand.vmem [shape: f32[9,32,32], index: 3, kind: input, shape index: {}]
  %s4 = inlined_call_operand.vmem [shape: f32[1,32], index: 4, kind: input, shape index: {}]
  %s5 = inlined_call_operand.vmem [shape: f32[32,10], index: 5, kind: input, shape index: {}]
  %s6 = inlined_call_operand.vmem [shape: f32[1,10], index: 6, kind: input, shape index: {}]
  %s7 = inlined_call_operand.hbm [shape: f32[2,1,10], index: 7, kind: output, shape index: {}]
  %s8 = sld [smem:[#allocation0]]
  $region61: #{cifar_forward.1} parent=0
    _
  %s10 = ssub.s32 1, %s8
  %s11 = scalar_select 0, %s10, %s8
  $region1: #{cifar_forward.1} parent=0
    #allocation4 [shape = 'u8[1024]{0}', space=vmem, size = 0x400, scoped, tag = 'output window, operand 0']
    #allocation5 [shape = 's32[2]{0}', space=sflag, size = 0x8, scoped, tag = 'scoped memory for cifar_forward.1']
    %12 = vsyncpa [#allocation5], 0
    %s13 = scalar_lea.sflag [#allocation5], 1
    %14 = vsyncpa %s13, 0
    loop: start=0, step=1, limit=4
    $region2: #{cifar_forward.1} parent=1 // loop_pre_header
      _
    $region3: #{cifar_forward.1} parent=1 // loop_header
      %s16 = sphi 0, %s20
      %p17 = scmp.ge.s32.totalorder %s16, 4
      %s26 = sphi 0, %s28
      %s29 = sphi 0, %s26
      %s30 = sphi 0, %s29
      %s46 = sphi 0, %s30
      %s50 = sphi 0, %s50
      %s52 = sphi 0, %s50
      %s53 = sphi 0, %s52
      %s67 = sphi 0, %s53
      %s71 = sphi 0, %s71
      %s73 = sphi 0, %s71
      %s74 = sphi 0, %s73
      %s88 = sphi 0, %s74
      %s92 = sphi 0, %s92
      %s94 = sphi 0, %s92
      %s95 = sphi 0, %s94
      %s109 = sphi 0, %s95
      %s113 = sphi 0, %s113
      %s115 = sphi 0, %s113
      %s116 = sphi 0, %s115
      %s130 = sphi 0, %s116
      %s134 = sphi 0, %s134
      %s136 = sphi 0, %s134
      %s137 = sphi 0, %s136
      %s151 = sphi 0, %s137
      %s155 = sphi 0, %s155
      %s157 = sphi 0, %s155
      %s158 = sphi 0, %s157
      %s172 = sphi 0, %s158
      %s178 = sphi 0, %s180
      %s181 = sphi 0, %s178
      %s182 = sphi 0, %s181
      %s198 = sphi 0, %s182
    $region4: #{cifar_forward.1} parent=1 // loop_header_branch
      %19 = sbr.rel (%p17) target = $region8
    $region5: #{cifar_forward.1} parent=1 // loop_body
      %s21 = ssub.s32 %s16, 1
      %s22 = ssub.s32 %s16, 2
      %s23 = sadd.s32 %s16, 1
      %s24 = ssub.s32 %s16, %s23
      %p25 = scmp.eq.s32.totalorder %s24, 0
      %s27 = sadd.s32 %s26, 1
      %s28 = scalar_select %p25, %s26, %s27
      %p31 = pneg %p25
      %p32 = scmp.eq.s32.totalorder %s16, 1
      %p33 = por %p31, %p32
      %p34 = scmp.ne.s32.totalorder %s26, %s29
      %p35 = scmp.eq.s32.totalorder %s16, 0
      %p36 = por %p34, %p35
      %p37 = scmp.ne.s32.totalorder %s26, %s29
      %p38 = scmp.eq.s32.totalorder %s21, 1
      %p39 = por %p37, %p38
      %p40 = scmp.ne.s32.totalorder %s29, %s30
      %p41 = scmp.eq.s32.totalorder %s21, 0
      %p42 = por %p40, %p41
      %p43 = scmp.ne.s32.totalorder %s29, %s30
      %p44 = scmp.eq.s32.totalorder %s22, 1
      %p45 = por %p43, %p44
      %p47 = scmp.ne.s32.totalorder %s30, %s46
      %p48 = scmp.eq.s32.totalorder %s22, 0
      %p49 = por %p47, %p48
      %s51 = sadd.s32 %s50, 1
      %p54 = scmp.eq.s32.totalorder %s16, 1
      %p55 = scmp.ne.s32.totalorder %s50, %s52
      %p56 = scmp.eq.s32.totalorder %s16, 0
      %p57 = por %p55, %p56
      %p58 = scmp.ne.s32.totalorder %s50, %s52
      %p59 = scmp.eq.s32.totalorder %s21, 1
      %p60 = por %p58, %p59
      %p61 = scmp.ne.s32.totalorder %s52, %s53
      %p62 = scmp.eq.s32.totalorder %s21, 0
      %p63 = por %p61, %p62
      %p64 = scmp.ne.s32.totalorder %s52, %s53
      %p65 = scmp.eq.s32.totalorder %s22, 1
      %p66 = por %p64, %p65
      %p68 = scmp.ne.s32.totalorder %s53, %s67
      %p69 = scmp.eq.s32.totalorder %s22, 0
      %p70 = por %p68, %p69
      %s72 = sadd.s32 %s71, 1
      %p75 = scmp.eq.s32.totalorder %s16, 1
      %p76 = scmp.ne.s32.totalorder %s71, %s73
      %p77 = scmp.eq.s32.totalorder %s16, 0
      %p78 = por %p76, %p77
      %p79 = scmp.ne.s32.totalorder %s71, %s73
      %p80 = scmp.eq.s32.totalorder %s21, 1
      %p81 = por %p79, %p80
      %p82 = scmp.ne.s32.totalorder %s73, %s74
      %p83 = scmp.eq.s32.totalorder %s21, 0
      %p84 = por %p82, %p83
      %p85 = scmp.ne.s32.totalorder %s73, %s74
      %p86 = scmp.eq.s32.totalorder %s22, 1
      %p87 = por %p85, %p86
      %p89 = scmp.ne.s32.totalorder %s74, %s88
      %p90 = scmp.eq.s32.totalorder %s22, 0
      %p91 = por %p89, %p90
      %s93 = sadd.s32 %s92, 1
      %p96 = scmp.eq.s32.totalorder %s16, 1
      %p97 = scmp.ne.s32.totalorder %s92, %s94
      %p98 = scmp.eq.s32.totalorder %s16, 0
      %p99 = por %p97, %p98
      %p100 = scmp.ne.s32.totalorder %s92, %s94
      %p101 = scmp.eq.s32.totalorder %s21, 1
      %p102 = por %p100, %p101
      %p103 = scmp.ne.s32.totalorder %s94, %s95
      %p104 = scmp.eq.s32.totalorder %s21, 0
      %p105 = por %p103, %p104
      %p106 = scmp.ne.s32.totalorder %s94, %s95
      %p107 = scmp.eq.s32.totalorder %s22, 1
      %p108 = por %p106, %p107
      %p110 = scmp.ne.s32.totalorder %s95, %s109
      %p111 = scmp.eq.s32.totalorder %s22, 0
      %p112 = por %p110, %p111
      %s114 = sadd.s32 %s113, 1
      %p117 = scmp.eq.s32.totalorder %s16, 1
      %p118 = scmp.ne.s32.totalorder %s113, %s115
      %p119 = scmp.eq.s32.totalorder %s16, 0
      %p120 = por %p118, %p119
      %p121 = scmp.ne.s32.totalorder %s113, %s115
      %p122 = scmp.eq.s32.totalorder %s21, 1
      %p123 = por %p121, %p122
      %p124 = scmp.ne.s32.totalorder %s115, %s116
      %p125 = scmp.eq.s32.totalorder %s21, 0
      %p126 = por %p124, %p125
      %p127 = scmp.ne.s32.totalorder %s115, %s116
      %p128 = scmp.eq.s32.totalorder %s22, 1
      %p129 = por %p127, %p128
      %p131 = scmp.ne.s32.totalorder %s116, %s130
      %p132 = scmp.eq.s32.totalorder %s22, 0
      %p133 = por %p131, %p132
      %s135 = sadd.s32 %s134, 1
      %p138 = scmp.eq.s32.totalorder %s16, 1
      %p139 = scmp.ne.s32.totalorder %s134, %s136
      %p140 = scmp.eq.s32.totalorder %s16, 0
      %p141 = por %p139, %p140
      %p142 = scmp.ne.s32.totalorder %s134, %s136
      %p143 = scmp.eq.s32.totalorder %s21, 1
      %p144 = por %p142, %p143
      %p145 = scmp.ne.s32.totalorder %s136, %s137
      %p146 = scmp.eq.s32.totalorder %s21, 0
      %p147 = por %p145, %p146
      %p148 = scmp.ne.s32.totalorder %s136, %s137
      %p149 = scmp.eq.s32.totalorder %s22, 1
      %p150 = por %p148, %p149
      %p152 = scmp.ne.s32.totalorder %s137, %s151
      %p153 = scmp.eq.s32.totalorder %s22, 0
      %p154 = por %p152, %p153
      %s156 = sadd.s32 %s155, 1
      %p159 = scmp.eq.s32.totalorder %s16, 1
      %p160 = scmp.ne.s32.totalorder %s155, %s157
      %p161 = scmp.eq.s32.totalorder %s16, 0
      %p162 = por %p160, %p161
      %p163 = scmp.ne.s32.totalorder %s155, %s157
      %p164 = scmp.eq.s32.totalorder %s21, 1
      %p165 = por %p163, %p164
      %p166 = scmp.ne.s32.totalorder %s157, %s158
      %p167 = scmp.eq.s32.totalorder %s21, 0
      %p168 = por %p166, %p167
      %p169 = scmp.ne.s32.totalorder %s157, %s158
      %p170 = scmp.eq.s32.totalorder %s22, 1
      %p171 = por %p169, %p170
      %p173 = scmp.ne.s32.totalorder %s158, %s172
      %p174 = scmp.eq.s32.totalorder %s22, 0
      %p175 = por %p173, %p174
      %s176 = ssub.s32 %s16, %s23
      %p177 = scmp.eq.s32.totalorder %s176, 0
      %s179 = sadd.s32 %s178, 1
      %s180 = scalar_select %p177, %s178, %s179
      %p183 = pneg %p177
      %p184 = scmp.eq.s32.totalorder %s16, 1
      %p185 = por %p183, %p184
      %p186 = scmp.ne.s32.totalorder %s178, %s181
      %p187 = scmp.eq.s32.totalorder %s16, 0
      %p188 = por %p186, %p187
      %p189 = scmp.ne.s32.totalorder %s178, %s181
      %p190 = scmp.eq.s32.totalorder %s21, 1
      %p191 = por %p189, %p190
      %p192 = scmp.ne.s32.totalorder %s181, %s182
      %p193 = scmp.eq.s32.totalorder %s21, 0
      %p194 = por %p192, %p193
      %p195 = scmp.ne.s32.totalorder %s181, %s182
      %p196 = scmp.eq.s32.totalorder %s22, 1
      %p197 = por %p195, %p196
      %p199 = scmp.ne.s32.totalorder %s182, %s198
      %p200 = scmp.eq.s32.totalorder %s22, 0
      %p201 = por %p199, %p200
      %p202 = scmp.le.s32.totalorder 1, %s16
      %p203 = scmp.lt.s32.totalorder %s16, 3
      %p204 = pnand %p202, %p203
      %p205 = pneg %p204
      // Predicated region
      $region9: #{cifar_forward.1} parent=5 // pred_check
        _
      $region10: #{cifar_forward.1} parent=5 // pred_check_branch
        %207 = sbr.rel (%p204) target = $region12
      $region11: #{cifar_forward.1} parent=5 // pred_region
        %s208 = ssub.s32 %s16, 1
        // Predicated region
        $region13: #{cifar_forward.1} parent=11 // pred_check
          %p209 = pneg %p63
        $region14: #{cifar_forward.1} parent=11 // pred_check_branch
          %211 = sbr.rel (%p209) target = $region16
        $region15: #{cifar_forward.1} parent=11 // pred_region
          _
        $region16: #{cifar_forward.1} parent=11 // pred_fallthru
          _
        // Predicated region
        $region17: #{cifar_forward.1} parent=11 // pred_check
          %p212 = pneg %p84
        $region18: #{cifar_forward.1} parent=11 // pred_check_branch
          %214 = sbr.rel (%p212) target = $region20
        $region19: #{cifar_forward.1} parent=11 // pred_region
          _
        $region20: #{cifar_forward.1} parent=11 // pred_fallthru
          _
        // Predicated region
        $region21: #{cifar_forward.1} parent=11 // pred_check
          %p215 = pneg %p105
        $region22: #{cifar_forward.1} parent=11 // pred_check_branch
          %217 = sbr.rel (%p215) target = $region24
        $region23: #{cifar_forward.1} parent=11 // pred_region
          _
        $region24: #{cifar_forward.1} parent=11 // pred_fallthru
          _
        // Predicated region
        $region25: #{cifar_forward.1} parent=11 // pred_check
          %p218 = pneg %p126
        $region26: #{cifar_forward.1} parent=11 // pred_check_branch
          %220 = sbr.rel (%p218) target = $region28
        $region27: #{cifar_forward.1} parent=11 // pred_region
          _
        $region28: #{cifar_forward.1} parent=11 // pred_fallthru
          _
        // Predicated region
        $region29: #{cifar_forward.1} parent=11 // pred_check
          %p221 = pneg %p147
        $region30: #{cifar_forward.1} parent=11 // pred_check_branch
          %223 = sbr.rel (%p221) target = $region32
        $region31: #{cifar_forward.1} parent=11 // pred_region
          _
        $region32: #{cifar_forward.1} parent=11 // pred_fallthru
          _
        // Predicated region
        $region33: #{cifar_forward.1} parent=11 // pred_check
          %p224 = pneg %p168
        $region34: #{cifar_forward.1} parent=11 // pred_check_branch
          %226 = sbr.rel (%p224) target = $region36
        $region35: #{cifar_forward.1} parent=11 // pred_region
          _
        $region36: #{cifar_forward.1} parent=11 // pred_fallthru
          _
      $region12: #{cifar_forward.1} parent=5 // pred_fallthru
        _
      %p227 = scmp.lt.s32.totalorder %s16, 2
      // Predicated region
      $region37: #{cifar_forward.1} parent=5 // pred_check
        %p228 = pneg %p227
      $region38: #{cifar_forward.1} parent=5 // pred_check_branch
        %230 = sbr.rel (%p228) target = $region40
      $region39: #{cifar_forward.1} parent=5 // pred_region
        // Predicated region
        $region41: #{cifar_forward.1} parent=39 // pred_check
          %p231 = pneg %p36
        $region42: #{cifar_forward.1} parent=39 // pred_check_branch
          %233 = sbr.rel (%p231) target = $region44
        $region43: #{cifar_forward.1} parent=39 // pred_region
          %p234 = scmp.lt.s32.totalorder %s16, 1
          %s235 = scalar_select %p234, %s16, 1
          %s236 = smul.addr %s235, 54
          %s237 = smul.addr %s236, 4
          %s238 = scalar_lea.vmem %s0, %s237
        $region44: #{cifar_forward.1} parent=39 // pred_fallthru
          _
      $region40: #{cifar_forward.1} parent=5 // pred_fallthru
        _
      %p239 = scmp.le.s32.totalorder 1, %s16
      %p240 = scmp.lt.s32.totalorder %s16, 3
      %p241 = pnand %p239, %p240
      %p242 = pneg %p241
      // Predicated region
      $region45: #{cifar_forward.1} parent=5 // pred_check
        _
      $region46: #{cifar_forward.1} parent=5 // pred_check_branch
        %244 = sbr.rel (%p241) target = $region48
      $region47: #{cifar_forward.1} parent=5 // pred_region
        %s245 = ssub.s32 %s16, 1
        %p246 = scmp.lt.s32.totalorder %s21, 1
        %s247 = scalar_select %p246, %s21, 1
        %s248 = smul.addr %s247, 54
        %s249 = smul.addr %s248, 4
        %s250 = scalar_lea.vmem %s0, %s249
        %p251 = pneg %p42
        %p252 = pneg %p39
        %p253 = pneg %p63
        %p254 = pneg %p60
        %p255 = pneg %p84
        %p256 = pneg %p81
        %p257 = pneg %p105
        %p258 = pneg %p102
        %p259 = pneg %p126
        %p260 = pneg %p123
        %p261 = pneg %p147
        %p262 = pneg %p144
        %p263 = pneg %p168
        %p264 = pneg %p165
        %p265 = pneg %p194
        %p266 = pneg %p191
        %s267 = sand.u32 %s181, 1
        %s268 = scalar_lea.sflag [#allocation5], %s267
        %s269 = sand.u32 %s181, 1
        %s270 = scalar_lea.vmem [#allocation4], %s269
        %p271 = scmp.lt.s32.totalorder %s21, 1
        %s272 = scalar_select %p271, %s21, 1
        %s273 = smul.addr %s272, 54
        %s274 = smul.addr %s273, 4
        %s275 = scalar_lea.vmem %s0, %s274
        %v276 = vld [vmem:[%s275] sm:$0xf]
        %v277 = vld [vmem:[%s275 + $0x4] sm:$0xf]
        %v278 = vld [vmem:[%s275 + $0x8] sm:$0x1]
        %v279 = vld [vmem:[%s275 + $0xc] sm:$0xf]
        %v280 = vld [vmem:[%s275 + $0x10] sm:$0xf]
        %v281 = vld [vmem:[%s275 + $0x14] sm:$0x1]
        %v282 = vld [vmem:[%s275 + $0x18] sm:$0xf]
        %v283 = vld [vmem:[%s275 + $0x1c] sm:$0xf]
        %v284 = vld [vmem:[%s275 + $0x20] sm:$0x1]
        %v285 = vld [vmem:[%s275 + $0x24] sm:$0xf]
        %v286 = vld [vmem:[%s275 + $0x28] sm:$0xf]
        %v287 = vld [vmem:[%s275 + $0x2c] sm:$0x1]
        %v288 = vld [vmem:[%s275 + $0x30] sm:$0xf]
        %v289 = vld [vmem:[%s275 + $0x34] sm:$0xf]
        %v290 = vld [vmem:[%s275 + $0x38] sm:$0x1]
        %v291 = vld [vmem:[%s275 + $0x3c] sm:$0xf]
        %v292 = vld [vmem:[%s275 + $0x40] sm:$0xf]
        %v293 = vld [vmem:[%s275 + $0x44] sm:$0x1]
        %v294 = vld [vmem:[%s275 + $0x48] sm:$0xf]
        %v295 = vld [vmem:[%s275 + $0x4c] sm:$0xf]
        %v296 = vld [vmem:[%s275 + $0x50] sm:$0x1]
        %v297 = vld [vmem:[%s275 + $0x54] sm:$0xf]
        %v298 = vld [vmem:[%s275 + $0x58] sm:$0xf]
        %v299 = vld [vmem:[%s275 + $0x5c] sm:$0x1]
        %v300 = vld [vmem:[%s275 + $0x60] sm:$0xf]
        %v301 = vld [vmem:[%s275 + $0x64] sm:$0xf]
        %v302 = vld [vmem:[%s275 + $0x68] sm:$0x1]
        %v303 = vld [vmem:[%s275 + $0x6c] sm:$0xf]
        %v304 = vld [vmem:[%s275 + $0x70] sm:$0xf]
        %v305 = vld [vmem:[%s275 + $0x74] sm:$0x1]
        %v306 = vld [vmem:[%s275 + $0x78] sm:$0xf]
        %v307 = vld [vmem:[%s275 + $0x7c] sm:$0xf]
        %v308 = vld [vmem:[%s275 + $0x80] sm:$0x1]
        %v309 = vld [vmem:[%s275 + $0x84] sm:$0xf]
        %v310 = vld [vmem:[%s275 + $0x88] sm:$0xf]
        %v311 = vld [vmem:[%s275 + $0x8c] sm:$0x1]
        %v312 = vld [vmem:[%s275 + $0x90] sm:$0xf]
        %v313 = vld [vmem:[%s275 + $0x94] sm:$0xf]
        %v314 = vld [vmem:[%s275 + $0x98] sm:$0x1]
        %v315 = vld [vmem:[%s275 + $0x9c] sm:$0xf]
        %v316 = vld [vmem:[%s275 + $0xa0] sm:$0xf]
        %v317 = vld [vmem:[%s275 + $0xa4] sm:$0x1]
        %v318 = vld [vmem:[%s275 + $0xa8] sm:$0xf]
        %v319 = vld [vmem:[%s275 + $0xac] sm:$0xf]
        %v320 = vld [vmem:[%s275 + $0xb0] sm:$0x1]
        %v321 = vld [vmem:[%s275 + $0xb4] sm:$0xf]
        %v322 = vld [vmem:[%s275 + $0xb8] sm:$0xf]
        %v323 = vld [vmem:[%s275 + $0xbc] sm:$0x1]
        %v324 = vld [vmem:[%s275 + $0xc0] sm:$0xf]
        %v325 = vld [vmem:[%s275 + $0xc4] sm:$0xf]
        %v326 = vld [vmem:[%s275 + $0xc8] sm:$0x1]
        %v327 = vld [vmem:[%s275 + $0xcc] sm:$0xf]
        %v328 = vld [vmem:[%s275 + $0xd0] sm:$0xf]
        %v329 = vld [vmem:[%s275 + $0xd4] sm:$0x1]
        %v330 = vunpack.c.l.bf16 %v276
        %v331 = vunpack.c.l.bf16 %v277
        %v332 = vunpack.c.l.bf16 %v278
        %v333 = vunpack.c.l.bf16 %v279
        %v334 = vunpack.c.l.bf16 %v280
        %v335 = vunpack.c.l.bf16 %v281
        %v336 = vunpack.c.l.bf16 %v282
        %v337 = vunpack.c.l.bf16 %v283
        %v338 = vunpack.c.l.bf16 %v284
        %v339 = vunpack.c.l.bf16 %v285
        %v340 = vunpack.c.l.bf16 %v286
        %v341 = vunpack.c.l.bf16 %v287
        %v342 = vunpack.c.l.bf16 %v288
        %v343 = vunpack.c.l.bf16 %v289
        %v344 = vunpack.c.l.bf16 %v290
        %v345 = vunpack.c.l.bf16 %v291
        %v346 = vunpack.c.l.bf16 %v292
        %v347 = vunpack.c.l.bf16 %v293
        %v348 = vunpack.c.l.bf16 %v294
        %v349 = vunpack.c.l.bf16 %v295
        %v350 = vunpack.c.l.bf16 %v296
        %v351 = vunpack.c.l.bf16 %v297
        %v352 = vunpack.c.l.bf16 %v298
        %v353 = vunpack.c.l.bf16 %v299
        %v354 = vunpack.c.l.bf16 %v300
        %v355 = vunpack.c.l.bf16 %v301
        %v356 = vunpack.c.l.bf16 %v302
        %v357 = vunpack.c.l.bf16 %v303
        %v358 = vunpack.c.l.bf16 %v304
        %v359 = vunpack.c.l.bf16 %v305
        %v360 = vunpack.c.l.bf16 %v306
        %v361 = vunpack.c.l.bf16 %v307
        %v362 = vunpack.c.l.bf16 %v308
        %v363 = vunpack.c.l.bf16 %v309
        %v364 = vunpack.c.l.bf16 %v310
        %v365 = vunpack.c.l.bf16 %v311
        %v366 = vunpack.c.l.bf16 %v312
        %v367 = vunpack.c.l.bf16 %v313
        %v368 = vunpack.c.l.bf16 %v314
        %v369 = vunpack.c.l.bf16 %v315
        %v370 = vunpack.c.l.bf16 %v316
        %v371 = vunpack.c.l.bf16 %v317
        %v372 = vunpack.c.l.bf16 %v318
        %v373 = vunpack.c.l.bf16 %v319
        %v374 = vunpack.c.l.bf16 %v320
        %v375 = vunpack.c.l.bf16 %v321
        %v376 = vunpack.c.l.bf16 %v322
        %v377 = vunpack.c.l.bf16 %v323
        %v378 = vunpack.c.l.bf16 %v324
        %v379 = vunpack.c.l.bf16 %v325
        %v380 = vunpack.c.l.bf16 %v326
        %v381 = vunpack.c.l.bf16 %v327
        %v382 = vunpack.c.l.bf16 %v328
        %v383 = vunpack.c.l.bf16 %v329
        %v384 = vld [vmem:[%s1] sm:$0x7]
        %vm433 = vcmask 1046528
        %v434 = vrot.slane %v330, 1
        %v435 = vrot.slane %v331, 1
        %v436 = vsel %vm433, %v434, %v435
        %v437 = vrot.slane %v332, 1
        %v438 = vsel %vm433, %v435, %v437
        %v439 = vrot.slane %v333, 1
        %v440 = vrot.slane %v334, 1
        %v441 = vsel %vm433, %v439, %v440
        %v442 = vrot.slane %v335, 1
        %v443 = vsel %vm433, %v440, %v442
        %v444 = vrot.slane %v336, 1
        %v445 = vrot.slane %v337, 1
        %v446 = vsel %vm433, %v444, %v445
        %v447 = vrot.slane %v338, 1
        %v448 = vsel %vm433, %v445, %v447
        %v449 = vrot.slane %v339, 1
        %v450 = vrot.slane %v340, 1
        %v451 = vsel %vm433, %v449, %v450
        %v452 = vrot.slane %v341, 1
        %v453 = vsel %vm433, %v450, %v452
        %v454 = vrot.slane %v342, 1
        %v455 = vrot.slane %v343, 1
        %v456 = vsel %vm433, %v454, %v455
        %v457 = vrot.slane %v344, 1
        %v458 = vsel %vm433, %v455, %v457
        %v459 = vrot.slane %v345, 1
        %v460 = vrot.slane %v346, 1
        %v461 = vsel %vm433, %v459, %v460
        %v462 = vrot.slane %v347, 1
        %v463 = vsel %vm433, %v460, %v462
        %v464 = vrot.slane %v348, 1
        %v465 = vrot.slane %v349, 1
        %v466 = vsel %vm433, %v464, %v465
        %v467 = vrot.slane %v350, 1
        %v468 = vsel %vm433, %v465, %v467
        %v469 = vrot.slane %v351, 1
        %v470 = vrot.slane %v352, 1
        %v471 = vsel %vm433, %v469, %v470
        %v472 = vrot.slane %v353, 1
        %v473 = vsel %vm433, %v470, %v472
        %v474 = vrot.slane %v354, 1
        %v475 = vrot.slane %v355, 1
        %v476 = vsel %vm433, %v474, %v475
        %v477 = vrot.slane %v356, 1
        %v478 = vsel %vm433, %v475, %v477
        %v479 = vrot.slane %v357, 1
        %v480 = vrot.slane %v358, 1
        %v481 = vsel %vm433, %v479, %v480
        %v482 = vrot.slane %v359, 1
        %v483 = vsel %vm433, %v480, %v482
        %v484 = vrot.slane %v360, 1
        %v485 = vrot.slane %v361, 1
        %v486 = vsel %vm433, %v484, %v485
        %v487 = vrot.slane %v362, 1
        %v488 = vsel %vm433, %v485, %v487
        %v489 = vrot.slane %v363, 1
        %v490 = vrot.slane %v364, 1
        %v491 = vsel %vm433, %v489, %v490
        %v492 = vrot.slane %v365, 1
        %v493 = vsel %vm433, %v490, %v492
        %v494 = vrot.slane %v366, 1
        %v495 = vrot.slane %v367, 1
        %v496 = vsel %vm433, %v494, %v495
        %v497 = vrot.slane %v368, 1
        %v498 = vsel %vm433, %v495, %v497
        %v499 = vrot.slane %v369, 1
        %v500 = vrot.slane %v370, 1
        %v501 = vsel %vm433, %v499, %v500
        %v502 = vrot.slane %v371, 1
        %v503 = vsel %vm433, %v500, %v502
        %v504 = vrot.slane %v372, 1
        %v505 = vrot.slane %v373, 1
        %v506 = vsel %vm433, %v504, %v505
        %v507 = vrot.slane %v374, 1
        %v508 = vsel %vm433, %v505, %v507
        %v509 = vrot.slane %v375, 1
        %v510 = vrot.slane %v376, 1
        %v511 = vsel %vm433, %v509, %v510
        %v512 = vrot.slane %v377, 1
        %v513 = vsel %vm433, %v510, %v512
        %s514 = scalar_lea.vmem %s1, 4
        %v515 = vld [vmem:[%s514] sm:$0x7]
        %vm516 = vcmask 23552
        %v517 = vsel %vm516, %v436, 0
        %v519 = vsel %vm516, %v438, 0
        %v521 = vsel %vm516, %v441, 0
        %v523 = vsel %vm516, %v443, 0
        %v525 = vsel %vm516, %v446, 0
        %v527 = vsel %vm516, %v448, 0
        %v529 = vsel %vm516, %v451, 0
        %v531 = vsel %vm516, %v453, 0
        %v533 = vsel %vm516, %v456, 0
        %v535 = vsel %vm516, %v458, 0
        %v537 = vsel %vm516, %v461, 0
        %v539 = vsel %vm516, %v463, 0
        %v541 = vsel %vm516, %v466, 0
        %v543 = vsel %vm516, %v468, 0
        %v545 = vsel %vm516, %v471, 0
        %v547 = vsel %vm516, %v473, 0
        %v549 = vsel %vm516, %v476, 0
        %v551 = vsel %vm516, %v478, 0
        %v553 = vsel %vm516, %v481, 0
        %v555 = vsel %vm516, %v483, 0
        %v557 = vsel %vm516, %v486, 0
        %v559 = vsel %vm516, %v488, 0
        %v561 = vsel %vm516, %v491, 0
        %v563 = vsel %vm516, %v493, 0
        %v565 = vsel %vm516, %v496, 0
        %v567 = vsel %vm516, %v498, 0
        %v569 = vsel %vm516, %v501, 0
        %v571 = vsel %vm516, %v503, 0
        %v573 = vsel %vm516, %v506, 0
        %v575 = vsel %vm516, %v508, 0
        %v577 = vsel %vm516, %v511, 0
        %v579 = vsel %vm516, %v513, 0
        %vm581 = vcmask 1042432
        %v583 = vsel %vm581, %v515, 0
        %585 = vmatpush.msra.mxu0 0.0
        %586 = vmatpush.msra.mxu0 0.0
        %587 = vmatpush.msra.mxu0 0.0
        %588 = vmatpush.msra.mxu0 0.0
        %589 = vmatpush.msra.mxu0 0.0
        %590 = vmatpush.msra.mxu0 0.0
        %591 = vmatpush.msra.mxu0 0.0
        %592 = vmatpush.msra.mxu0 0.0
        %593 = vmatpush.msra.mxu0 0.0
        %594 = vmatpush.msra.mxu0 0.0
        %595 = vmatpush.msra.mxu0 0.0
        %596 = vmatpush.msra.mxu0 0.0
        %597 = vmatpush.msra.mxu0 0.0
        %598 = vmatpush.msra.mxu0 0.0
        %599 = vmatpush.msra.mxu0 0.0
        %600 = vmatpush.msra.mxu0 %v583
        %601 = vmatmul.f32.gmra.mxu0 %v517
        %v602 = vpop.f32.mrf.mxu0
        %v603 = vadd.f32 0.0, %v602
        %604 = vmatmul.f32.gmra.mxu0 %v519
        %v605 = vpop.f32.mrf.mxu0
        %v606 = vadd.f32 0.0, %v605
        %607 = vmatmul.f32.gmra.mxu0 %v521
        %v608 = vpop.f32.mrf.mxu0
        %v609 = vadd.f32 0.0, %v608
        %610 = vmatmul.f32.gmra.mxu0 %v523
        %v611 = vpop.f32.mrf.mxu0
        %v612 = vadd.f32 0.0, %v611
        %613 = vmatmul.f32.gmra.mxu0 %v525
        %v614 = vpop.f32.mrf.mxu0
        %v615 = vadd.f32 0.0, %v614
        %616 = vmatmul.f32.gmra.mxu0 %v527
        %v617 = vpop.f32.mrf.mxu0
        %v618 = vadd.f32 0.0, %v617
        %619 = vmatmul.f32.gmra.mxu0 %v529
        %v620 = vpop.f32.mrf.mxu0
        %v621 = vadd.f32 0.0, %v620
        %622 = vmatmul.f32.gmra.mxu0 %v531
        %v623 = vpop.f32.mrf.mxu0
        %v624 = vadd.f32 0.0, %v623
        %625 = vmatmul.f32.gmra.mxu0 %v533
        %v626 = vpop.f32.mrf.mxu0
        %v627 = vadd.f32 0.0, %v626
        %628 = vmatmul.f32.gmra.mxu0 %v535
        %v629 = vpop.f32.mrf.mxu0
        %v630 = vadd.f32 0.0, %v629
        %631 = vmatmul.f32.gmra.mxu0 %v537
        %v632 = vpop.f32.mrf.mxu0
        %v633 = vadd.f32 0.0, %v632
        %634 = vmatmul.f32.gmra.mxu0 %v539
        %v635 = vpop.f32.mrf.mxu0
        %v636 = vadd.f32 0.0, %v635
        %637 = vmatmul.f32.gmra.mxu0 %v541
        %v638 = vpop.f32.mrf.mxu0
        %v639 = vadd.f32 0.0, %v638
        %640 = vmatmul.f32.gmra.mxu0 %v543
        %v641 = vpop.f32.mrf.mxu0
        %v642 = vadd.f32 0.0, %v641
        %643 = vmatmul.f32.gmra.mxu0 %v545
        %v644 = vpop.f32.mrf.mxu0
        %v645 = vadd.f32 0.0, %v644
        %646 = vmatmul.f32.gmra.mxu0 %v547
        %v647 = vpop.f32.mrf.mxu0
        %v648 = vadd.f32 0.0, %v647
        %649 = vmatmul.f32.gmra.mxu0 %v549
        %v650 = vpop.f32.mrf.mxu0
        %v651 = vadd.f32 0.0, %v650
        %652 = vmatmul.f32.gmra.mxu0 %v551
        %v653 = vpop.f32.mrf.mxu0
        %v654 = vadd.f32 0.0, %v653
        %655 = vmatmul.f32.gmra.mxu0 %v553
        %v656 = vpop.f32.mrf.mxu0
        %v657 = vadd.f32 0.0, %v656
        %658 = vmatmul.f32.gmra.mxu0 %v555
        %v659 = vpop.f32.mrf.mxu0
        %v660 = vadd.f32 0.0, %v659
        %661 = vmatmul.f32.gmra.mxu0 %v557
        %v662 = vpop.f32.mrf.mxu0
        %v663 = vadd.f32 0.0, %v662
        %664 = vmatmul.f32.gmra.mxu0 %v559
        %v665 = vpop.f32.mrf.mxu0
        %v666 = vadd.f32 0.0, %v665
        %667 = vmatmul.f32.gmra.mxu0 %v561
        %v668 = vpop.f32.mrf.mxu0
        %v669 = vadd.f32 0.0, %v668
        %670 = vmatmul.f32.gmra.mxu0 %v563
        %v671 = vpop.f32.mrf.mxu0
        %v672 = vadd.f32 0.0, %v671
        %673 = vmatmul.f32.gmra.mxu0 %v565
        %v674 = vpop.f32.mrf.mxu0
        %v675 = vadd.f32 0.0, %v674
        %676 = vmatmul.f32.gmra.mxu0 %v567
        %v677 = vpop.f32.mrf.mxu0
        %v678 = vadd.f32 0.0, %v677
        %679 = vmatmul.f32.gmra.mxu0 %v569
        %v680 = vpop.f32.mrf.mxu0
        %v681 = vadd.f32 0.0, %v680
        %682 = vmatmul.f32.gmra.mxu0 %v571
        %v683 = vpop.f32.mrf.mxu0
        %v684 = vadd.f32 0.0, %v683
        %685 = vmatmul.f32.gmra.mxu0 %v573
        %v686 = vpop.f32.mrf.mxu0
        %v687 = vadd.f32 0.0, %v686
        %688 = vmatmul.f32.gmra.mxu0 %v575
        %v689 = vpop.f32.mrf.mxu0
        %v690 = vadd.f32 0.0, %v689
        %691 = vmatmul.f32.gmra.mxu0 %v577
        %v692 = vpop.f32.mrf.mxu0
        %v693 = vadd.f32 0.0, %v692
        %694 = vmatmul.f32.gmra.mxu0 %v579
        %v695 = vpop.f32.mrf.mxu0
        %v696 = vadd.f32 0.0, %v695
        %697 = vdwg.mxu0
        %v698 = vsel %vm516, %v330, 0
        %v700 = vsel %vm516, %v331, 0
        %v702 = vsel %vm516, %v333, 0
        %v704 = vsel %vm516, %v334, 0
        %v706 = vsel %vm516, %v336, 0
        %v708 = vsel %vm516, %v337, 0
        %v710 = vsel %vm516, %v339, 0
        %v712 = vsel %vm516, %v340, 0
        %v714 = vsel %vm516, %v342, 0
        %v716 = vsel %vm516, %v343, 0
        %v718 = vsel %vm516, %v345, 0
        %v720 = vsel %vm516, %v346, 0
        %v722 = vsel %vm516, %v348, 0
        %v724 = vsel %vm516, %v349, 0
        %v726 = vsel %vm516, %v351, 0
        %v728 = vsel %vm516, %v352, 0
        %v730 = vsel %vm516, %v354, 0
        %v732 = vsel %vm516, %v355, 0
        %v734 = vsel %vm516, %v357, 0
        %v736 = vsel %vm516, %v358, 0
        %v738 = vsel %vm516, %v360, 0
        %v740 = vsel %vm516, %v361, 0
        %v742 = vsel %vm516, %v363, 0
        %v744 = vsel %vm516, %v364, 0
        %v746 = vsel %vm516, %v366, 0
        %v748 = vsel %vm516, %v367, 0
        %v750 = vsel %vm516, %v369, 0
        %v752 = vsel %vm516, %v370, 0
        %v754 = vsel %vm516, %v372, 0
        %v756 = vsel %vm516, %v373, 0
        %v758 = vsel %vm516, %v375, 0
        %v760 = vsel %vm516, %v376, 0
        %v763 = vsel %vm581, %v384, 0
        %765 = vmatpush.msra.mxu0 0.0
        %766 = vmatpush.msra.mxu0 0.0
        %767 = vmatpush.msra.mxu0 0.0
        %768 = vmatpush.msra.mxu0 0.0
        %769 = vmatpush.msra.mxu0 0.0
        %770 = vmatpush.msra.mxu0 0.0
        %771 = vmatpush.msra.mxu0 0.0
        %772 = vmatpush.msra.mxu0 0.0
        %773 = vmatpush.msra.mxu0 0.0
        %774 = vmatpush.msra.mxu0 0.0
        %775 = vmatpush.msra.mxu0 0.0
        %776 = vmatpush.msra.mxu0 0.0
        %777 = vmatpush.msra.mxu0 0.0
        %778 = vmatpush.msra.mxu0 0.0
        %779 = vmatpush.msra.mxu0 0.0
        %780 = vmatpush.msra.mxu0 %v763
        %781 = vmatmul.f32.gmra.mxu0 %v698
        %v782 = vpop.f32.mrf.mxu0
        %v783 = vadd.f32 %v603, %v782
        %784 = vmatmul.f32.gmra.mxu0 %v700
        %v785 = vpop.f32.mrf.mxu0
        %v786 = vadd.f32 %v606, %v785
        %787 = vmatmul.f32.gmra.mxu0 %v702
        %v788 = vpop.f32.mrf.mxu0
        %v789 = vadd.f32 %v609, %v788
        %790 = vmatmul.f32.gmra.mxu0 %v704
        %v791 = vpop.f32.mrf.mxu0
        %v792 = vadd.f32 %v612, %v791
        %793 = vmatmul.f32.gmra.mxu0 %v706
        %v794 = vpop.f32.mrf.mxu0
        %v795 = vadd.f32 %v615, %v794
        %796 = vmatmul.f32.gmra.mxu0 %v708
        %v797 = vpop.f32.mrf.mxu0
        %v798 = vadd.f32 %v618, %v797
        %799 = vmatmul.f32.gmra.mxu0 %v710
        %v800 = vpop.f32.mrf.mxu0
        %v801 = vadd.f32 %v621, %v800
        %802 = vmatmul.f32.gmra.mxu0 %v712
        %v803 = vpop.f32.mrf.mxu0
        %v804 = vadd.f32 %v624, %v803
        %805 = vmatmul.f32.gmra.mxu0 %v714
        %v806 = vpop.f32.mrf.mxu0
        %v807 = vadd.f32 %v627, %v806
        %808 = vmatmul.f32.gmra.mxu0 %v716
        %v809 = vpop.f32.mrf.mxu0
        %v810 = vadd.f32 %v630, %v809
        %811 = vmatmul.f32.gmra.mxu0 %v718
        %v812 = vpop.f32.mrf.mxu0
        %v813 = vadd.f32 %v633, %v812
        %814 = vmatmul.f32.gmra.mxu0 %v720
        %v815 = vpop.f32.mrf.mxu0
        %v816 = vadd.f32 %v636, %v815
        %817 = vmatmul.f32.gmra.mxu0 %v722
        %v818 = vpop.f32.mrf.mxu0
        %v819 = vadd.f32 %v639, %v818
        %820 = vmatmul.f32.gmra.mxu0 %v724
        %v821 = vpop.f32.mrf.mxu0
        %v822 = vadd.f32 %v642, %v821
        %823 = vmatmul.f32.gmra.mxu0 %v726
        %v824 = vpop.f32.mrf.mxu0
        %v825 = vadd.f32 %v645, %v824
        %826 = vmatmul.f32.gmra.mxu0 %v728
        %v827 = vpop.f32.mrf.mxu0
        %v828 = vadd.f32 %v648, %v827
        %829 = vmatmul.f32.gmra.mxu0 %v730
        %v830 = vpop.f32.mrf.mxu0
        %v831 = vadd.f32 %v651, %v830
        %832 = vmatmul.f32.gmra.mxu0 %v732
        %v833 = vpop.f32.mrf.mxu0
        %v834 = vadd.f32 %v654, %v833
        %835 = vmatmul.f32.gmra.mxu0 %v734
        %v836 = vpop.f32.mrf.mxu0
        %v837 = vadd.f32 %v657, %v836
        %838 = vmatmul.f32.gmra.mxu0 %v736
        %v839 = vpop.f32.mrf.mxu0
        %v840 = vadd.f32 %v660, %v839
        %841 = vmatmul.f32.gmra.mxu0 %v738
        %v842 = vpop.f32.mrf.mxu0
        %v843 = vadd.f32 %v663, %v842
        %844 = vmatmul.f32.gmra.mxu0 %v740
        %v845 = vpop.f32.mrf.mxu0
        %v846 = vadd.f32 %v666, %v845
        %847 = vmatmul.f32.gmra.mxu0 %v742
        %v848 = vpop.f32.mrf.mxu0
        %v849 = vadd.f32 %v669, %v848
        %850 = vmatmul.f32.gmra.mxu0 %v744
        %v851 = vpop.f32.mrf.mxu0
        %v852 = vadd.f32 %v672, %v851
        %853 = vmatmul.f32.gmra.mxu0 %v746
        %v854 = vpop.f32.mrf.mxu0
        %v855 = vadd.f32 %v675, %v854
        %856 = vmatmul.f32.gmra.mxu0 %v748
        %v857 = vpop.f32.mrf.mxu0
        %v858 = vadd.f32 %v678, %v857
        %859 = vmatmul.f32.gmra.mxu0 %v750
        %v860 = vpop.f32.mrf.mxu0
        %v861 = vadd.f32 %v681, %v860
        %862 = vmatmul.f32.gmra.mxu0 %v752
        %v863 = vpop.f32.mrf.mxu0
        %v864 = vadd.f32 %v684, %v863
        %865 = vmatmul.f32.gmra.mxu0 %v754
        %v866 = vpop.f32.mrf.mxu0
        %v867 = vadd.f32 %v687, %v866
        %868 = vmatmul.f32.gmra.mxu0 %v756
        %v869 = vpop.f32.mrf.mxu0
        %v870 = vadd.f32 %v690, %v869
        %871 = vmatmul.f32.gmra.mxu0 %v758
        %v872 = vpop.f32.mrf.mxu0
        %v873 = vadd.f32 %v693, %v872
        %874 = vmatmul.f32.gmra.mxu0 %v760
        %v875 = vpop.f32.mrf.mxu0
        %v876 = vadd.f32 %v696, %v875
        %877 = vdwg.mxu0
        %vm878 = vcmask 1045504
        %v879 = vrot.slane %v330, 2
        %v880 = vrot.slane %v331, 2
        %v881 = vsel %vm878, %v879, %v880
        %v882 = vrot.slane %v332, 2
        %v883 = vsel %vm878, %v880, %v882
        %v884 = vrot.slane %v333, 2
        %v885 = vrot.slane %v334, 2
        %v886 = vsel %vm878, %v884, %v885
        %v887 = vrot.slane %v335, 2
        %v888 = vsel %vm878, %v885, %v887
        %v889 = vrot.slane %v336, 2
        %v890 = vrot.slane %v337, 2
        %v891 = vsel %vm878, %v889, %v890
        %v892 = vrot.slane %v338, 2
        %v893 = vsel %vm878, %v890, %v892
        %v894 = vrot.slane %v339, 2
        %v895 = vrot.slane %v340, 2
        %v896 = vsel %vm878, %v894, %v895
        %v897 = vrot.slane %v341, 2
        %v898 = vsel %vm878, %v895, %v897
        %v899 = vrot.slane %v342, 2
        %v900 = vrot.slane %v343, 2
        %v901 = vsel %vm878, %v899, %v900
        %v902 = vrot.slane %v344, 2
        %v903 = vsel %vm878, %v900, %v902
        %v904 = vrot.slane %v345, 2
        %v905 = vrot.slane %v346, 2
        %v906 = vsel %vm878, %v904, %v905
        %v907 = vrot.slane %v347, 2
        %v908 = vsel %vm878, %v905, %v907
        %v909 = vrot.slane %v348, 2
        %v910 = vrot.slane %v349, 2
        %v911 = vsel %vm878, %v909, %v910
        %v912 = vrot.slane %v350, 2
        %v913 = vsel %vm878, %v910, %v912
        %v914 = vrot.slane %v351, 2
        %v915 = vrot.slane %v352, 2
        %v916 = vsel %vm878, %v914, %v915
        %v917 = vrot.slane %v353, 2
        %v918 = vsel %vm878, %v915, %v917
        %v919 = vrot.slane %v354, 2
        %v920 = vrot.slane %v355, 2
        %v921 = vsel %vm878, %v919, %v920
        %v922 = vrot.slane %v356, 2
        %v923 = vsel %vm878, %v920, %v922
        %v924 = vrot.slane %v357, 2
        %v925 = vrot.slane %v358, 2
        %v926 = vsel %vm878, %v924, %v925
        %v927 = vrot.slane %v359, 2
        %v928 = vsel %vm878, %v925, %v927
        %v929 = vrot.slane %v360, 2
        %v930 = vrot.slane %v361, 2
        %v931 = vsel %vm878, %v929, %v930
        %v932 = vrot.slane %v362, 2
        %v933 = vsel %vm878, %v930, %v932
        %v934 = vrot.slane %v363, 2
        %v935 = vrot.slane %v364, 2
        %v936 = vsel %vm878, %v934, %v935
        %v937 = vrot.slane %v365, 2
        %v938 = vsel %vm878, %v935, %v937
        %v939 = vrot.slane %v366, 2
        %v940 = vrot.slane %v367, 2
        %v941 = vsel %vm878, %v939, %v940
        %v942 = vrot.slane %v368, 2
        %v943 = vsel %vm878, %v940, %v942
        %v944 = vrot.slane %v369, 2
        %v945 = vrot.slane %v370, 2
        %v946 = vsel %vm878, %v944, %v945
        %v947 = vrot.slane %v371, 2
        %v948 = vsel %vm878, %v945, %v947
        %v949 = vrot.slane %v372, 2
        %v950 = vrot.slane %v373, 2
        %v951 = vsel %vm878, %v949, %v950
        %v952 = vrot.slane %v374, 2
        %v953 = vsel %vm878, %v950, %v952
        %v954 = vrot.slane %v375, 2
        %v955 = vrot.slane %v376, 2
        %v956 = vsel %vm878, %v954, %v955
        %v957 = vrot.slane %v377, 2
        %v958 = vsel %vm878, %v955, %v957
        %s959 = scalar_lea.vmem %s1, 8
        %v960 = vld [vmem:[%s959] sm:$0x7]
        %v961 = vsel %vm516, %v881, 0
        %v963 = vsel %vm516, %v883, 0
        %v965 = vsel %vm516, %v886, 0
        %v967 = vsel %vm516, %v888, 0
        %v969 = vsel %vm516, %v891, 0
        %v971 = vsel %vm516, %v893, 0
        %v973 = vsel %vm516, %v896, 0
        %v975 = vsel %vm516, %v898, 0
        %v977 = vsel %vm516, %v901, 0
        %v979 = vsel %vm516, %v903, 0
        %v981 = vsel %vm516, %v906, 0
        %v983 = vsel %vm516, %v908, 0
        %v985 = vsel %vm516, %v911, 0
        %v987 = vsel %vm516, %v913, 0
        %v989 = vsel %vm516, %v916, 0
        %v991 = vsel %vm516, %v918, 0
        %v993 = vsel %vm516, %v921, 0
        %v995 = vsel %vm516, %v923, 0
        %v997 = vsel %vm516, %v926, 0
        %v999 = vsel %vm516, %v928, 0
        %v1001 = vsel %vm516, %v931, 0
        %v1003 = vsel %vm516, %v933, 0
        %v1005 = vsel %vm516, %v936, 0
        %v1007 = vsel %vm516, %v938, 0
        %v1009 = vsel %vm516, %v941, 0
        %v1011 = vsel %vm516, %v943, 0
        %v1013 = vsel %vm516, %v946, 0
        %v1015 = vsel %vm516, %v948, 0
        %v1017 = vsel %vm516, %v951, 0
        %v1019 = vsel %vm516, %v953, 0
        %v1021 = vsel %vm516, %v956, 0
        %v1023 = vsel %vm516, %v958, 0
        %v1026 = vsel %vm581, %v960, 0
        %1028 = vmatpush.msra.mxu0 0.0
        %1029 = vmatpush.msra.mxu0 0.0
        %1030 = vmatpush.msra.mxu0 0.0
        %1031 = vmatpush.msra.mxu0 0.0
        %1032 = vmatpush.msra.mxu0 0.0
        %1033 = vmatpush.msra.mxu0 0.0
        %1034 = vmatpush.msra.mxu0 0.0
        %1035 = vmatpush.msra.mxu0 0.0
        %1036 = vmatpush.msra.mxu0 0.0
        %1037 = vmatpush.msra.mxu0 0.0
        %1038 = vmatpush.msra.mxu0 0.0
        %1039 = vmatpush.msra.mxu0 0.0
        %1040 = vmatpush.msra.mxu0 0.0
        %1041 = vmatpush.msra.mxu0 0.0
        %1042 = vmatpush.msra.mxu0 0.0
        %1043 = vmatpush.msra.mxu0 %v1026
        %1044 = vmatmul.f32.gmra.mxu0 %v961
        %v1045 = vpop.f32.mrf.mxu0
        %v1046 = vadd.f32 0.0, %v1045
        %1047 = vmatmul.f32.gmra.mxu0 %v963
        %v1048 = vpop.f32.mrf.mxu0
        %v1049 = vadd.f32 0.0, %v1048
        %1050 = vmatmul.f32.gmra.mxu0 %v965
        %v1051 = vpop.f32.mrf.mxu0
        %v1052 = vadd.f32 0.0, %v1051
        %1053 = vmatmul.f32.gmra.mxu0 %v967
        %v1054 = vpop.f32.mrf.mxu0
        %v1055 = vadd.f32 0.0, %v1054
        %1056 = vmatmul.f32.gmra.mxu0 %v969
        %v1057 = vpop.f32.mrf.mxu0
        %v1058 = vadd.f32 0.0, %v1057
        %1059 = vmatmul.f32.gmra.mxu0 %v971
        %v1060 = vpop.f32.mrf.mxu0
        %v1061 = vadd.f32 0.0, %v1060
        %1062 = vmatmul.f32.gmra.mxu0 %v973
        %v1063 = vpop.f32.mrf.mxu0
        %v1064 = vadd.f32 0.0, %v1063
        %1065 = vmatmul.f32.gmra.mxu0 %v975
        %v1066 = vpop.f32.mrf.mxu0
        %v1067 = vadd.f32 0.0, %v1066
        %1068 = vmatmul.f32.gmra.mxu0 %v977
        %v1069 = vpop.f32.mrf.mxu0
        %v1070 = vadd.f32 0.0, %v1069
        %1071 = vmatmul.f32.gmra.mxu0 %v979
        %v1072 = vpop.f32.mrf.mxu0
        %v1073 = vadd.f32 0.0, %v1072
        %1074 = vmatmul.f32.gmra.mxu0 %v981
        %v1075 = vpop.f32.mrf.mxu0
        %v1076 = vadd.f32 0.0, %v1075
        %1077 = vmatmul.f32.gmra.mxu0 %v983
        %v1078 = vpop.f32.mrf.mxu0
        %v1079 = vadd.f32 0.0, %v1078
        %1080 = vmatmul.f32.gmra.mxu0 %v985
        %v1081 = vpop.f32.mrf.mxu0
        %v1082 = vadd.f32 0.0, %v1081
        %1083 = vmatmul.f32.gmra.mxu0 %v987
        %v1084 = vpop.f32.mrf.mxu0
        %v1085 = vadd.f32 0.0, %v1084
        %1086 = vmatmul.f32.gmra.mxu0 %v989
        %v1087 = vpop.f32.mrf.mxu0
        %v1088 = vadd.f32 0.0, %v1087
        %1089 = vmatmul.f32.gmra.mxu0 %v991
        %v1090 = vpop.f32.mrf.mxu0
        %v1091 = vadd.f32 0.0, %v1090
        %1092 = vmatmul.f32.gmra.mxu0 %v993
        %v1093 = vpop.f32.mrf.mxu0
        %v1094 = vadd.f32 0.0, %v1093
        %1095 = vmatmul.f32.gmra.mxu0 %v995
        %v1096 = vpop.f32.mrf.mxu0
        %v1097 = vadd.f32 0.0, %v1096
        %1098 = vmatmul.f32.gmra.mxu0 %v997
        %v1099 = vpop.f32.mrf.mxu0
        %v1100 = vadd.f32 0.0, %v1099
        %1101 = vmatmul.f32.gmra.mxu0 %v999
        %v1102 = vpop.f32.mrf.mxu0
        %v1103 = vadd.f32 0.0, %v1102
        %1104 = vmatmul.f32.gmra.mxu0 %v1001
        %v1105 = vpop.f32.mrf.mxu0
        %v1106 = vadd.f32 0.0, %v1105
        %1107 = vmatmul.f32.gmra.mxu0 %v1003
        %v1108 = vpop.f32.mrf.mxu0
        %v1109 = vadd.f32 0.0, %v1108
        %1110 = vmatmul.f32.gmra.mxu0 %v1005
        %v1111 = vpop.f32.mrf.mxu0
        %v1112 = vadd.f32 0.0, %v1111
        %1113 = vmatmul.f32.gmra.mxu0 %v1007
        %v1114 = vpop.f32.mrf.mxu0
        %v1115 = vadd.f32 0.0, %v1114
        %1116 = vmatmul.f32.gmra.mxu0 %v1009
        %v1117 = vpop.f32.mrf.mxu0
        %v1118 = vadd.f32 0.0, %v1117
        %1119 = vmatmul.f32.gmra.mxu0 %v1011
        %v1120 = vpop.f32.mrf.mxu0
        %v1121 = vadd.f32 0.0, %v1120
        %1122 = vmatmul.f32.gmra.mxu0 %v1013
        %v1123 = vpop.f32.mrf.mxu0
        %v1124 = vadd.f32 0.0, %v1123
        %1125 = vmatmul.f32.gmra.mxu0 %v1015
        %v1126 = vpop.f32.mrf.mxu0
        %v1127 = vadd.f32 0.0, %v1126
        %1128 = vmatmul.f32.gmra.mxu0 %v1017
        %v1129 = vpop.f32.mrf.mxu0
        %v1130 = vadd.f32 0.0, %v1129
        %1131 = vmatmul.f32.gmra.mxu0 %v1019
        %v1132 = vpop.f32.mrf.mxu0
        %v1133 = vadd.f32 0.0, %v1132
        %1134 = vmatmul.f32.gmra.mxu0 %v1021
        %v1135 = vpop.f32.mrf.mxu0
        %v1136 = vadd.f32 0.0, %v1135
        %1137 = vmatmul.f32.gmra.mxu0 %v1023
        %v1138 = vpop.f32.mrf.mxu0
        %v1139 = vadd.f32 0.0, %v1138
        %1140 = vdwg.mxu0
        %v1141 = vadd.f32 %v783, %v1046
        %v1142 = vadd.f32 %v786, %v1049
        %v1143 = vadd.f32 %v789, %v1052
        %v1144 = vadd.f32 %v792, %v1055
        %v1145 = vadd.f32 %v795, %v1058
        %v1146 = vadd.f32 %v798, %v1061
        %v1147 = vadd.f32 %v801, %v1064
        %v1148 = vadd.f32 %v804, %v1067
        %v1149 = vadd.f32 %v807, %v1070
        %v1150 = vadd.f32 %v810, %v1073
        %v1151 = vadd.f32 %v813, %v1076
        %v1152 = vadd.f32 %v816, %v1079
        %v1153 = vadd.f32 %v819, %v1082
        %v1154 = vadd.f32 %v822, %v1085
        %v1155 = vadd.f32 %v825, %v1088
        %v1156 = vadd.f32 %v828, %v1091
        %v1157 = vadd.f32 %v831, %v1094
        %v1158 = vadd.f32 %v834, %v1097
        %v1159 = vadd.f32 %v837, %v1100
        %v1160 = vadd.f32 %v840, %v1103
        %v1161 = vadd.f32 %v843, %v1106
        %v1162 = vadd.f32 %v846, %v1109
        %v1163 = vadd.f32 %v849, %v1112
        %v1164 = vadd.f32 %v852, %v1115
        %v1165 = vadd.f32 %v855, %v1118
        %v1166 = vadd.f32 %v858, %v1121
        %v1167 = vadd.f32 %v861, %v1124
        %v1168 = vadd.f32 %v864, %v1127
        %v1169 = vadd.f32 %v867, %v1130
        %v1170 = vadd.f32 %v870, %v1133
        %v1171 = vadd.f32 %v873, %v1136
        %v1172 = vadd.f32 %v876, %v1139
        %s1173 = scalar_lea.vmem %s1, 12
        %v1174 = vld [vmem:[%s1173] sm:$0x7]
        %v1176 = vsel %vm516, %v378, 0
        %v1179 = vsel %vm516, %v379, 0
        %v1182 = vsel %vm581, %v1174, 0
        %1184 = vmatpush.msra.mxu0 0.0
        %1185 = vmatpush.msra.mxu0 0.0
        %1186 = vmatpush.msra.mxu0 0.0
        %1187 = vmatpush.msra.mxu0 0.0
        %1188 = vmatpush.msra.mxu0 0.0
        %1189 = vmatpush.msra.mxu0 0.0
        %1190 = vmatpush.msra.mxu0 0.0
        %1191 = vmatpush.msra.mxu0 0.0
        %1192 = vmatpush.msra.mxu0 0.0
        %1193 = vmatpush.msra.mxu0 0.0
        %1194 = vmatpush.msra.mxu0 0.0
        %1195 = vmatpush.msra.mxu0 0.0
        %1196 = vmatpush.msra.mxu0 0.0
        %1197 = vmatpush.msra.mxu0 0.0
        %1198 = vmatpush.msra.mxu0 0.0
        %1199 = vmatpush.msra.mxu0 %v1182
        %1200 = vmatmul.f32.gmra.mxu0 %v702
        %v1201 = vpop.f32.mrf.mxu0
        %v1202 = vadd.f32 0.0, %v1201
        %1203 = vmatmul.f32.gmra.mxu0 %v704
        %v1204 = vpop.f32.mrf.mxu0
        %v1205 = vadd.f32 0.0, %v1204
        %1206 = vmatmul.f32.gmra.mxu0 %v706
        %v1207 = vpop.f32.mrf.mxu0
        %v1208 = vadd.f32 0.0, %v1207
        %1209 = vmatmul.f32.gmra.mxu0 %v708
        %v1210 = vpop.f32.mrf.mxu0
        %v1211 = vadd.f32 0.0, %v1210
        %1212 = vmatmul.f32.gmra.mxu0 %v710
        %v1213 = vpop.f32.mrf.mxu0
        %v1214 = vadd.f32 0.0, %v1213
        %1215 = vmatmul.f32.gmra.mxu0 %v712
        %v1216 = vpop.f32.mrf.mxu0
        %v1217 = vadd.f32 0.0, %v1216
        %1218 = vmatmul.f32.gmra.mxu0 %v714
        %v1219 = vpop.f32.mrf.mxu0
        %v1220 = vadd.f32 0.0, %v1219
        %1221 = vmatmul.f32.gmra.mxu0 %v716
        %v1222 = vpop.f32.mrf.mxu0
        %v1223 = vadd.f32 0.0, %v1222
        %1224 = vmatmul.f32.gmra.mxu0 %v718
        %v1225 = vpop.f32.mrf.mxu0
        %v1226 = vadd.f32 0.0, %v1225
        %1227 = vmatmul.f32.gmra.mxu0 %v720
        %v1228 = vpop.f32.mrf.mxu0
        %v1229 = vadd.f32 0.0, %v1228
        %1230 = vmatmul.f32.gmra.mxu0 %v722
        %v1231 = vpop.f32.mrf.mxu0
        %v1232 = vadd.f32 0.0, %v1231
        %1233 = vmatmul.f32.gmra.mxu0 %v724
        %v1234 = vpop.f32.mrf.mxu0
        %v1235 = vadd.f32 0.0, %v1234
        %1236 = vmatmul.f32.gmra.mxu0 %v726
        %v1237 = vpop.f32.mrf.mxu0
        %v1238 = vadd.f32 0.0, %v1237
        %1239 = vmatmul.f32.gmra.mxu0 %v728
        %v1240 = vpop.f32.mrf.mxu0
        %v1241 = vadd.f32 0.0, %v1240
        %1242 = vmatmul.f32.gmra.mxu0 %v730
        %v1243 = vpop.f32.mrf.mxu0
        %v1244 = vadd.f32 0.0, %v1243
        %1245 = vmatmul.f32.gmra.mxu0 %v732
        %v1246 = vpop.f32.mrf.mxu0
        %v1247 = vadd.f32 0.0, %v1246
        %1248 = vmatmul.f32.gmra.mxu0 %v734
        %v1249 = vpop.f32.mrf.mxu0
        %v1250 = vadd.f32 0.0, %v1249
        %1251 = vmatmul.f32.gmra.mxu0 %v736
        %v1252 = vpop.f32.mrf.mxu0
        %v1253 = vadd.f32 0.0, %v1252
        %1254 = vmatmul.f32.gmra.mxu0 %v738
        %v1255 = vpop.f32.mrf.mxu0
        %v1256 = vadd.f32 0.0, %v1255
        %1257 = vmatmul.f32.gmra.mxu0 %v740
        %v1258 = vpop.f32.mrf.mxu0
        %v1259 = vadd.f32 0.0, %v1258
        %1260 = vmatmul.f32.gmra.mxu0 %v742
        %v1261 = vpop.f32.mrf.mxu0
        %v1262 = vadd.f32 0.0, %v1261
        %1263 = vmatmul.f32.gmra.mxu0 %v744
        %v1264 = vpop.f32.mrf.mxu0
        %v1265 = vadd.f32 0.0, %v1264
        %1266 = vmatmul.f32.gmra.mxu0 %v746
        %v1267 = vpop.f32.mrf.mxu0
        %v1268 = vadd.f32 0.0, %v1267
        %1269 = vmatmul.f32.gmra.mxu0 %v748
        %v1270 = vpop.f32.mrf.mxu0
        %v1271 = vadd.f32 0.0, %v1270
        %1272 = vmatmul.f32.gmra.mxu0 %v750
        %v1273 = vpop.f32.mrf.mxu0
        %v1274 = vadd.f32 0.0, %v1273
        %1275 = vmatmul.f32.gmra.mxu0 %v752
        %v1276 = vpop.f32.mrf.mxu0
        %v1277 = vadd.f32 0.0, %v1276
        %1278 = vmatmul.f32.gmra.mxu0 %v754
        %v1279 = vpop.f32.mrf.mxu0
        %v1280 = vadd.f32 0.0, %v1279
        %1281 = vmatmul.f32.gmra.mxu0 %v756
        %v1282 = vpop.f32.mrf.mxu0
        %v1283 = vadd.f32 0.0, %v1282
        %1284 = vmatmul.f32.gmra.mxu0 %v758
        %v1285 = vpop.f32.mrf.mxu0
        %v1286 = vadd.f32 0.0, %v1285
        %1287 = vmatmul.f32.gmra.mxu0 %v760
        %v1288 = vpop.f32.mrf.mxu0
        %v1289 = vadd.f32 0.0, %v1288
        %1290 = vmatmul.f32.gmra.mxu0 %v1176
        %v1291 = vpop.f32.mrf.mxu0
        %v1292 = vadd.f32 0.0, %v1291
        %1293 = vmatmul.f32.gmra.mxu0 %v1179
        %v1294 = vpop.f32.mrf.mxu0
        %v1295 = vadd.f32 0.0, %v1294
        %1296 = vdwg.mxu0
        %v1297 = vadd.f32 %v1141, %v1202
        %v1298 = vadd.f32 %v1142, %v1205
        %v1299 = vadd.f32 %v1143, %v1208
        %v1300 = vadd.f32 %v1144, %v1211
        %v1301 = vadd.f32 %v1145, %v1214
        %v1302 = vadd.f32 %v1146, %v1217
        %v1303 = vadd.f32 %v1147, %v1220
        %v1304 = vadd.f32 %v1148, %v1223
        %v1305 = vadd.f32 %v1149, %v1226
        %v1306 = vadd.f32 %v1150, %v1229
        %v1307 = vadd.f32 %v1151, %v1232
        %v1308 = vadd.f32 %v1152, %v1235
        %v1309 = vadd.f32 %v1153, %v1238
        %v1310 = vadd.f32 %v1154, %v1241
        %v1311 = vadd.f32 %v1155, %v1244
        %v1312 = vadd.f32 %v1156, %v1247
        %v1313 = vadd.f32 %v1157, %v1250
        %v1314 = vadd.f32 %v1158, %v1253
        %v1315 = vadd.f32 %v1159, %v1256
        %v1316 = vadd.f32 %v1160, %v1259
        %v1317 = vadd.f32 %v1161, %v1262
        %v1318 = vadd.f32 %v1162, %v1265
        %v1319 = vadd.f32 %v1163, %v1268
        %v1320 = vadd.f32 %v1164, %v1271
        %v1321 = vadd.f32 %v1165, %v1274
        %v1322 = vadd.f32 %v1166, %v1277
        %v1323 = vadd.f32 %v1167, %v1280
        %v1324 = vadd.f32 %v1168, %v1283
        %v1325 = vadd.f32 %v1169, %v1286
        %v1326 = vadd.f32 %v1170, %v1289
        %v1327 = vadd.f32 %v1171, %v1292
        %v1328 = vadd.f32 %v1172, %v1295
        %v1330 = vrot.slane %v378, 1
        %v1331 = vrot.slane %v379, 1
        %v1332 = vsel %vm433, %v1330, %v1331
        %v1333 = vrot.slane %v380, 1
        %v1334 = vsel %vm433, %v1331, %v1333
        %s1335 = scalar_lea.vmem %s1, 16
        %v1336 = vld [vmem:[%s1335] sm:$0x7]
        %v1337 = vsel %vm516, %v1332, 0
        %v1339 = vsel %vm516, %v1334, 0
        %v1342 = vsel %vm581, %v1336, 0
        %1344 = vmatpush.msra.mxu0 0.0
        %1345 = vmatpush.msra.mxu0 0.0
        %1346 = vmatpush.msra.mxu0 0.0
        %1347 = vmatpush.msra.mxu0 0.0
        %1348 = vmatpush.msra.mxu0 0.0
        %1349 = vmatpush.msra.mxu0 0.0
        %1350 = vmatpush.msra.mxu0 0.0
        %1351 = vmatpush.msra.mxu0 0.0
        %1352 = vmatpush.msra.mxu0 0.0
        %1353 = vmatpush.msra.mxu0 0.0
        %1354 = vmatpush.msra.mxu0 0.0
        %1355 = vmatpush.msra.mxu0 0.0
        %1356 = vmatpush.msra.mxu0 0.0
        %1357 = vmatpush.msra.mxu0 0.0
        %1358 = vmatpush.msra.mxu0 0.0
        %1359 = vmatpush.msra.mxu0 %v1342
        %1360 = vmatmul.f32.gmra.mxu0 %v521
        %v1361 = vpop.f32.mrf.mxu0
        %v1362 = vadd.f32 0.0, %v1361
        %1363 = vmatmul.f32.gmra.mxu0 %v523
        %v1364 = vpop.f32.mrf.mxu0
        %v1365 = vadd.f32 0.0, %v1364
        %1366 = vmatmul.f32.gmra.mxu0 %v525
        %v1367 = vpop.f32.mrf.mxu0
        %v1368 = vadd.f32 0.0, %v1367
        %1369 = vmatmul.f32.gmra.mxu0 %v527
        %v1370 = vpop.f32.mrf.mxu0
        %v1371 = vadd.f32 0.0, %v1370
        %1372 = vmatmul.f32.gmra.mxu0 %v529
        %v1373 = vpop.f32.mrf.mxu0
        %v1374 = vadd.f32 0.0, %v1373
        %1375 = vmatmul.f32.gmra.mxu0 %v531
        %v1376 = vpop.f32.mrf.mxu0
        %v1377 = vadd.f32 0.0, %v1376
        %1378 = vmatmul.f32.gmra.mxu0 %v533
        %v1379 = vpop.f32.mrf.mxu0
        %v1380 = vadd.f32 0.0, %v1379
        %1381 = vmatmul.f32.gmra.mxu0 %v535
        %v1382 = vpop.f32.mrf.mxu0
        %v1383 = vadd.f32 0.0, %v1382
        %1384 = vmatmul.f32.gmra.mxu0 %v537
        %v1385 = vpop.f32.mrf.mxu0
        %v1386 = vadd.f32 0.0, %v1385
        %1387 = vmatmul.f32.gmra.mxu0 %v539
        %v1388 = vpop.f32.mrf.mxu0
        %v1389 = vadd.f32 0.0, %v1388
        %1390 = vmatmul.f32.gmra.mxu0 %v541
        %v1391 = vpop.f32.mrf.mxu0
        %v1392 = vadd.f32 0.0, %v1391
        %1393 = vmatmul.f32.gmra.mxu0 %v543
        %v1394 = vpop.f32.mrf.mxu0
        %v1395 = vadd.f32 0.0, %v1394
        %1396 = vmatmul.f32.gmra.mxu0 %v545
        %v1397 = vpop.f32.mrf.mxu0
        %v1398 = vadd.f32 0.0, %v1397
        %1399 = vmatmul.f32.gmra.mxu0 %v547
        %v1400 = vpop.f32.mrf.mxu0
        %v1401 = vadd.f32 0.0, %v1400
        %1402 = vmatmul.f32.gmra.mxu0 %v549
        %v1403 = vpop.f32.mrf.mxu0
        %v1404 = vadd.f32 0.0, %v1403
        %1405 = vmatmul.f32.gmra.mxu0 %v551
        %v1406 = vpop.f32.mrf.mxu0
        %v1407 = vadd.f32 0.0, %v1406
        %1408 = vmatmul.f32.gmra.mxu0 %v553
        %v1409 = vpop.f32.mrf.mxu0
        %v1410 = vadd.f32 0.0, %v1409
        %1411 = vmatmul.f32.gmra.mxu0 %v555
        %v1412 = vpop.f32.mrf.mxu0
        %v1413 = vadd.f32 0.0, %v1412
        %1414 = vmatmul.f32.gmra.mxu0 %v557
        %v1415 = vpop.f32.mrf.mxu0
        %v1416 = vadd.f32 0.0, %v1415
        %1417 = vmatmul.f32.gmra.mxu0 %v559
        %v1418 = vpop.f32.mrf.mxu0
        %v1419 = vadd.f32 0.0, %v1418
        %1420 = vmatmul.f32.gmra.mxu0 %v561
        %v1421 = vpop.f32.mrf.mxu0
        %v1422 = vadd.f32 0.0, %v1421
        %1423 = vmatmul.f32.gmra.mxu0 %v563
        %v1424 = vpop.f32.mrf.mxu0
        %v1425 = vadd.f32 0.0, %v1424
        %1426 = vmatmul.f32.gmra.mxu0 %v565
        %v1427 = vpop.f32.mrf.mxu0
        %v1428 = vadd.f32 0.0, %v1427
        %1429 = vmatmul.f32.gmra.mxu0 %v567
        %v1430 = vpop.f32.mrf.mxu0
        %v1431 = vadd.f32 0.0, %v1430
        %1432 = vmatmul.f32.gmra.mxu0 %v569
        %v1433 = vpop.f32.mrf.mxu0
        %v1434 = vadd.f32 0.0, %v1433
        %1435 = vmatmul.f32.gmra.mxu0 %v571
        %v1436 = vpop.f32.mrf.mxu0
        %v1437 = vadd.f32 0.0, %v1436
        %1438 = vmatmul.f32.gmra.mxu0 %v573
        %v1439 = vpop.f32.mrf.mxu0
        %v1440 = vadd.f32 0.0, %v1439
        %1441 = vmatmul.f32.gmra.mxu0 %v575
        %v1442 = vpop.f32.mrf.mxu0
        %v1443 = vadd.f32 0.0, %v1442
        %1444 = vmatmul.f32.gmra.mxu0 %v577
        %v1445 = vpop.f32.mrf.mxu0
        %v1446 = vadd.f32 0.0, %v1445
        %1447 = vmatmul.f32.gmra.mxu0 %v579
        %v1448 = vpop.f32.mrf.mxu0
        %v1449 = vadd.f32 0.0, %v1448
        %1450 = vmatmul.f32.gmra.mxu0 %v1337
        %v1451 = vpop.f32.mrf.mxu0
        %v1452 = vadd.f32 0.0, %v1451
        %1453 = vmatmul.f32.gmra.mxu0 %v1339
        %v1454 = vpop.f32.mrf.mxu0
        %v1455 = vadd.f32 0.0, %v1454
        %1456 = vdwg.mxu0
        %v1457 = vadd.f32 %v1297, %v1362
        %v1458 = vadd.f32 %v1298, %v1365
        %v1459 = vadd.f32 %v1299, %v1368
        %v1460 = vadd.f32 %v1300, %v1371
        %v1461 = vadd.f32 %v1301, %v1374
        %v1462 = vadd.f32 %v1302, %v1377
        %v1463 = vadd.f32 %v1303, %v1380
        %v1464 = vadd.f32 %v1304, %v1383
        %v1465 = vadd.f32 %v1305, %v1386
        %v1466 = vadd.f32 %v1306, %v1389
        %v1467 = vadd.f32 %v1307, %v1392
        %v1468 = vadd.f32 %v1308, %v1395
        %v1469 = vadd.f32 %v1309, %v1398
        %v1470 = vadd.f32 %v1310, %v1401
        %v1471 = vadd.f32 %v1311, %v1404
        %v1472 = vadd.f32 %v1312, %v1407
        %v1473 = vadd.f32 %v1313, %v1410
        %v1474 = vadd.f32 %v1314, %v1413
        %v1475 = vadd.f32 %v1315, %v1416
        %v1476 = vadd.f32 %v1316, %v1419
        %v1477 = vadd.f32 %v1317, %v1422
        %v1478 = vadd.f32 %v1318, %v1425
        %v1479 = vadd.f32 %v1319, %v1428
        %v1480 = vadd.f32 %v1320, %v1431
        %v1481 = vadd.f32 %v1321, %v1434
        %v1482 = vadd.f32 %v1322, %v1437
        %v1483 = vadd.f32 %v1323, %v1440
        %v1484 = vadd.f32 %v1324, %v1443
        %v1485 = vadd.f32 %v1325, %v1446
        %v1486 = vadd.f32 %v1326, %v1449
        %v1487 = vadd.f32 %v1327, %v1452
        %v1488 = vadd.f32 %v1328, %v1455
        %v1489 = vrot.slane %v378, 2
        %v1490 = vrot.slane %v379, 2
        %v1491 = vsel %vm878, %v1489, %v1490
        %v1492 = vrot.slane %v380, 2
        %v1493 = vsel %vm878, %v1490, %v1492
        %s1494 = scalar_lea.vmem %s1, 20
        %v1495 = vld [vmem:[%s1494] sm:$0x7]
        %v1496 = vsel %vm516, %v1491, 0
        %v1498 = vsel %vm516, %v1493, 0
        %v1501 = vsel %vm581, %v1495, 0
        %1503 = vmatpush.msra.mxu0 0.0
        %1504 = vmatpush.msra.mxu0 0.0
        %1505 = vmatpush.msra.mxu0 0.0
        %1506 = vmatpush.msra.mxu0 0.0
        %1507 = vmatpush.msra.mxu0 0.0
        %1508 = vmatpush.msra.mxu0 0.0
        %1509 = vmatpush.msra.mxu0 0.0
        %1510 = vmatpush.msra.mxu0 0.0
        %1511 = vmatpush.msra.mxu0 0.0
        %1512 = vmatpush.msra.mxu0 0.0
        %1513 = vmatpush.msra.mxu0 0.0
        %1514 = vmatpush.msra.mxu0 0.0
        %1515 = vmatpush.msra.mxu0 0.0
        %1516 = vmatpush.msra.mxu0 0.0
        %1517 = vmatpush.msra.mxu0 0.0
        %1518 = vmatpush.msra.mxu0 %v1501
        %1519 = vmatmul.f32.gmra.mxu0 %v965
        %v1520 = vpop.f32.mrf.mxu0
        %v1521 = vadd.f32 0.0, %v1520
        %1522 = vmatmul.f32.gmra.mxu0 %v967
        %v1523 = vpop.f32.mrf.mxu0
        %v1524 = vadd.f32 0.0, %v1523
        %1525 = vmatmul.f32.gmra.mxu0 %v969
        %v1526 = vpop.f32.mrf.mxu0
        %v1527 = vadd.f32 0.0, %v1526
        %1528 = vmatmul.f32.gmra.mxu0 %v971
        %v1529 = vpop.f32.mrf.mxu0
        %v1530 = vadd.f32 0.0, %v1529
        %1531 = vmatmul.f32.gmra.mxu0 %v973
        %v1532 = vpop.f32.mrf.mxu0
        %v1533 = vadd.f32 0.0, %v1532
        %1534 = vmatmul.f32.gmra.mxu0 %v975
        %v1535 = vpop.f32.mrf.mxu0
        %v1536 = vadd.f32 0.0, %v1535
        %1537 = vmatmul.f32.gmra.mxu0 %v977
        %v1538 = vpop.f32.mrf.mxu0
        %v1539 = vadd.f32 0.0, %v1538
        %1540 = vmatmul.f32.gmra.mxu0 %v979
        %v1541 = vpop.f32.mrf.mxu0
        %v1542 = vadd.f32 0.0, %v1541
        %1543 = vmatmul.f32.gmra.mxu0 %v981
        %v1544 = vpop.f32.mrf.mxu0
        %v1545 = vadd.f32 0.0, %v1544
        %1546 = vmatmul.f32.gmra.mxu0 %v983
        %v1547 = vpop.f32.mrf.mxu0
        %v1548 = vadd.f32 0.0, %v1547
        %1549 = vmatmul.f32.gmra.mxu0 %v985
        %v1550 = vpop.f32.mrf.mxu0
        %v1551 = vadd.f32 0.0, %v1550
        %1552 = vmatmul.f32.gmra.mxu0 %v987
        %v1553 = vpop.f32.mrf.mxu0
        %v1554 = vadd.f32 0.0, %v1553
        %1555 = vmatmul.f32.gmra.mxu0 %v989
        %v1556 = vpop.f32.mrf.mxu0
        %v1557 = vadd.f32 0.0, %v1556
        %1558 = vmatmul.f32.gmra.mxu0 %v991
        %v1559 = vpop.f32.mrf.mxu0
        %v1560 = vadd.f32 0.0, %v1559
        %1561 = vmatmul.f32.gmra.mxu0 %v993
        %v1562 = vpop.f32.mrf.mxu0
        %v1563 = vadd.f32 0.0, %v1562
        %1564 = vmatmul.f32.gmra.mxu0 %v995
        %v1565 = vpop.f32.mrf.mxu0
        %v1566 = vadd.f32 0.0, %v1565
        %1567 = vmatmul.f32.gmra.mxu0 %v997
        %v1568 = vpop.f32.mrf.mxu0
        %v1569 = vadd.f32 0.0, %v1568
        %1570 = vmatmul.f32.gmra.mxu0 %v999
        %v1571 = vpop.f32.mrf.mxu0
        %v1572 = vadd.f32 0.0, %v1571
        %1573 = vmatmul.f32.gmra.mxu0 %v1001
        %v1574 = vpop.f32.mrf.mxu0
        %v1575 = vadd.f32 0.0, %v1574
        %1576 = vmatmul.f32.gmra.mxu0 %v1003
        %v1577 = vpop.f32.mrf.mxu0
        %v1578 = vadd.f32 0.0, %v1577
        %1579 = vmatmul.f32.gmra.mxu0 %v1005
        %v1580 = vpop.f32.mrf.mxu0
        %v1581 = vadd.f32 0.0, %v1580
        %1582 = vmatmul.f32.gmra.mxu0 %v1007
        %v1583 = vpop.f32.mrf.mxu0
        %v1584 = vadd.f32 0.0, %v1583
        %1585 = vmatmul.f32.gmra.mxu0 %v1009
        %v1586 = vpop.f32.mrf.mxu0
        %v1587 = vadd.f32 0.0, %v1586
        %1588 = vmatmul.f32.gmra.mxu0 %v1011
        %v1589 = vpop.f32.mrf.mxu0
        %v1590 = vadd.f32 0.0, %v1589
        %1591 = vmatmul.f32.gmra.mxu0 %v1013
        %v1592 = vpop.f32.mrf.mxu0
        %v1593 = vadd.f32 0.0, %v1592
        %1594 = vmatmul.f32.gmra.mxu0 %v1015
        %v1595 = vpop.f32.mrf.mxu0
        %v1596 = vadd.f32 0.0, %v1595
        %1597 = vmatmul.f32.gmra.mxu0 %v1017
        %v1598 = vpop.f32.mrf.mxu0
        %v1599 = vadd.f32 0.0, %v1598
        %1600 = vmatmul.f32.gmra.mxu0 %v1019
        %v1601 = vpop.f32.mrf.mxu0
        %v1602 = vadd.f32 0.0, %v1601
        %1603 = vmatmul.f32.gmra.mxu0 %v1021
        %v1604 = vpop.f32.mrf.mxu0
        %v1605 = vadd.f32 0.0, %v1604
        %1606 = vmatmul.f32.gmra.mxu0 %v1023
        %v1607 = vpop.f32.mrf.mxu0
        %v1608 = vadd.f32 0.0, %v1607
        %1609 = vmatmul.f32.gmra.mxu0 %v1496
        %v1610 = vpop.f32.mrf.mxu0
        %v1611 = vadd.f32 0.0, %v1610
        %1612 = vmatmul.f32.gmra.mxu0 %v1498
        %v1613 = vpop.f32.mrf.mxu0
        %v1614 = vadd.f32 0.0, %v1613
        %1615 = vdwg.mxu0
        %v1616 = vadd.f32 %v1457, %v1521
        %v1617 = vadd.f32 %v1458, %v1524
        %v1618 = vadd.f32 %v1459, %v1527
        %v1619 = vadd.f32 %v1460, %v1530
        %v1620 = vadd.f32 %v1461, %v1533
        %v1621 = vadd.f32 %v1462, %v1536
        %v1622 = vadd.f32 %v1463, %v1539
        %v1623 = vadd.f32 %v1464, %v1542
        %v1624 = vadd.f32 %v1465, %v1545
        %v1625 = vadd.f32 %v1466, %v1548
        %v1626 = vadd.f32 %v1467, %v1551
        %v1627 = vadd.f32 %v1468, %v1554
        %v1628 = vadd.f32 %v1469, %v1557
        %v1629 = vadd.f32 %v1470, %v1560
        %v1630 = vadd.f32 %v1471, %v1563
        %v1631 = vadd.f32 %v1472, %v1566
        %v1632 = vadd.f32 %v1473, %v1569
        %v1633 = vadd.f32 %v1474, %v1572
        %v1634 = vadd.f32 %v1475, %v1575
        %v1635 = vadd.f32 %v1476, %v1578
        %v1636 = vadd.f32 %v1477, %v1581
        %v1637 = vadd.f32 %v1478, %v1584
        %v1638 = vadd.f32 %v1479, %v1587
        %v1639 = vadd.f32 %v1480, %v1590
        %v1640 = vadd.f32 %v1481, %v1593
        %v1641 = vadd.f32 %v1482, %v1596
        %v1642 = vadd.f32 %v1483, %v1599
        %v1643 = vadd.f32 %v1484, %v1602
        %v1644 = vadd.f32 %v1485, %v1605
        %v1645 = vadd.f32 %v1486, %v1608
        %v1646 = vadd.f32 %v1487, %v1611
        %v1647 = vadd.f32 %v1488, %v1614
        %s1648 = scalar_lea.vmem %s1, 24
        %v1649 = vld [vmem:[%s1648] sm:$0x7]
        %v1651 = vsel %vm516, %v381, 0
        %v1654 = vsel %vm516, %v382, 0
        %v1657 = vsel %vm581, %v1649, 0
        %1659 = vmatpush.msra.mxu0 0.0
        %1660 = vmatpush.msra.mxu0 0.0
        %1661 = vmatpush.msra.mxu0 0.0
        %1662 = vmatpush.msra.mxu0 0.0
        %1663 = vmatpush.msra.mxu0 0.0
        %1664 = vmatpush.msra.mxu0 0.0
        %1665 = vmatpush.msra.mxu0 0.0
        %1666 = vmatpush.msra.mxu0 0.0
        %1667 = vmatpush.msra.mxu0 0.0
        %1668 = vmatpush.msra.mxu0 0.0
        %1669 = vmatpush.msra.mxu0 0.0
        %1670 = vmatpush.msra.mxu0 0.0
        %1671 = vmatpush.msra.mxu0 0.0
        %1672 = vmatpush.msra.mxu0 0.0
        %1673 = vmatpush.msra.mxu0 0.0
        %1674 = vmatpush.msra.mxu0 %v1657
        %1675 = vmatmul.f32.gmra.mxu0 %v706
        %v1676 = vpop.f32.mrf.mxu0
        %v1677 = vadd.f32 0.0, %v1676
        %1678 = vmatmul.f32.gmra.mxu0 %v708
        %v1679 = vpop.f32.mrf.mxu0
        %v1680 = vadd.f32 0.0, %v1679
        %1681 = vmatmul.f32.gmra.mxu0 %v710
        %v1682 = vpop.f32.mrf.mxu0
        %v1683 = vadd.f32 0.0, %v1682
        %1684 = vmatmul.f32.gmra.mxu0 %v712
        %v1685 = vpop.f32.mrf.mxu0
        %v1686 = vadd.f32 0.0, %v1685
        %1687 = vmatmul.f32.gmra.mxu0 %v714
        %v1688 = vpop.f32.mrf.mxu0
        %v1689 = vadd.f32 0.0, %v1688
        %1690 = vmatmul.f32.gmra.mxu0 %v716
        %v1691 = vpop.f32.mrf.mxu0
        %v1692 = vadd.f32 0.0, %v1691
        %1693 = vmatmul.f32.gmra.mxu0 %v718
        %v1694 = vpop.f32.mrf.mxu0
        %v1695 = vadd.f32 0.0, %v1694
        %1696 = vmatmul.f32.gmra.mxu0 %v720
        %v1697 = vpop.f32.mrf.mxu0
        %v1698 = vadd.f32 0.0, %v1697
        %1699 = vmatmul.f32.gmra.mxu0 %v722
        %v1700 = vpop.f32.mrf.mxu0
        %v1701 = vadd.f32 0.0, %v1700
        %1702 = vmatmul.f32.gmra.mxu0 %v724
        %v1703 = vpop.f32.mrf.mxu0
        %v1704 = vadd.f32 0.0, %v1703
        %1705 = vmatmul.f32.gmra.mxu0 %v726
        %v1706 = vpop.f32.mrf.mxu0
        %v1707 = vadd.f32 0.0, %v1706
        %1708 = vmatmul.f32.gmra.mxu0 %v728
        %v1709 = vpop.f32.mrf.mxu0
        %v1710 = vadd.f32 0.0, %v1709
        %1711 = vmatmul.f32.gmra.mxu0 %v730
        %v1712 = vpop.f32.mrf.mxu0
        %v1713 = vadd.f32 0.0, %v1712
        %1714 = vmatmul.f32.gmra.mxu0 %v732
        %v1715 = vpop.f32.mrf.mxu0
        %v1716 = vadd.f32 0.0, %v1715
        %1717 = vmatmul.f32.gmra.mxu0 %v734
        %v1718 = vpop.f32.mrf.mxu0
        %v1719 = vadd.f32 0.0, %v1718
        %1720 = vmatmul.f32.gmra.mxu0 %v736
        %v1721 = vpop.f32.mrf.mxu0
        %v1722 = vadd.f32 0.0, %v1721
        %1723 = vmatmul.f32.gmra.mxu0 %v738
        %v1724 = vpop.f32.mrf.mxu0
        %v1725 = vadd.f32 0.0, %v1724
        %1726 = vmatmul.f32.gmra.mxu0 %v740
        %v1727 = vpop.f32.mrf.mxu0
        %v1728 = vadd.f32 0.0, %v1727
        %1729 = vmatmul.f32.gmra.mxu0 %v742
        %v1730 = vpop.f32.mrf.mxu0
        %v1731 = vadd.f32 0.0, %v1730
        %1732 = vmatmul.f32.gmra.mxu0 %v744
        %v1733 = vpop.f32.mrf.mxu0
        %v1734 = vadd.f32 0.0, %v1733
        %1735 = vmatmul.f32.gmra.mxu0 %v746
        %v1736 = vpop.f32.mrf.mxu0
        %v1737 = vadd.f32 0.0, %v1736
        %1738 = vmatmul.f32.gmra.mxu0 %v748
        %v1739 = vpop.f32.mrf.mxu0
        %v1740 = vadd.f32 0.0, %v1739
        %1741 = vmatmul.f32.gmra.mxu0 %v750
        %v1742 = vpop.f32.mrf.mxu0
        %v1743 = vadd.f32 0.0, %v1742
        %1744 = vmatmul.f32.gmra.mxu0 %v752
        %v1745 = vpop.f32.mrf.mxu0
        %v1746 = vadd.f32 0.0, %v1745
        %1747 = vmatmul.f32.gmra.mxu0 %v754
        %v1748 = vpop.f32.mrf.mxu0
        %v1749 = vadd.f32 0.0, %v1748
        %1750 = vmatmul.f32.gmra.mxu0 %v756
        %v1751 = vpop.f32.mrf.mxu0
        %v1752 = vadd.f32 0.0, %v1751
        %1753 = vmatmul.f32.gmra.mxu0 %v758
        %v1754 = vpop.f32.mrf.mxu0
        %v1755 = vadd.f32 0.0, %v1754
        %1756 = vmatmul.f32.gmra.mxu0 %v760
        %v1757 = vpop.f32.mrf.mxu0
        %v1758 = vadd.f32 0.0, %v1757
        %1759 = vmatmul.f32.gmra.mxu0 %v1176
        %v1760 = vpop.f32.mrf.mxu0
        %v1761 = vadd.f32 0.0, %v1760
        %1762 = vmatmul.f32.gmra.mxu0 %v1179
        %v1763 = vpop.f32.mrf.mxu0
        %v1764 = vadd.f32 0.0, %v1763
        %1765 = vmatmul.f32.gmra.mxu0 %v1651
        %v1766 = vpop.f32.mrf.mxu0
        %v1767 = vadd.f32 0.0, %v1766
        %1768 = vmatmul.f32.gmra.mxu0 %v1654
        %v1769 = vpop.f32.mrf.mxu0
        %v1770 = vadd.f32 0.0, %v1769
        %1771 = vdwg.mxu0
        %v1772 = vadd.f32 %v1616, %v1677
        %v1773 = vadd.f32 %v1617, %v1680
        %v1774 = vadd.f32 %v1618, %v1683
        %v1775 = vadd.f32 %v1619, %v1686
        %v1776 = vadd.f32 %v1620, %v1689
        %v1777 = vadd.f32 %v1621, %v1692
        %v1778 = vadd.f32 %v1622, %v1695
        %v1779 = vadd.f32 %v1623, %v1698
        %v1780 = vadd.f32 %v1624, %v1701
        %v1781 = vadd.f32 %v1625, %v1704
        %v1782 = vadd.f32 %v1626, %v1707
        %v1783 = vadd.f32 %v1627, %v1710
        %v1784 = vadd.f32 %v1628, %v1713
        %v1785 = vadd.f32 %v1629, %v1716
        %v1786 = vadd.f32 %v1630, %v1719
        %v1787 = vadd.f32 %v1631, %v1722
        %v1788 = vadd.f32 %v1632, %v1725
        %v1789 = vadd.f32 %v1633, %v1728
        %v1790 = vadd.f32 %v1634, %v1731
        %v1791 = vadd.f32 %v1635, %v1734
        %v1792 = vadd.f32 %v1636, %v1737
        %v1793 = vadd.f32 %v1637, %v1740
        %v1794 = vadd.f32 %v1638, %v1743
        %v1795 = vadd.f32 %v1639, %v1746
        %v1796 = vadd.f32 %v1640, %v1749
        %v1797 = vadd.f32 %v1641, %v1752
        %v1798 = vadd.f32 %v1642, %v1755
        %v1799 = vadd.f32 %v1643, %v1758
        %v1800 = vadd.f32 %v1644, %v1761
        %v1801 = vadd.f32 %v1645, %v1764
        %v1802 = vadd.f32 %v1646, %v1767
        %v1803 = vadd.f32 %v1647, %v1770
        %v1805 = vrot.slane %v381, 1
        %v1806 = vrot.slane %v382, 1
        %v1807 = vsel %vm433, %v1805, %v1806
        %v1808 = vrot.slane %v383, 1
        %v1809 = vsel %vm433, %v1806, %v1808
        %s1810 = scalar_lea.vmem %s1, 28
        %v1811 = vld [vmem:[%s1810] sm:$0x7]
        %v1812 = vsel %vm516, %v1807, 0
        %v1814 = vsel %vm516, %v1809, 0
        %v1817 = vsel %vm581, %v1811, 0
        %1819 = vmatpush.msra.mxu0 0.0
        %1820 = vmatpush.msra.mxu0 0.0
        %1821 = vmatpush.msra.mxu0 0.0
        %1822 = vmatpush.msra.mxu0 0.0
        %1823 = vmatpush.msra.mxu0 0.0
        %1824 = vmatpush.msra.mxu0 0.0
        %1825 = vmatpush.msra.mxu0 0.0
        %1826 = vmatpush.msra.mxu0 0.0
        %1827 = vmatpush.msra.mxu0 0.0
        %1828 = vmatpush.msra.mxu0 0.0
        %1829 = vmatpush.msra.mxu0 0.0
        %1830 = vmatpush.msra.mxu0 0.0
        %1831 = vmatpush.msra.mxu0 0.0
        %1832 = vmatpush.msra.mxu0 0.0
        %1833 = vmatpush.msra.mxu0 0.0
        %1834 = vmatpush.msra.mxu0 %v1817
        %1835 = vmatmul.f32.gmra.mxu0 %v525
        %v1836 = vpop.f32.mrf.mxu0
        %v1837 = vadd.f32 0.0, %v1836
        %1838 = vmatmul.f32.gmra.mxu0 %v527
        %v1839 = vpop.f32.mrf.mxu0
        %v1840 = vadd.f32 0.0, %v1839
        %1841 = vmatmul.f32.gmra.mxu0 %v529
        %v1842 = vpop.f32.mrf.mxu0
        %v1843 = vadd.f32 0.0, %v1842
        %1844 = vmatmul.f32.gmra.mxu0 %v531
        %v1845 = vpop.f32.mrf.mxu0
        %v1846 = vadd.f32 0.0, %v1845
        %1847 = vmatmul.f32.gmra.mxu0 %v533
        %v1848 = vpop.f32.mrf.mxu0
        %v1849 = vadd.f32 0.0, %v1848
        %1850 = vmatmul.f32.gmra.mxu0 %v535
        %v1851 = vpop.f32.mrf.mxu0
        %v1852 = vadd.f32 0.0, %v1851
        %1853 = vmatmul.f32.gmra.mxu0 %v537
        %v1854 = vpop.f32.mrf.mxu0
        %v1855 = vadd.f32 0.0, %v1854
        %1856 = vmatmul.f32.gmra.mxu0 %v539
        %v1857 = vpop.f32.mrf.mxu0
        %v1858 = vadd.f32 0.0, %v1857
        %1859 = vmatmul.f32.gmra.mxu0 %v541
        %v1860 = vpop.f32.mrf.mxu0
        %v1861 = vadd.f32 0.0, %v1860
        %1862 = vmatmul.f32.gmra.mxu0 %v543
        %v1863 = vpop.f32.mrf.mxu0
        %v1864 = vadd.f32 0.0, %v1863
        %1865 = vmatmul.f32.gmra.mxu0 %v545
        %v1866 = vpop.f32.mrf.mxu0
        %v1867 = vadd.f32 0.0, %v1866
        %1868 = vmatmul.f32.gmra.mxu0 %v547
        %v1869 = vpop.f32.mrf.mxu0
        %v1870 = vadd.f32 0.0, %v1869
        %1871 = vmatmul.f32.gmra.mxu0 %v549
        %v1872 = vpop.f32.mrf.mxu0
        %v1873 = vadd.f32 0.0, %v1872
        %1874 = vmatmul.f32.gmra.mxu0 %v551
        %v1875 = vpop.f32.mrf.mxu0
        %v1876 = vadd.f32 0.0, %v1875
        %1877 = vmatmul.f32.gmra.mxu0 %v553
        %v1878 = vpop.f32.mrf.mxu0
        %v1879 = vadd.f32 0.0, %v1878
        %1880 = vmatmul.f32.gmra.mxu0 %v555
        %v1881 = vpop.f32.mrf.mxu0
        %v1882 = vadd.f32 0.0, %v1881
        %1883 = vmatmul.f32.gmra.mxu0 %v557
        %v1884 = vpop.f32.mrf.mxu0
        %v1885 = vadd.f32 0.0, %v1884
        %1886 = vmatmul.f32.gmra.mxu0 %v559
        %v1887 = vpop.f32.mrf.mxu0
        %v1888 = vadd.f32 0.0, %v1887
        %1889 = vmatmul.f32.gmra.mxu0 %v561
        %v1890 = vpop.f32.mrf.mxu0
        %v1891 = vadd.f32 0.0, %v1890
        %1892 = vmatmul.f32.gmra.mxu0 %v563
        %v1893 = vpop.f32.mrf.mxu0
        %v1894 = vadd.f32 0.0, %v1893
        %1895 = vmatmul.f32.gmra.mxu0 %v565
        %v1896 = vpop.f32.mrf.mxu0
        %v1897 = vadd.f32 0.0, %v1896
        %1898 = vmatmul.f32.gmra.mxu0 %v567
        %v1899 = vpop.f32.mrf.mxu0
        %v1900 = vadd.f32 0.0, %v1899
        %1901 = vmatmul.f32.gmra.mxu0 %v569
        %v1902 = vpop.f32.mrf.mxu0
        %v1903 = vadd.f32 0.0, %v1902
        %1904 = vmatmul.f32.gmra.mxu0 %v571
        %v1905 = vpop.f32.mrf.mxu0
        %v1906 = vadd.f32 0.0, %v1905
        %1907 = vmatmul.f32.gmra.mxu0 %v573
        %v1908 = vpop.f32.mrf.mxu0
        %v1909 = vadd.f32 0.0, %v1908
        %1910 = vmatmul.f32.gmra.mxu0 %v575
        %v1911 = vpop.f32.mrf.mxu0
        %v1912 = vadd.f32 0.0, %v1911
        %1913 = vmatmul.f32.gmra.mxu0 %v577
        %v1914 = vpop.f32.mrf.mxu0
        %v1915 = vadd.f32 0.0, %v1914
        %1916 = vmatmul.f32.gmra.mxu0 %v579
        %v1917 = vpop.f32.mrf.mxu0
        %v1918 = vadd.f32 0.0, %v1917
        %1919 = vmatmul.f32.gmra.mxu0 %v1337
        %v1920 = vpop.f32.mrf.mxu0
        %v1921 = vadd.f32 0.0, %v1920
        %1922 = vmatmul.f32.gmra.mxu0 %v1339
        %v1923 = vpop.f32.mrf.mxu0
        %v1924 = vadd.f32 0.0, %v1923
        %1925 = vmatmul.f32.gmra.mxu0 %v1812
        %v1926 = vpop.f32.mrf.mxu0
        %v1927 = vadd.f32 0.0, %v1926
        %1928 = vmatmul.f32.gmra.mxu0 %v1814
        %v1929 = vpop.f32.mrf.mxu0
        %v1930 = vadd.f32 0.0, %v1929
        %1931 = vdwg.mxu0
        %v1932 = vadd.f32 %v1772, %v1837
        %v1933 = vadd.f32 %v1773, %v1840
        %v1934 = vadd.f32 %v1774, %v1843
        %v1935 = vadd.f32 %v1775, %v1846
        %v1936 = vadd.f32 %v1776, %v1849
        %v1937 = vadd.f32 %v1777, %v1852
        %v1938 = vadd.f32 %v1778, %v1855
        %v1939 = vadd.f32 %v1779, %v1858
        %v1940 = vadd.f32 %v1780, %v1861
        %v1941 = vadd.f32 %v1781, %v1864
        %v1942 = vadd.f32 %v1782, %v1867
        %v1943 = vadd.f32 %v1783, %v1870
        %v1944 = vadd.f32 %v1784, %v1873
        %v1945 = vadd.f32 %v1785, %v1876
        %v1946 = vadd.f32 %v1786, %v1879
        %v1947 = vadd.f32 %v1787, %v1882
        %v1948 = vadd.f32 %v1788, %v1885
        %v1949 = vadd.f32 %v1789, %v1888
        %v1950 = vadd.f32 %v1790, %v1891
        %v1951 = vadd.f32 %v1791, %v1894
        %v1952 = vadd.f32 %v1792, %v1897
        %v1953 = vadd.f32 %v1793, %v1900
        %v1954 = vadd.f32 %v1794, %v1903
        %v1955 = vadd.f32 %v1795, %v1906
        %v1956 = vadd.f32 %v1796, %v1909
        %v1957 = vadd.f32 %v1797, %v1912
        %v1958 = vadd.f32 %v1798, %v1915
        %v1959 = vadd.f32 %v1799, %v1918
        %v1960 = vadd.f32 %v1800, %v1921
        %v1961 = vadd.f32 %v1801, %v1924
        %v1962 = vadd.f32 %v1802, %v1927
        %v1963 = vadd.f32 %v1803, %v1930
        %v1964 = vrot.slane %v381, 2
        %v1965 = vrot.slane %v382, 2
        %v1966 = vsel %vm878, %v1964, %v1965
        %v1967 = vrot.slane %v383, 2
        %v1968 = vsel %vm878, %v1965, %v1967
        %s1969 = scalar_lea.vmem %s1, 32
        %v1970 = vld [vmem:[%s1969] sm:$0x7]
        %v1971 = vsel %vm516, %v1966, 0
        %v1973 = vsel %vm516, %v1968, 0
        %v1976 = vsel %vm581, %v1970, 0
        %1978 = vmatpush.msra.mxu0 0.0
        %1979 = vmatpush.msra.mxu0 0.0
        %1980 = vmatpush.msra.mxu0 0.0
        %1981 = vmatpush.msra.mxu0 0.0
        %1982 = vmatpush.msra.mxu0 0.0
        %1983 = vmatpush.msra.mxu0 0.0
        %1984 = vmatpush.msra.mxu0 0.0
        %1985 = vmatpush.msra.mxu0 0.0
        %1986 = vmatpush.msra.mxu0 0.0
        %1987 = vmatpush.msra.mxu0 0.0
        %1988 = vmatpush.msra.mxu0 0.0
        %1989 = vmatpush.msra.mxu0 0.0
        %1990 = vmatpush.msra.mxu0 0.0
        %1991 = vmatpush.msra.mxu0 0.0
        %1992 = vmatpush.msra.mxu0 0.0
        %1993 = vmatpush.msra.mxu0 %v1976
        %1994 = vmatmul.f32.gmra.mxu0 %v969
        %v1995 = vpop.f32.mrf.mxu0
        %v1996 = vadd.f32 0.0, %v1995
        %1997 = vmatmul.f32.gmra.mxu0 %v971
        %v1998 = vpop.f32.mrf.mxu0
        %v1999 = vadd.f32 0.0, %v1998
        %2000 = vmatmul.f32.gmra.mxu0 %v973
        %v2001 = vpop.f32.mrf.mxu0
        %v2002 = vadd.f32 0.0, %v2001
        %2003 = vmatmul.f32.gmra.mxu0 %v975
        %v2004 = vpop.f32.mrf.mxu0
        %v2005 = vadd.f32 0.0, %v2004
        %2006 = vmatmul.f32.gmra.mxu0 %v977
        %v2007 = vpop.f32.mrf.mxu0
        %v2008 = vadd.f32 0.0, %v2007
        %2009 = vmatmul.f32.gmra.mxu0 %v979
        %v2010 = vpop.f32.mrf.mxu0
        %v2011 = vadd.f32 0.0, %v2010
        %2012 = vmatmul.f32.gmra.mxu0 %v981
        %v2013 = vpop.f32.mrf.mxu0
        %v2014 = vadd.f32 0.0, %v2013
        %2015 = vmatmul.f32.gmra.mxu0 %v983
        %v2016 = vpop.f32.mrf.mxu0
        %v2017 = vadd.f32 0.0, %v2016
        %2018 = vmatmul.f32.gmra.mxu0 %v985
        %v2019 = vpop.f32.mrf.mxu0
        %v2020 = vadd.f32 0.0, %v2019
        %2021 = vmatmul.f32.gmra.mxu0 %v987
        %v2022 = vpop.f32.mrf.mxu0
        %v2023 = vadd.f32 0.0, %v2022
        %2024 = vmatmul.f32.gmra.mxu0 %v989
        %v2025 = vpop.f32.mrf.mxu0
        %v2026 = vadd.f32 0.0, %v2025
        %2027 = vmatmul.f32.gmra.mxu0 %v991
        %v2028 = vpop.f32.mrf.mxu0
        %v2029 = vadd.f32 0.0, %v2028
        %2030 = vmatmul.f32.gmra.mxu0 %v993
        %v2031 = vpop.f32.mrf.mxu0
        %v2032 = vadd.f32 0.0, %v2031
        %2033 = vmatmul.f32.gmra.mxu0 %v995
        %v2034 = vpop.f32.mrf.mxu0
        %v2035 = vadd.f32 0.0, %v2034
        %2036 = vmatmul.f32.gmra.mxu0 %v997
        %v2037 = vpop.f32.mrf.mxu0
        %v2038 = vadd.f32 0.0, %v2037
        %2039 = vmatmul.f32.gmra.mxu0 %v999
        %v2040 = vpop.f32.mrf.mxu0
        %v2041 = vadd.f32 0.0, %v2040
        %2042 = vmatmul.f32.gmra.mxu0 %v1001
        %v2043 = vpop.f32.mrf.mxu0
        %v2044 = vadd.f32 0.0, %v2043
        %2045 = vmatmul.f32.gmra.mxu0 %v1003
        %v2046 = vpop.f32.mrf.mxu0
        %v2047 = vadd.f32 0.0, %v2046
        %2048 = vmatmul.f32.gmra.mxu0 %v1005
        %v2049 = vpop.f32.mrf.mxu0
        %v2050 = vadd.f32 0.0, %v2049
        %2051 = vmatmul.f32.gmra.mxu0 %v1007
        %v2052 = vpop.f32.mrf.mxu0
        %v2053 = vadd.f32 0.0, %v2052
        %2054 = vmatmul.f32.gmra.mxu0 %v1009
        %v2055 = vpop.f32.mrf.mxu0
        %v2056 = vadd.f32 0.0, %v2055
        %2057 = vmatmul.f32.gmra.mxu0 %v1011
        %v2058 = vpop.f32.mrf.mxu0
        %v2059 = vadd.f32 0.0, %v2058
        %2060 = vmatmul.f32.gmra.mxu0 %v1013
        %v2061 = vpop.f32.mrf.mxu0
        %v2062 = vadd.f32 0.0, %v2061
        %2063 = vmatmul.f32.gmra.mxu0 %v1015
        %v2064 = vpop.f32.mrf.mxu0
        %v2065 = vadd.f32 0.0, %v2064
        %2066 = vmatmul.f32.gmra.mxu0 %v1017
        %v2067 = vpop.f32.mrf.mxu0
        %v2068 = vadd.f32 0.0, %v2067
        %2069 = vmatmul.f32.gmra.mxu0 %v1019
        %v2070 = vpop.f32.mrf.mxu0
        %v2071 = vadd.f32 0.0, %v2070
        %2072 = vmatmul.f32.gmra.mxu0 %v1021
        %v2073 = vpop.f32.mrf.mxu0
        %v2074 = vadd.f32 0.0, %v2073
        %2075 = vmatmul.f32.gmra.mxu0 %v1023
        %v2076 = vpop.f32.mrf.mxu0
        %v2077 = vadd.f32 0.0, %v2076
        %2078 = vmatmul.f32.gmra.mxu0 %v1496
        %v2079 = vpop.f32.mrf.mxu0
        %v2080 = vadd.f32 0.0, %v2079
        %2081 = vmatmul.f32.gmra.mxu0 %v1498
        %v2082 = vpop.f32.mrf.mxu0
        %v2083 = vadd.f32 0.0, %v2082
        %2084 = vmatmul.f32.gmra.mxu0 %v1971
        %v2085 = vpop.f32.mrf.mxu0
        %v2086 = vadd.f32 0.0, %v2085
        %2087 = vmatmul.f32.gmra.mxu0 %v1973
        %v2088 = vpop.f32.mrf.mxu0
        %v2089 = vadd.f32 0.0, %v2088
        %2090 = vdwg.mxu0
        %v2091 = vadd.f32 %v1932, %v1996
        %v2092 = vadd.f32 %v1933, %v1999
        %v2093 = vadd.f32 %v1934, %v2002
        %v2094 = vadd.f32 %v1935, %v2005
        %v2095 = vadd.f32 %v1936, %v2008
        %v2096 = vadd.f32 %v1937, %v2011
        %v2097 = vadd.f32 %v1938, %v2014
        %v2098 = vadd.f32 %v1939, %v2017
        %v2099 = vadd.f32 %v1940, %v2020
        %v2100 = vadd.f32 %v1941, %v2023
        %v2101 = vadd.f32 %v1942, %v2026
        %v2102 = vadd.f32 %v1943, %v2029
        %v2103 = vadd.f32 %v1944, %v2032
        %v2104 = vadd.f32 %v1945, %v2035
        %v2105 = vadd.f32 %v1946, %v2038
        %v2106 = vadd.f32 %v1947, %v2041
        %v2107 = vadd.f32 %v1948, %v2044
        %v2108 = vadd.f32 %v1949, %v2047
        %v2109 = vadd.f32 %v1950, %v2050
        %v2110 = vadd.f32 %v1951, %v2053
        %v2111 = vadd.f32 %v1952, %v2056
        %v2112 = vadd.f32 %v1953, %v2059
        %v2113 = vadd.f32 %v1954, %v2062
        %v2114 = vadd.f32 %v1955, %v2065
        %v2115 = vadd.f32 %v1956, %v2068
        %v2116 = vadd.f32 %v1957, %v2071
        %v2117 = vadd.f32 %v1958, %v2074
        %v2118 = vadd.f32 %v1959, %v2077
        %v2119 = vadd.f32 %v1960, %v2080
        %v2120 = vadd.f32 %v1961, %v2083
        %v2121 = vadd.f32 %v1962, %v2086
        %v2122 = vadd.f32 %v1963, %v2089
        %v2123 = vld [vmem:[%s2] sm:$0x1]
        %v2125 = vperm.slane %v2123, 0
        %v2127 = vadd.f32 %v2091, %v2125
        %v2128 = vadd.f32 %v2092, %v2125
        %v2129 = vadd.f32 %v2093, %v2125
        %v2130 = vadd.f32 %v2094, %v2125
        %v2131 = vadd.f32 %v2095, %v2125
        %v2132 = vadd.f32 %v2096, %v2125
        %v2133 = vadd.f32 %v2097, %v2125
        %v2134 = vadd.f32 %v2098, %v2125
        %v2135 = vadd.f32 %v2099, %v2125
        %v2136 = vadd.f32 %v2100, %v2125
        %v2137 = vadd.f32 %v2101, %v2125
        %v2138 = vadd.f32 %v2102, %v2125
        %v2139 = vadd.f32 %v2103, %v2125
        %v2140 = vadd.f32 %v2104, %v2125
        %v2141 = vadd.f32 %v2105, %v2125
        %v2142 = vadd.f32 %v2106, %v2125
        %v2143 = vadd.f32 %v2107, %v2125
        %v2144 = vadd.f32 %v2108, %v2125
        %v2145 = vadd.f32 %v2109, %v2125
        %v2146 = vadd.f32 %v2110, %v2125
        %v2147 = vadd.f32 %v2111, %v2125
        %v2148 = vadd.f32 %v2112, %v2125
        %v2149 = vadd.f32 %v2113, %v2125
        %v2150 = vadd.f32 %v2114, %v2125
        %v2151 = vadd.f32 %v2115, %v2125
        %v2152 = vadd.f32 %v2116, %v2125
        %v2153 = vadd.f32 %v2117, %v2125
        %v2154 = vadd.f32 %v2118, %v2125
        %v2155 = vadd.f32 %v2119, %v2125
        %v2156 = vadd.f32 %v2120, %v2125
        %v2157 = vadd.f32 %v2121, %v2125
        %v2158 = vadd.f32 %v2122, %v2125
        %v2159 = vmax.f32 %v2127, 0.0
        %v2160 = vmax.f32 %v2128, 0.0
        %v2161 = vmax.f32 %v2129, 0.0
        %v2162 = vmax.f32 %v2130, 0.0
        %v2163 = vmax.f32 %v2131, 0.0
        %v2164 = vmax.f32 %v2132, 0.0
        %v2165 = vmax.f32 %v2133, 0.0
        %v2166 = vmax.f32 %v2134, 0.0
        %v2167 = vmax.f32 %v2135, 0.0
        %v2168 = vmax.f32 %v2136, 0.0
        %v2169 = vmax.f32 %v2137, 0.0
        %v2170 = vmax.f32 %v2138, 0.0
        %v2171 = vmax.f32 %v2139, 0.0
        %v2172 = vmax.f32 %v2140, 0.0
        %v2173 = vmax.f32 %v2141, 0.0
        %v2174 = vmax.f32 %v2142, 0.0
        %v2175 = vmax.f32 %v2143, 0.0
        %v2176 = vmax.f32 %v2144, 0.0
        %v2177 = vmax.f32 %v2145, 0.0
        %v2178 = vmax.f32 %v2146, 0.0
        %v2179 = vmax.f32 %v2147, 0.0
        %v2180 = vmax.f32 %v2148, 0.0
        %v2181 = vmax.f32 %v2149, 0.0
        %v2182 = vmax.f32 %v2150, 0.0
        %v2183 = vmax.f32 %v2151, 0.0
        %v2184 = vmax.f32 %v2152, 0.0
        %v2185 = vmax.f32 %v2153, 0.0
        %v2186 = vmax.f32 %v2154, 0.0
        %v2187 = vmax.f32 %v2155, 0.0
        %v2188 = vmax.f32 %v2156, 0.0
        %v2189 = vmax.f32 %v2157, 0.0
        %v2190 = vmax.f32 %v2158, 0.0
        %v2191 = vmax.f32 %v2159, %v2161
        %v2192 = vmax.f32 %v2160, %v2162
        %v2193 = vmax.f32 %v2163, %v2165
        %v2194 = vmax.f32 %v2164, %v2166
        %v2195 = vmax.f32 %v2167, %v2169
        %v2196 = vmax.f32 %v2168, %v2170
        %v2197 = vmax.f32 %v2171, %v2173
        %v2198 = vmax.f32 %v2172, %v2174
        %v2199 = vmax.f32 %v2175, %v2177
        %v2200 = vmax.f32 %v2176, %v2178
        %v2201 = vmax.f32 %v2179, %v2181
        %v2202 = vmax.f32 %v2180, %v2182
        %v2203 = vmax.f32 %v2183, %v2185
        %v2204 = vmax.f32 %v2184, %v2186
        %v2205 = vmax.f32 %v2187, %v2189
        %v2206 = vmax.f32 %v2188, %v2190
        %vm2207 = vcmask 261120
        %2208 = vst.msk [vmem:[#allocation2] sm:$0xff] %vm2207, %v2191
        %2209 = vst.msk [vmem:[#allocation2 + $0x8] sm:$0xff] %vm2207, %v2192
        %2210 = vst.msk [vmem:[#allocation2 + $0x10] sm:$0xff] %vm2207, %v2193
        %2211 = vst.msk [vmem:[#allocation2 + $0x18] sm:$0xff] %vm2207, %v2194
        %2212 = vst.msk [vmem:[#allocation2 + $0x20] sm:$0xff] %vm2207, %v2195
        %2213 = vst.msk [vmem:[#allocation2 + $0x28] sm:$0xff] %vm2207, %v2196
        %2214 = vst.msk [vmem:[#allocation2 + $0x30] sm:$0xff] %vm2207, %v2197
        %2215 = vst.msk [vmem:[#allocation2 + $0x38] sm:$0xff] %vm2207, %v2198
        %2216 = vst.msk [vmem:[#allocation2 + $0x40] sm:$0xff] %vm2207, %v2199
        %2217 = vst.msk [vmem:[#allocation2 + $0x48] sm:$0xff] %vm2207, %v2200
        %2218 = vst.msk [vmem:[#allocation2 + $0x50] sm:$0xff] %vm2207, %v2201
        %2219 = vst.msk [vmem:[#allocation2 + $0x58] sm:$0xff] %vm2207, %v2202
        %2220 = vst.msk [vmem:[#allocation2 + $0x60] sm:$0xff] %vm2207, %v2203
        %2221 = vst.msk [vmem:[#allocation2 + $0x68] sm:$0xff] %vm2207, %v2204
        %2222 = vst.msk [vmem:[#allocation2 + $0x70] sm:$0xff] %vm2207, %v2205
        %2223 = vst.msk [vmem:[#allocation2 + $0x78] sm:$0xff] %vm2207, %v2206
        %v2224 = vld [vmem:[#allocation2] ss:$2 sm:$0xff]
        %s2225 = scalar_lea.vmem [#allocation2], 16
        %v2226 = vld [vmem:[%s2225] ss:$2 sm:$0xff]
        %s2227 = scalar_lea.vmem [#allocation2], 32
        %v2228 = vld [vmem:[%s2227] ss:$2 sm:$0xff]
        %s2229 = scalar_lea.vmem [#allocation2], 48
        %v2230 = vld [vmem:[%s2229] ss:$2 sm:$0xff]
        %s2231 = scalar_lea.vmem [#allocation2], 64
        %v2232 = vld [vmem:[%s2231] ss:$2 sm:$0xff]
        %s2233 = scalar_lea.vmem [#allocation2], 80
        %v2234 = vld [vmem:[%s2233] ss:$2 sm:$0xff]
        %s2235 = scalar_lea.vmem [#allocation2], 96
        %v2236 = vld [vmem:[%s2235] ss:$2 sm:$0xff]
        %s2237 = scalar_lea.vmem [#allocation2], 112
        %v2238 = vld [vmem:[%s2237] ss:$2 sm:$0xff]
        %s2239 = scalar_lea.vmem [#allocation2], 1
        %v2240 = vld [vmem:[%s2239] ss:$2 sm:$0xff]
        %s2241 = scalar_lea.vmem [#allocation2], 17
        %v2242 = vld [vmem:[%s2241] ss:$2 sm:$0xff]
        %s2243 = scalar_lea.vmem [#allocation2], 33
        %v2244 = vld [vmem:[%s2243] ss:$2 sm:$0xff]
        %s2245 = scalar_lea.vmem [#allocation2], 49
        %v2246 = vld [vmem:[%s2245] ss:$2 sm:$0xff]
        %s2247 = scalar_lea.vmem [#allocation2], 65
        %v2248 = vld [vmem:[%s2247] ss:$2 sm:$0xff]
        %s2249 = scalar_lea.vmem [#allocation2], 81
        %v2250 = vld [vmem:[%s2249] ss:$2 sm:$0xff]
        %s2251 = scalar_lea.vmem [#allocation2], 97
        %v2252 = vld [vmem:[%s2251] ss:$2 sm:$0xff]
        %s2253 = scalar_lea.vmem [#allocation2], 113
        %v2254 = vld [vmem:[%s2253] ss:$2 sm:$0xff]
        %v2255 = vmax.f32 %v2224, %v2240
        %v2256 = vmax.f32 %v2226, %v2242
        %v2257 = vmax.f32 %v2228, %v2244
        %v2258 = vmax.f32 %v2230, %v2246
        %v2259 = vmax.f32 %v2232, %v2248
        %v2260 = vmax.f32 %v2234, %v2250
        %v2261 = vmax.f32 %v2236, %v2252
        %v2262 = vmax.f32 %v2238, %v2254
        %2263 = vst.msk [vmem:[#allocation3] sm:$0xff] %vm2207, 0.0
        %vm2264 = vcmask 254976
        %2265 = vst.msk [vmem:[#allocation3 + $0x8] sm:$0x3] %vm2264, 0.0
        %2266 = vst.msk [vmem:[#allocation3 + $0x10] sm:$0xff] %vm2207, 0.0
        %2267 = vst.msk [vmem:[#allocation3 + $0x18] sm:$0x3] %vm2264, 0.0
        %2268 = vst.msk [vmem:[#allocation3 + $0x20] sm:$0xff] %vm2207, 0.0
        %2269 = vst.msk [vmem:[#allocation3 + $0x28] sm:$0x3] %vm2264, 0.0
        %2270 = vst.msk [vmem:[#allocation3 + $0x30] sm:$0xff] %vm2207, 0.0
        %2271 = vst.msk [vmem:[#allocation3 + $0x38] sm:$0x3] %vm2264, 0.0
        %2272 = vst.msk [vmem:[#allocation3 + $0x40] sm:$0xff] %vm2207, 0.0
        %2273 = vst.msk [vmem:[#allocation3 + $0x48] sm:$0x3] %vm2264, 0.0
        %2274 = vst.msk [vmem:[#allocation3 + $0x50] sm:$0xff] %vm2207, 0.0
        %2275 = vst.msk [vmem:[#allocation3 + $0x58] sm:$0x3] %vm2264, 0.0
        %2276 = vst.msk [vmem:[#allocation3 + $0x60] sm:$0xff] %vm2207, 0.0
        %2277 = vst.msk [vmem:[#allocation3 + $0x68] sm:$0x3] %vm2264, 0.0
        %2278 = vst.msk [vmem:[#allocation3 + $0x70] sm:$0xff] %vm2207, 0.0
        %2279 = vst.msk [vmem:[#allocation3 + $0x78] sm:$0x3] %vm2264, 0.0
        %2280 = vst.msk [vmem:[#allocation3 + $0x80] sm:$0xff] %vm2207, 0.0
        %2281 = vst.msk [vmem:[#allocation3 + $0x88] sm:$0x3] %vm2264, 0.0
        %2282 = vst.msk [vmem:[#allocation3 + $0x90] sm:$0xff] %vm2207, 0.0
        %2283 = vst.msk [vmem:[#allocation3 + $0x98] sm:$0x3] %vm2264, 0.0
        %s2284 = scalar_lea.vmem [#allocation3], 16
        %2285 = vst.msk [vmem:[%s2284 + $0x1] sm:$0xff] %vm2207, %v2255
        %2286 = vst.msk [vmem:[%s2284 + $0x11] sm:$0xff] %vm2207, %v2256
        %2287 = vst.msk [vmem:[%s2284 + $0x21] sm:$0xff] %vm2207, %v2257
        %2288 = vst.msk [vmem:[%s2284 + $0x31] sm:$0xff] %vm2207, %v2258
        %2289 = vst.msk [vmem:[%s2284 + $0x41] sm:$0xff] %vm2207, %v2259
        %2290 = vst.msk [vmem:[%s2284 + $0x51] sm:$0xff] %vm2207, %v2260
        %2291 = vst.msk [vmem:[%s2284 + $0x61] sm:$0xff] %vm2207, %v2261
        %2292 = vst.msk [vmem:[%s2284 + $0x71] sm:$0xff] %vm2207, %v2262
        %v2293 = vld [vmem:[#allocation3] sm:$0xff]
        %v2294 = vld [vmem:[#allocation3 + $0x8] sm:$0x3]
        %v2295 = vld [vmem:[#allocation3 + $0x10] sm:$0xff]
        %v2296 = vld [vmem:[#allocation3 + $0x18] sm:$0x3]
        %v2297 = vld [vmem:[#allocation3 + $0x20] sm:$0xff]
        %v2298 = vld [vmem:[#allocation3 + $0x28] sm:$0x3]
        %v2299 = vld [vmem:[#allocation3 + $0x30] sm:$0xff]
        %v2300 = vld [vmem:[#allocation3 + $0x38] sm:$0x3]
        %v2301 = vld [vmem:[#allocation3 + $0x40] sm:$0xff]
        %v2302 = vld [vmem:[#allocation3 + $0x48] sm:$0x3]
        %v2303 = vld [vmem:[#allocation3 + $0x50] sm:$0xff]
        %v2304 = vld [vmem:[#allocation3 + $0x58] sm:$0x3]
        %v2305 = vld [vmem:[#allocation3 + $0x60] sm:$0xff]
        %v2306 = vld [vmem:[#allocation3 + $0x68] sm:$0x3]
        %v2307 = vld [vmem:[#allocation3 + $0x70] sm:$0xff]
        %v2308 = vld [vmem:[#allocation3 + $0x78] sm:$0x3]
        %v2309 = vld [vmem:[#allocation3 + $0x80] sm:$0xff]
        %v2310 = vld [vmem:[#allocation3 + $0x88] sm:$0x3]
        %v2311 = vld [vmem:[#allocation3 + $0x90] sm:$0xff]
        %v2312 = vld [vmem:[#allocation3 + $0x98] sm:$0x3]
        %v2313 = vld [vmem:[%s3] sm:$0xff]
        %v2314 = vld [vmem:[%s3 + $0x8] sm:$0xff]
        %v2315 = vld [vmem:[%s3 + $0x10] sm:$0xff]
        %v2316 = vld [vmem:[%s3 + $0x18] sm:$0xff]
        %v2333 = vrot.slane %v2293, 1
        %v2334 = vrot.slane %v2294, 1
        %v2335 = vsel %vm433, %v2333, %v2334
        %v2336 = vrot.slane %v2295, 1
        %v2337 = vrot.slane %v2296, 1
        %v2338 = vsel %vm433, %v2336, %v2337
        %v2339 = vrot.slane %v2297, 1
        %v2340 = vrot.slane %v2298, 1
        %v2341 = vsel %vm433, %v2339, %v2340
        %v2342 = vrot.slane %v2299, 1
        %v2343 = vrot.slane %v2300, 1
        %v2344 = vsel %vm433, %v2342, %v2343
        %v2345 = vrot.slane %v2301, 1
        %v2346 = vrot.slane %v2302, 1
        %v2347 = vsel %vm433, %v2345, %v2346
        %v2348 = vrot.slane %v2303, 1
        %v2349 = vrot.slane %v2304, 1
        %v2350 = vsel %vm433, %v2348, %v2349
        %v2351 = vrot.slane %v2305, 1
        %v2352 = vrot.slane %v2306, 1
        %v2353 = vsel %vm433, %v2351, %v2352
        %v2354 = vrot.slane %v2307, 1
        %v2355 = vrot.slane %v2308, 1
        %v2356 = vsel %vm433, %v2354, %v2355
        %s2357 = scalar_lea.vmem %s3, 32
        %v2358 = vld [vmem:[%s2357] sm:$0xff]
        %v2359 = vld [vmem:[%s2357 + $0x8] sm:$0xff]
        %v2360 = vld [vmem:[%s2357 + $0x10] sm:$0xff]
        %v2361 = vld [vmem:[%s2357 + $0x18] sm:$0xff]
        %v2362 = vsel %vm2207, %v2335, 0
        %v2364 = vsel %vm2207, %v2338, 0
        %v2366 = vsel %vm2207, %v2341, 0
        %v2368 = vsel %vm2207, %v2344, 0
        %v2370 = vsel %vm2207, %v2347, 0
        %v2372 = vsel %vm2207, %v2350, 0
        %v2374 = vsel %vm2207, %v2353, 0
        %v2376 = vsel %vm2207, %v2356, 0
        %2378 = vmatpush.msra.mxu0 0.0
        %2379 = vmatpush.msra.mxu0 0.0
        %2380 = vmatpush.msra.mxu0 0.0
        %2381 = vmatpush.msra.mxu0 0.0
        %2382 = vmatpush.msra.mxu0 0.0
        %2383 = vmatpush.msra.mxu0 0.0
        %2384 = vmatpush.msra.mxu0 0.0
        %2385 = vmatpush.msra.mxu0 0.0
        %2386 = vmatpush.msra.mxu0 0.0
        %2387 = vmatpush.msra.mxu0 0.0
        %2388 = vmatpush.msra.mxu0 0.0
        %2389 = vmatpush.msra.mxu0 0.0
        %2390 = vmatpush.msra.mxu0 %v2361
        %2391 = vmatpush.msra.mxu0 %v2360
        %2392 = vmatpush.msra.mxu0 %v2359
        %2393 = vmatpush.msra.mxu0 %v2358
        %2394 = vmatmul.f32.gmra.mxu0 %v2362
        %v2395 = vpop.f32.mrf.mxu0
        %v2396 = vadd.f32 0.0, %v2395
        %2397 = vmatmul.f32.gmra.mxu0 %v2364
        %v2398 = vpop.f32.mrf.mxu0
        %v2399 = vadd.f32 0.0, %v2398
        %2400 = vmatmul.f32.gmra.mxu0 %v2366
        %v2401 = vpop.f32.mrf.mxu0
        %v2402 = vadd.f32 0.0, %v2401
        %2403 = vmatmul.f32.gmra.mxu0 %v2368
        %v2404 = vpop.f32.mrf.mxu0
        %v2405 = vadd.f32 0.0, %v2404
        %2406 = vmatmul.f32.gmra.mxu0 %v2370
        %v2407 = vpop.f32.mrf.mxu0
        %v2408 = vadd.f32 0.0, %v2407
        %2409 = vmatmul.f32.gmra.mxu0 %v2372
        %v2410 = vpop.f32.mrf.mxu0
        %v2411 = vadd.f32 0.0, %v2410
        %2412 = vmatmul.f32.gmra.mxu0 %v2374
        %v2413 = vpop.f32.mrf.mxu0
        %v2414 = vadd.f32 0.0, %v2413
        %2415 = vmatmul.f32.gmra.mxu0 %v2376
        %v2416 = vpop.f32.mrf.mxu0
        %v2417 = vadd.f32 0.0, %v2416
        %2418 = vdwg.mxu0
        %v2419 = vsel %vm2207, %v2293, 0
        %v2421 = vsel %vm2207, %v2295, 0
        %v2423 = vsel %vm2207, %v2297, 0
        %v2425 = vsel %vm2207, %v2299, 0
        %v2427 = vsel %vm2207, %v2301, 0
        %v2429 = vsel %vm2207, %v2303, 0
        %v2431 = vsel %vm2207, %v2305, 0
        %v2433 = vsel %vm2207, %v2307, 0
        %2435 = vmatpush.msra.mxu0 0.0
        %2436 = vmatpush.msra.mxu0 0.0
        %2437 = vmatpush.msra.mxu0 0.0
        %2438 = vmatpush.msra.mxu0 0.0
        %2439 = vmatpush.msra.mxu0 0.0
        %2440 = vmatpush.msra.mxu0 0.0
        %2441 = vmatpush.msra.mxu0 0.0
        %2442 = vmatpush.msra.mxu0 0.0
        %2443 = vmatpush.msra.mxu0 0.0
        %2444 = vmatpush.msra.mxu0 0.0
        %2445 = vmatpush.msra.mxu0 0.0
        %2446 = vmatpush.msra.mxu0 0.0
        %2447 = vmatpush.msra.mxu0 %v2316
        %2448 = vmatpush.msra.mxu0 %v2315
        %2449 = vmatpush.msra.mxu0 %v2314
        %2450 = vmatpush.msra.mxu0 %v2313
        %2451 = vmatmul.f32.gmra.mxu0 %v2419
        %v2452 = vpop.f32.mrf.mxu0
        %v2453 = vadd.f32 %v2396, %v2452
        %2454 = vmatmul.f32.gmra.mxu0 %v2421
        %v2455 = vpop.f32.mrf.mxu0
        %v2456 = vadd.f32 %v2399, %v2455
        %2457 = vmatmul.f32.gmra.mxu0 %v2423
        %v2458 = vpop.f32.mrf.mxu0
        %v2459 = vadd.f32 %v2402, %v2458
        %2460 = vmatmul.f32.gmra.mxu0 %v2425
        %v2461 = vpop.f32.mrf.mxu0
        %v2462 = vadd.f32 %v2405, %v2461
        %2463 = vmatmul.f32.gmra.mxu0 %v2427
        %v2464 = vpop.f32.mrf.mxu0
        %v2465 = vadd.f32 %v2408, %v2464
        %2466 = vmatmul.f32.gmra.mxu0 %v2429
        %v2467 = vpop.f32.mrf.mxu0
        %v2468 = vadd.f32 %v2411, %v2467
        %2469 = vmatmul.f32.gmra.mxu0 %v2431
        %v2470 = vpop.f32.mrf.mxu0
        %v2471 = vadd.f32 %v2414, %v2470
        %2472 = vmatmul.f32.gmra.mxu0 %v2433
        %v2473 = vpop.f32.mrf.mxu0
        %v2474 = vadd.f32 %v2417, %v2473
        %2475 = vdwg.mxu0
        %v2476 = vrot.slane %v2293, 2
        %v2477 = vrot.slane %v2294, 2
        %v2478 = vsel %vm878, %v2476, %v2477
        %v2479 = vrot.slane %v2295, 2
        %v2480 = vrot.slane %v2296, 2
        %v2481 = vsel %vm878, %v2479, %v2480
        %v2482 = vrot.slane %v2297, 2
        %v2483 = vrot.slane %v2298, 2
        %v2484 = vsel %vm878, %v2482, %v2483
        %v2485 = vrot.slane %v2299, 2
        %v2486 = vrot.slane %v2300, 2
        %v2487 = vsel %vm878, %v2485, %v2486
        %v2488 = vrot.slane %v2301, 2
        %v2489 = vrot.slane %v2302, 2
        %v2490 = vsel %vm878, %v2488, %v2489
        %v2491 = vrot.slane %v2303, 2
        %v2492 = vrot.slane %v2304, 2
        %v2493 = vsel %vm878, %v2491, %v2492
        %v2494 = vrot.slane %v2305, 2
        %v2495 = vrot.slane %v2306, 2
        %v2496 = vsel %vm878, %v2494, %v2495
        %v2497 = vrot.slane %v2307, 2
        %v2498 = vrot.slane %v2308, 2
        %v2499 = vsel %vm878, %v2497, %v2498
        %s2500 = scalar_lea.vmem %s3, 64
        %v2501 = vld [vmem:[%s2500] sm:$0xff]
        %v2502 = vld [vmem:[%s2500 + $0x8] sm:$0xff]
        %v2503 = vld [vmem:[%s2500 + $0x10] sm:$0xff]
        %v2504 = vld [vmem:[%s2500 + $0x18] sm:$0xff]
        %v2505 = vsel %vm2207, %v2478, 0
        %v2507 = vsel %vm2207, %v2481, 0
        %v2509 = vsel %vm2207, %v2484, 0
        %v2511 = vsel %vm2207, %v2487, 0
        %v2513 = vsel %vm2207, %v2490, 0
        %v2515 = vsel %vm2207, %v2493, 0
        %v2517 = vsel %vm2207, %v2496, 0
        %v2519 = vsel %vm2207, %v2499, 0
        %2521 = vmatpush.msra.mxu0 0.0
        %2522 = vmatpush.msra.mxu0 0.0
        %2523 = vmatpush.msra.mxu0 0.0
        %2524 = vmatpush.msra.mxu0 0.0
        %2525 = vmatpush.msra.mxu0 0.0
        %2526 = vmatpush.msra.mxu0 0.0
        %2527 = vmatpush.msra.mxu0 0.0
        %2528 = vmatpush.msra.mxu0 0.0
        %2529 = vmatpush.msra.mxu0 0.0
        %2530 = vmatpush.msra.mxu0 0.0
        %2531 = vmatpush.msra.mxu0 0.0
        %2532 = vmatpush.msra.mxu0 0.0
        %2533 = vmatpush.msra.mxu0 %v2504
        %2534 = vmatpush.msra.mxu0 %v2503
        %2535 = vmatpush.msra.mxu0 %v2502
        %2536 = vmatpush.msra.mxu0 %v2501
        %2537 = vmatmul.f32.gmra.mxu0 %v2505
        %v2538 = vpop.f32.mrf.mxu0
        %v2539 = vadd.f32 0.0, %v2538
        %2540 = vmatmul.f32.gmra.mxu0 %v2507
        %v2541 = vpop.f32.mrf.mxu0
        %v2542 = vadd.f32 0.0, %v2541
        %2543 = vmatmul.f32.gmra.mxu0 %v2509
        %v2544 = vpop.f32.mrf.mxu0
        %v2545 = vadd.f32 0.0, %v2544
        %2546 = vmatmul.f32.gmra.mxu0 %v2511
        %v2547 = vpop.f32.mrf.mxu0
        %v2548 = vadd.f32 0.0, %v2547
        %2549 = vmatmul.f32.gmra.mxu0 %v2513
        %v2550 = vpop.f32.mrf.mxu0
        %v2551 = vadd.f32 0.0, %v2550
        %2552 = vmatmul.f32.gmra.mxu0 %v2515
        %v2553 = vpop.f32.mrf.mxu0
        %v2554 = vadd.f32 0.0, %v2553
        %2555 = vmatmul.f32.gmra.mxu0 %v2517
        %v2556 = vpop.f32.mrf.mxu0
        %v2557 = vadd.f32 0.0, %v2556
        %2558 = vmatmul.f32.gmra.mxu0 %v2519
        %v2559 = vpop.f32.mrf.mxu0
        %v2560 = vadd.f32 0.0, %v2559
        %2561 = vdwg.mxu0
        %v2562 = vadd.f32 %v2453, %v2539
        %v2563 = vadd.f32 %v2456, %v2542
        %v2564 = vadd.f32 %v2459, %v2545
        %v2565 = vadd.f32 %v2462, %v2548
        %v2566 = vadd.f32 %v2465, %v2551
        %v2567 = vadd.f32 %v2468, %v2554
        %v2568 = vadd.f32 %v2471, %v2557
        %v2569 = vadd.f32 %v2474, %v2560
        %s2570 = scalar_lea.vmem %s3, 96
        %v2571 = vld [vmem:[%s2570] sm:$0xff]
        %v2572 = vld [vmem:[%s2570 + $0x8] sm:$0xff]
        %v2573 = vld [vmem:[%s2570 + $0x10] sm:$0xff]
        %v2574 = vld [vmem:[%s2570 + $0x18] sm:$0xff]
        %v2576 = vsel %vm2207, %v2309, 0
        %2578 = vmatpush.msra.mxu0 0.0
        %2579 = vmatpush.msra.mxu0 0.0
        %2580 = vmatpush.msra.mxu0 0.0
        %2581 = vmatpush.msra.mxu0 0.0
        %2582 = vmatpush.msra.mxu0 0.0
        %2583 = vmatpush.msra.mxu0 0.0
        %2584 = vmatpush.msra.mxu0 0.0
        %2585 = vmatpush.msra.mxu0 0.0
        %2586 = vmatpush.msra.mxu0 0.0
        %2587 = vmatpush.msra.mxu0 0.0
        %2588 = vmatpush.msra.mxu0 0.0
        %2589 = vmatpush.msra.mxu0 0.0
        %2590 = vmatpush.msra.mxu0 %v2574
        %2591 = vmatpush.msra.mxu0 %v2573
        %2592 = vmatpush.msra.mxu0 %v2572
        %2593 = vmatpush.msra.mxu0 %v2571
        %2594 = vmatmul.f32.gmra.mxu0 %v2421
        %v2595 = vpop.f32.mrf.mxu0
        %v2596 = vadd.f32 0.0, %v2595
        %2597 = vmatmul.f32.gmra.mxu0 %v2423
        %v2598 = vpop.f32.mrf.mxu0
        %v2599 = vadd.f32 0.0, %v2598
        %2600 = vmatmul.f32.gmra.mxu0 %v2425
        %v2601 = vpop.f32.mrf.mxu0
        %v2602 = vadd.f32 0.0, %v2601
        %2603 = vmatmul.f32.gmra.mxu0 %v2427
        %v2604 = vpop.f32.mrf.mxu0
        %v2605 = vadd.f32 0.0, %v2604
        %2606 = vmatmul.f32.gmra.mxu0 %v2429
        %v2607 = vpop.f32.mrf.mxu0
        %v2608 = vadd.f32 0.0, %v2607
        %2609 = vmatmul.f32.gmra.mxu0 %v2431
        %v2610 = vpop.f32.mrf.mxu0
        %v2611 = vadd.f32 0.0, %v2610
        %2612 = vmatmul.f32.gmra.mxu0 %v2433
        %v2613 = vpop.f32.mrf.mxu0
        %v2614 = vadd.f32 0.0, %v2613
        %2615 = vmatmul.f32.gmra.mxu0 %v2576
        %v2616 = vpop.f32.mrf.mxu0
        %v2617 = vadd.f32 0.0, %v2616
        %2618 = vdwg.mxu0
        %v2619 = vadd.f32 %v2562, %v2596
        %v2620 = vadd.f32 %v2563, %v2599
        %v2621 = vadd.f32 %v2564, %v2602
        %v2622 = vadd.f32 %v2565, %v2605
        %v2623 = vadd.f32 %v2566, %v2608
        %v2624 = vadd.f32 %v2567, %v2611
        %v2625 = vadd.f32 %v2568, %v2614
        %v2626 = vadd.f32 %v2569, %v2617
        %v2628 = vrot.slane %v2309, 1
        %v2629 = vrot.slane %v2310, 1
        %v2630 = vsel %vm433, %v2628, %v2629
        %s2631 = scalar_lea.vmem %s3, 128
        %v2632 = vld [vmem:[%s2631] sm:$0xff]
        %v2633 = vld [vmem:[%s2631 + $0x8] sm:$0xff]
        %v2634 = vld [vmem:[%s2631 + $0x10] sm:$0xff]
        %v2635 = vld [vmem:[%s2631 + $0x18] sm:$0xff]
        %v2636 = vsel %vm2207, %v2630, 0
        %2638 = vmatpush.msra.mxu0 0.0
        %2639 = vmatpush.msra.mxu0 0.0
        %2640 = vmatpush.msra.mxu0 0.0
        %2641 = vmatpush.msra.mxu0 0.0
        %2642 = vmatpush.msra.mxu0 0.0
        %2643 = vmatpush.msra.mxu0 0.0
        %2644 = vmatpush.msra.mxu0 0.0
        %2645 = vmatpush.msra.mxu0 0.0
        %2646 = vmatpush.msra.mxu0 0.0
        %2647 = vmatpush.msra.mxu0 0.0
        %2648 = vmatpush.msra.mxu0 0.0
        %2649 = vmatpush.msra.mxu0 0.0
        %2650 = vmatpush.msra.mxu0 %v2635
        %2651 = vmatpush.msra.mxu0 %v2634
        %2652 = vmatpush.msra.mxu0 %v2633
        %2653 = vmatpush.msra.mxu0 %v2632
        %2654 = vmatmul.f32.gmra.mxu0 %v2364
        %v2655 = vpop.f32.mrf.mxu0
        %v2656 = vadd.f32 0.0, %v2655
        %2657 = vmatmul.f32.gmra.mxu0 %v2366
        %v2658 = vpop.f32.mrf.mxu0
        %v2659 = vadd.f32 0.0, %v2658
        %2660 = vmatmul.f32.gmra.mxu0 %v2368
        %v2661 = vpop.f32.mrf.mxu0
        %v2662 = vadd.f32 0.0, %v2661
        %2663 = vmatmul.f32.gmra.mxu0 %v2370
        %v2664 = vpop.f32.mrf.mxu0
        %v2665 = vadd.f32 0.0, %v2664
        %2666 = vmatmul.f32.gmra.mxu0 %v2372
        %v2667 = vpop.f32.mrf.mxu0
        %v2668 = vadd.f32 0.0, %v2667
        %2669 = vmatmul.f32.gmra.mxu0 %v2374
        %v2670 = vpop.f32.mrf.mxu0
        %v2671 = vadd.f32 0.0, %v2670
        %2672 = vmatmul.f32.gmra.mxu0 %v2376
        %v2673 = vpop.f32.mrf.mxu0
        %v2674 = vadd.f32 0.0, %v2673
        %2675 = vmatmul.f32.gmra.mxu0 %v2636
        %v2676 = vpop.f32.mrf.mxu0
        %v2677 = vadd.f32 0.0, %v2676
        %2678 = vdwg.mxu0
        %v2679 = vadd.f32 %v2619, %v2656
        %v2680 = vadd.f32 %v2620, %v2659
        %v2681 = vadd.f32 %v2621, %v2662
        %v2682 = vadd.f32 %v2622, %v2665
        %v2683 = vadd.f32 %v2623, %v2668
        %v2684 = vadd.f32 %v2624, %v2671
        %v2685 = vadd.f32 %v2625, %v2674
        %v2686 = vadd.f32 %v2626, %v2677
        %v2687 = vrot.slane %v2309, 2
        %v2688 = vrot.slane %v2310, 2
        %v2689 = vsel %vm878, %v2687, %v2688
        %s2690 = scalar_lea.vmem %s3, 160
        %v2691 = vld [vmem:[%s2690] sm:$0xff]
        %v2692 = vld [vmem:[%s2690 + $0x8] sm:$0xff]
        %v2693 = vld [vmem:[%s2690 + $0x10] sm:$0xff]
        %v2694 = vld [vmem:[%s2690 + $0x18] sm:$0xff]
        %v2695 = vsel %vm2207, %v2689, 0
        %2697 = vmatpush.msra.mxu0 0.0
        %2698 = vmatpush.msra.mxu0 0.0
        %2699 = vmatpush.msra.mxu0 0.0
        %2700 = vmatpush.msra.mxu0 0.0
        %2701 = vmatpush.msra.mxu0 0.0
        %2702 = vmatpush.msra.mxu0 0.0
        %2703 = vmatpush.msra.mxu0 0.0
        %2704 = vmatpush.msra.mxu0 0.0
        %2705 = vmatpush.msra.mxu0 0.0
        %2706 = vmatpush.msra.mxu0 0.0
        %2707 = vmatpush.msra.mxu0 0.0
        %2708 = vmatpush.msra.mxu0 0.0
        %2709 = vmatpush.msra.mxu0 %v2694
        %2710 = vmatpush.msra.mxu0 %v2693
        %2711 = vmatpush.msra.mxu0 %v2692
        %2712 = vmatpush.msra.mxu0 %v2691
        %2713 = vmatmul.f32.gmra.mxu0 %v2507
        %v2714 = vpop.f32.mrf.mxu0
        %v2715 = vadd.f32 0.0, %v2714
        %2716 = vmatmul.f32.gmra.mxu0 %v2509
        %v2717 = vpop.f32.mrf.mxu0
        %v2718 = vadd.f32 0.0, %v2717
        %2719 = vmatmul.f32.gmra.mxu0 %v2511
        %v2720 = vpop.f32.mrf.mxu0
        %v2721 = vadd.f32 0.0, %v2720
        %2722 = vmatmul.f32.gmra.mxu0 %v2513
        %v2723 = vpop.f32.mrf.mxu0
        %v2724 = vadd.f32 0.0, %v2723
        %2725 = vmatmul.f32.gmra.mxu0 %v2515
        %v2726 = vpop.f32.mrf.mxu0
        %v2727 = vadd.f32 0.0, %v2726
        %2728 = vmatmul.f32.gmra.mxu0 %v2517
        %v2729 = vpop.f32.mrf.mxu0
        %v2730 = vadd.f32 0.0, %v2729
        %2731 = vmatmul.f32.gmra.mxu0 %v2519
        %v2732 = vpop.f32.mrf.mxu0
        %v2733 = vadd.f32 0.0, %v2732
        %2734 = vmatmul.f32.gmra.mxu0 %v2695
        %v2735 = vpop.f32.mrf.mxu0
        %v2736 = vadd.f32 0.0, %v2735
        %2737 = vdwg.mxu0
        %v2738 = vadd.f32 %v2679, %v2715
        %v2739 = vadd.f32 %v2680, %v2718
        %v2740 = vadd.f32 %v2681, %v2721
        %v2741 = vadd.f32 %v2682, %v2724
        %v2742 = vadd.f32 %v2683, %v2727
        %v2743 = vadd.f32 %v2684, %v2730
        %v2744 = vadd.f32 %v2685, %v2733
        %v2745 = vadd.f32 %v2686, %v2736
        %s2746 = scalar_lea.vmem %s3, 192
        %v2747 = vld [vmem:[%s2746] sm:$0xff]
        %v2748 = vld [vmem:[%s2746 + $0x8] sm:$0xff]
        %v2749 = vld [vmem:[%s2746 + $0x10] sm:$0xff]
        %v2750 = vld [vmem:[%s2746 + $0x18] sm:$0xff]
        %v2752 = vsel %vm2207, %v2311, 0
        %2754 = vmatpush.msra.mxu0 0.0
        %2755 = vmatpush.msra.mxu0 0.0
        %2756 = vmatpush.msra.mxu0 0.0
        %2757 = vmatpush.msra.mxu0 0.0
        %2758 = vmatpush.msra.mxu0 0.0
        %2759 = vmatpush.msra.mxu0 0.0
        %2760 = vmatpush.msra.mxu0 0.0
        %2761 = vmatpush.msra.mxu0 0.0
        %2762 = vmatpush.msra.mxu0 0.0
        %2763 = vmatpush.msra.mxu0 0.0
        %2764 = vmatpush.msra.mxu0 0.0
        %2765 = vmatpush.msra.mxu0 0.0
        %2766 = vmatpush.msra.mxu0 %v2750
        %2767 = vmatpush.msra.mxu0 %v2749
        %2768 = vmatpush.msra.mxu0 %v2748
        %2769 = vmatpush.msra.mxu0 %v2747
        %2770 = vmatmul.f32.gmra.mxu0 %v2423
        %v2771 = vpop.f32.mrf.mxu0
        %v2772 = vadd.f32 0.0, %v2771
        %2773 = vmatmul.f32.gmra.mxu0 %v2425
        %v2774 = vpop.f32.mrf.mxu0
        %v2775 = vadd.f32 0.0, %v2774
        %2776 = vmatmul.f32.gmra.mxu0 %v2427
        %v2777 = vpop.f32.mrf.mxu0
        %v2778 = vadd.f32 0.0, %v2777
        %2779 = vmatmul.f32.gmra.mxu0 %v2429
        %v2780 = vpop.f32.mrf.mxu0
        %v2781 = vadd.f32 0.0, %v2780
        %2782 = vmatmul.f32.gmra.mxu0 %v2431
        %v2783 = vpop.f32.mrf.mxu0
        %v2784 = vadd.f32 0.0, %v2783
        %2785 = vmatmul.f32.gmra.mxu0 %v2433
        %v2786 = vpop.f32.mrf.mxu0
        %v2787 = vadd.f32 0.0, %v2786
        %2788 = vmatmul.f32.gmra.mxu0 %v2576
        %v2789 = vpop.f32.mrf.mxu0
        %v2790 = vadd.f32 0.0, %v2789
        %2791 = vmatmul.f32.gmra.mxu0 %v2752
        %v2792 = vpop.f32.mrf.mxu0
        %v2793 = vadd.f32 0.0, %v2792
        %2794 = vdwg.mxu0
        %v2795 = vadd.f32 %v2738, %v2772
        %v2796 = vadd.f32 %v2739, %v2775
        %v2797 = vadd.f32 %v2740, %v2778
        %v2798 = vadd.f32 %v2741, %v2781
        %v2799 = vadd.f32 %v2742, %v2784
        %v2800 = vadd.f32 %v2743, %v2787
        %v2801 = vadd.f32 %v2744, %v2790
        %v2802 = vadd.f32 %v2745, %v2793
        %v2804 = vrot.slane %v2311, 1
        %v2805 = vrot.slane %v2312, 1
        %v2806 = vsel %vm433, %v2804, %v2805
        %s2807 = scalar_lea.vmem %s3, 224
        %v2808 = vld [vmem:[%s2807] sm:$0xff]
        %v2809 = vld [vmem:[%s2807 + $0x8] sm:$0xff]
        %v2810 = vld [vmem:[%s2807 + $0x10] sm:$0xff]
        %v2811 = vld [vmem:[%s2807 + $0x18] sm:$0xff]
        %v2812 = vsel %vm2207, %v2806, 0
        %2814 = vmatpush.msra.mxu0 0.0
        %2815 = vmatpush.msra.mxu0 0.0
        %2816 = vmatpush.msra.mxu0 0.0
        %2817 = vmatpush.msra.mxu0 0.0
        %2818 = vmatpush.msra.mxu0 0.0
        %2819 = vmatpush.msra.mxu0 0.0
        %2820 = vmatpush.msra.mxu0 0.0
        %2821 = vmatpush.msra.mxu0 0.0
        %2822 = vmatpush.msra.mxu0 0.0
        %2823 = vmatpush.msra.mxu0 0.0
        %2824 = vmatpush.msra.mxu0 0.0
        %2825 = vmatpush.msra.mxu0 0.0
        %2826 = vmatpush.msra.mxu0 %v2811
        %2827 = vmatpush.msra.mxu0 %v2810
        %2828 = vmatpush.msra.mxu0 %v2809
        %2829 = vmatpush.msra.mxu0 %v2808
        %2830 = vmatmul.f32.gmra.mxu0 %v2366
        %v2831 = vpop.f32.mrf.mxu0
        %v2832 = vadd.f32 0.0, %v2831
        %2833 = vmatmul.f32.gmra.mxu0 %v2368
        %v2834 = vpop.f32.mrf.mxu0
        %v2835 = vadd.f32 0.0, %v2834
        %2836 = vmatmul.f32.gmra.mxu0 %v2370
        %v2837 = vpop.f32.mrf.mxu0
        %v2838 = vadd.f32 0.0, %v2837
        %2839 = vmatmul.f32.gmra.mxu0 %v2372
        %v2840 = vpop.f32.mrf.mxu0
        %v2841 = vadd.f32 0.0, %v2840
        %2842 = vmatmul.f32.gmra.mxu0 %v2374
        %v2843 = vpop.f32.mrf.mxu0
        %v2844 = vadd.f32 0.0, %v2843
        %2845 = vmatmul.f32.gmra.mxu0 %v2376
        %v2846 = vpop.f32.mrf.mxu0
        %v2847 = vadd.f32 0.0, %v2846
        %2848 = vmatmul.f32.gmra.mxu0 %v2636
        %v2849 = vpop.f32.mrf.mxu0
        %v2850 = vadd.f32 0.0, %v2849
        %2851 = vmatmul.f32.gmra.mxu0 %v2812
        %v2852 = vpop.f32.mrf.mxu0
        %v2853 = vadd.f32 0.0, %v2852
        %2854 = vdwg.mxu0
        %v2855 = vadd.f32 %v2795, %v2832
        %v2856 = vadd.f32 %v2796, %v2835
        %v2857 = vadd.f32 %v2797, %v2838
        %v2858 = vadd.f32 %v2798, %v2841
        %v2859 = vadd.f32 %v2799, %v2844
        %v2860 = vadd.f32 %v2800, %v2847
        %v2861 = vadd.f32 %v2801, %v2850
        %v2862 = vadd.f32 %v2802, %v2853
        %v2863 = vrot.slane %v2311, 2
        %v2864 = vrot.slane %v2312, 2
        %v2865 = vsel %vm878, %v2863, %v2864
        %s2866 = scalar_lea.vmem %s3, 256
        %v2867 = vld [vmem:[%s2866] sm:$0xff]
        %v2868 = vld [vmem:[%s2866 + $0x8] sm:$0xff]
        %v2869 = vld [vmem:[%s2866 + $0x10] sm:$0xff]
        %v2870 = vld [vmem:[%s2866 + $0x18] sm:$0xff]
        %v2871 = vsel %vm2207, %v2865, 0
        %2873 = vmatpush.msra.mxu0 0.0
        %2874 = vmatpush.msra.mxu0 0.0
        %2875 = vmatpush.msra.mxu0 0.0
        %2876 = vmatpush.msra.mxu0 0.0
        %2877 = vmatpush.msra.mxu0 0.0
        %2878 = vmatpush.msra.mxu0 0.0
        %2879 = vmatpush.msra.mxu0 0.0
        %2880 = vmatpush.msra.mxu0 0.0
        %2881 = vmatpush.msra.mxu0 0.0
        %2882 = vmatpush.msra.mxu0 0.0
        %2883 = vmatpush.msra.mxu0 0.0
        %2884 = vmatpush.msra.mxu0 0.0
        %2885 = vmatpush.msra.mxu0 %v2870
        %2886 = vmatpush.msra.mxu0 %v2869
        %2887 = vmatpush.msra.mxu0 %v2868
        %2888 = vmatpush.msra.mxu0 %v2867
        %2889 = vmatmul.f32.gmra.mxu0 %v2509
        %v2890 = vpop.f32.mrf.mxu0
        %v2891 = vadd.f32 0.0, %v2890
        %2892 = vmatmul.f32.gmra.mxu0 %v2511
        %v2893 = vpop.f32.mrf.mxu0
        %v2894 = vadd.f32 0.0, %v2893
        %2895 = vmatmul.f32.gmra.mxu0 %v2513
        %v2896 = vpop.f32.mrf.mxu0
        %v2897 = vadd.f32 0.0, %v2896
        %2898 = vmatmul.f32.gmra.mxu0 %v2515
        %v2899 = vpop.f32.mrf.mxu0
        %v2900 = vadd.f32 0.0, %v2899
        %2901 = vmatmul.f32.gmra.mxu0 %v2517
        %v2902 = vpop.f32.mrf.mxu0
        %v2903 = vadd.f32 0.0, %v2902
        %2904 = vmatmul.f32.gmra.mxu0 %v2519
        %v2905 = vpop.f32.mrf.mxu0
        %v2906 = vadd.f32 0.0, %v2905
        %2907 = vmatmul.f32.gmra.mxu0 %v2695
        %v2908 = vpop.f32.mrf.mxu0
        %v2909 = vadd.f32 0.0, %v2908
        %2910 = vmatmul.f32.gmra.mxu0 %v2871
        %v2911 = vpop.f32.mrf.mxu0
        %v2912 = vadd.f32 0.0, %v2911
        %2913 = vdwg.mxu0
        %v2914 = vadd.f32 %v2855, %v2891
        %v2915 = vadd.f32 %v2856, %v2894
        %v2916 = vadd.f32 %v2857, %v2897
        %v2917 = vadd.f32 %v2858, %v2900
        %v2918 = vadd.f32 %v2859, %v2903
        %v2919 = vadd.f32 %v2860, %v2906
        %v2920 = vadd.f32 %v2861, %v2909
        %v2921 = vadd.f32 %v2862, %v2912
        %v2922 = vld [vmem:[%s4] sm:$0x1]
        %v2924 = vperm.slane %v2922, 0
        %v2926 = vadd.f32 %v2914, %v2924
        %v2927 = vadd.f32 %v2915, %v2924
        %v2928 = vadd.f32 %v2916, %v2924
        %v2929 = vadd.f32 %v2917, %v2924
        %v2930 = vadd.f32 %v2918, %v2924
        %v2931 = vadd.f32 %v2919, %v2924
        %v2932 = vadd.f32 %v2920, %v2924
        %v2933 = vadd.f32 %v2921, %v2924
        %v2934 = vmax.f32 %v2926, 0.0
        %v2935 = vmax.f32 %v2927, 0.0
        %v2936 = vmax.f32 %v2928, 0.0
        %v2937 = vmax.f32 %v2929, 0.0
        %v2938 = vmax.f32 %v2930, 0.0
        %v2939 = vmax.f32 %v2931, 0.0
        %v2940 = vmax.f32 %v2932, 0.0
        %v2941 = vmax.f32 %v2933, 0.0
        %v2942 = vsel %vm2207, %v2934, 0.0
        %v2943 = vsel %vm2207, %v2935, 0.0
        %v2944 = vadd.f32 %v2942, %v2943
        %v2945 = vsel %vm2207, %v2936, 0.0
        %v2946 = vadd.f32 %v2944, %v2945
        %v2947 = vsel %vm2207, %v2937, 0.0
        %v2948 = vadd.f32 %v2946, %v2947
        %v2949 = vsel %vm2207, %v2938, 0.0
        %v2950 = vadd.f32 %v2948, %v2949
        %v2951 = vsel %vm2207, %v2939, 0.0
        %v2952 = vadd.f32 %v2950, %v2951
        %v2953 = vsel %vm2207, %v2940, 0.0
        %v2954 = vadd.f32 %v2952, %v2953
        %v2955 = vsel %vm2207, %v2941, 0.0
        %v2956 = vadd.f32 %v2954, %v2955
        %v2957 = vrot.slane %v2956, 4
        %v2958 = vadd.f32 %v2956, %v2957
        %v2959 = vrot.slane %v2958, 2
        %v2960 = vadd.f32 %v2958, %v2959
        %v2961 = vrot.slane %v2960, 1
        %v2962 = vadd.f32 %v2960, %v2961
        %v2963 = vrcp.pop 64.0
        %v2964 = vmul.f32 64.0, %v2963
        %v2965 = vsub.f32 1.0, %v2964
        %v2966 = vmul.f32 %v2963, %v2965
        %v2967 = vadd.f32 %v2963, %v2966
        %vm2968 = vweird.f32 %v2963
        %v2969 = vsel %vm2968, %v2963, %v2967
        %v2970 = vmul.f32 %v2962, %v2969
        %v2971 = vld [vmem:[%s5] sm:$0xff]
        %v2972 = vld [vmem:[%s5 + $0x8] sm:$0xff]
        %v2973 = vld [vmem:[%s5 + $0x10] sm:$0xff]
        %v2974 = vld [vmem:[%s5 + $0x18] sm:$0xff]
        %v2975 = vld [vmem:[%s6] sm:$0x1]
        %v2977 = vsel %vm2207, %v2970, 0
        %2979 = vmatpush.msra.mxu0 0.0
        %2980 = vmatpush.msra.mxu0 0.0
        %2981 = vmatpush.msra.mxu0 0.0
        %2982 = vmatpush.msra.mxu0 0.0
        %2983 = vmatpush.msra.mxu0 0.0
        %2984 = vmatpush.msra.mxu0 0.0
        %2985 = vmatpush.msra.mxu0 0.0
        %2986 = vmatpush.msra.mxu0 0.0
        %2987 = vmatpush.msra.mxu0 0.0
        %2988 = vmatpush.msra.mxu0 0.0
        %2989 = vmatpush.msra.mxu0 0.0
        %2990 = vmatpush.msra.mxu0 0.0
        %2991 = vmatpush.msra.mxu0 %v2974
        %2992 = vmatpush.msra.mxu0 %v2973
        %2993 = vmatpush.msra.mxu0 %v2972
        %2994 = vmatpush.msra.mxu0 %v2971
        %2995 = vmatmul.f32.gmra.mxu0 %v2977
        %v2996 = vpop.f32.mrf.mxu0
        %v2997 = vadd.f32 %v2975, %v2996
        %2998 = vdwg.mxu0
        %vm2999 = vcmask 73728
        %3000 = vst.msk [vmem:[%s270] sm:$0x1] %vm2999, %v2997
        %s3001 = sand.u32 %s181, 1
        %s3002 = scalar_lea.sflag [#allocation5], %s3001
        %s3003 = sand.u32 %s181, 1
        %s3004 = scalar_lea.vmem [#allocation4], %s3003
        // Predicated region
        $region49: #{cifar_forward.1} parent=47 // pred_check
          %p3005 = pneg %p191
        $region50: #{cifar_forward.1} parent=47 // pred_check_branch
          %3007 = sbr.rel (%p3005) target = $region52
        $region51: #{cifar_forward.1} parent=47 // pred_region
          %3009 = vsyncadd %s3002, 0
          %s3010 = scalar_lea.hbm %s7, %s21
          %s3012 = sshll.u32 %s3004, 4
          %s3013 = int_to_ptr.vmem [resolvable:$true] %s3012
          %s3014 = sshll.u32 %s3010, 4
          %s3015 = int_to_ptr.hbm [resolvable:$true] %s3014
          %3017 = dma.vmem_to_hbm [thread:$0]  %s3013, 16, %s3015, %s3002
        $region52: #{cifar_forward.1} parent=47 // pred_fallthru
          _
      $region48: #{cifar_forward.1} parent=5 // pred_fallthru
        _
      %p3018 = scmp.le.s32.totalorder 2, %s16
      // Predicated region
      $region53: #{cifar_forward.1} parent=5 // pred_check
        %p3019 = pneg %p3018
      $region54: #{cifar_forward.1} parent=5 // pred_check_branch
        %3021 = sbr.rel (%p3019) target = $region56
      $region55: #{cifar_forward.1} parent=5 // pred_region
        %s3022 = ssub.s32 %s16, 2
        // Predicated region
        $region57: #{cifar_forward.1} parent=55 // pred_check
          %p3023 = pneg %p197
        $region58: #{cifar_forward.1} parent=55 // pred_check_branch
          %3025 = sbr.rel (%p3023) target = $region60
        $region59: #{cifar_forward.1} parent=55 // pred_region
          %s3026 = sand.u32 %s182, 1
          %s3027 = scalar_lea.sflag [#allocation5], %s3026
          %s3028 = sand.u32 %s182, 1
          %s3029 = scalar_lea.vmem [#allocation4], %s3028
          %3031 = dma.done %s3027, 16
        $region60: #{cifar_forward.1} parent=55 // pred_fallthru
          _
      $region56: #{cifar_forward.1} parent=5 // pred_fallthru
        _
    $region6: #{cifar_forward.1} parent=1 // loop_footer
      %s20 = sadd.s32 1, %s16
    $region7: #{cifar_forward.1} parent=1 // loop_footer_branch
      %15 = sbr.rel target = $region3
    $region8: #{cifar_forward.1} parent=1 // loop_exit
      _
    %3032 = vsyncpa [#allocation5], 1
    %s3033 = scalar_lea.sflag [#allocation5], 1
    %3034 = vsyncpa %s3033, 1

</llo_original>
